<compile_context>
chip_gen: v7x
topology: tpu7x:2x2x1
jax: 0.10.0
libtpu: 0.0.40
codegen_flags: <defaults>
</compile_context>

<pallas_src>
import functools

import jax
import jax.numpy as jnp
import numpy as np
from jax.experimental import pallas as pl
from jax.experimental.pallas import tpu as pltpu


def _round_up(x, m):
    return (x + m - 1) // m * m


def _trilinear_kernel(coords_ref, field_ref, out_ref, *,
                      Hp, Wp, Dp, H, W, D, weight_dtype):
    """One tile of TN query points against the full (VMEM-resident) field.

    coords_ref: (3, TN) f32 index-space coordinates, rows = (h, w, d), unclamped.
    field_ref : (Cp, Kp) field, flattened row-major from (Cp, Hp, Wp, Dp).
    out_ref   : (Cp, TN) f32, lane-dense output tile.
    """
    TN = coords_ref.shape[-1]

    def axis_weights(row, size_p, size):
        # Tent/hat weights: w[i] = max(0, 1 - |i - clamp(c, 0, size-1)|).
        # Identical to the (1-frac, frac) one-hot pair (including border clamp,
        # exact-integer coordinates and c == size-1), with no integer
        # compares/casts and ~half the VALU ops.  Padded rows i >= size get
        # weight 0 automatically (|i - c| >= 1).
        c = jnp.clip(coords_ref[row:row + 1, :], 0.0, float(size - 1))       # (1, TN)
        i = jax.lax.broadcasted_iota(jnp.int32, (size_p, TN), 0).astype(jnp.float32)
        w = jnp.maximum(0.0, 1.0 - jnp.abs(i - c))                           # (size_p, TN)
        return w.astype(weight_dtype)

    wh = axis_weights(0, Hp, H)   # (Hp, TN)
    ww = axis_weights(1, Wp, W)   # (Wp, TN)
    wd = axis_weights(2, Dp, D)   # (Dp, TN)

    # Fuse all three contractions into one MXU matmul by building the combined
    # per-corner weight matrix (Kp, TN), lane-dense in TN.  Wp and Dp are padded
    # to the sublane tile in the wrapper, so these reshapes are layout-preserving
    # (no K*TN VMEM round trips).
    whw = (wh[:, None, :] * ww[None, :, :]).reshape(Hp * Wp, TN)
    whwd = (whw[:, None, :] * wd[None, :, :]).reshape(Hp * Wp * Dp, TN)

    out_ref[...] = jnp.dot(field_ref[...], whwd.astype(field_ref.dtype),
                           preferred_element_type=jnp.float32)


def trilinear_scalar_field(field, x, extent=2.0, *, tile_n=None,
                           field_dtype=None, weight_dtype=jnp.float32):
    """JAX wrapper: coordinate mapping, padding and pallas_call over point tiles.

    field_dtype / weight_dtype default to f32 (matches the PyTorch module).
    On v6e/v7x, bf16 for both roughly doubles VPU throughput of the weight
    build and halves its VMEM footprint; keep f32 on v5e (no bf16 VALU).
    """
    field = jnp.asarray(field)
    out_dtype = field.dtype if jnp.issubdtype(field.dtype, jnp.floating) else jnp.float32
    squeeze_c = field.ndim == 3
    if squeeze_c:
        field = field[None]                              # (1, H, W, D)
    C, H, W, D = field.shape

    if field_dtype is None:
        field_dtype = out_dtype
    field_dtype = jnp.dtype(field_dtype)
    weight_dtype = jnp.dtype(weight_dtype)

    # Sublane-tile padding: 8 rows for 4-byte dtypes, 16 for 2-byte dtypes.
    f_sub = 8 if field_dtype.itemsize == 4 else 16
    w_sub = 8 if weight_dtype.itemsize == 4 else 16
    Cp = _round_up(C, f_sub)
    Hp, Wp, Dp = (_round_up(s, w_sub) for s in (H, W, D))
    Kp = Hp * Wp * Dp                                    # multiple of 128 (>= 8*8*8)

    # Zero-padded field: padded voxels carry zero value and zero weight.
    field_p = jnp.zeros((Cp, Hp, Wp, Dp), field_dtype).at[:C, :H, :W, :D].set(
        field.astype(field_dtype))
    field_flat = field_p.reshape(Cp, Kp)

    # World -> index-space coordinates.
    extent = jnp.broadcast_to(jnp.asarray(extent, jnp.float32), (3,))
    sizes = jnp.asarray([H, W, D], jnp.float32)
    x = jnp.asarray(x, jnp.float32)
    batch_shape = x.shape[:-1]
    pts = x.reshape(-1, 3)
    # TODO(synk): sample_3d source unavailable; align_corners=True and the
    # x[..., i] <-> spatial axis i mapping are assumed conventions.
    coords = (pts * (2.0 / extent) + 1.0) * 0.5 * (sizes - 1.0)           # (N, 3)
    n = coords.shape[0]

    # Per-generation VMEM budget (v5e/v6e: 128 MiB, v7x: 64 MiB), ~75% usable.
    try:
        vmem_cap = int(pltpu.get_tpu_info().vmem_capacity_bytes)
    except Exception:
        vmem_cap = 64 * 2**20                            # conservative (v7x)
    vmem_limit = max(32 * 2**20, int(0.75 * vmem_cap))

    field_bytes = 2 * Cp * Kp * field_dtype.itemsize     # double-buffered block

    def vmem_estimate(tn):
        # Fused-weight temporaries: whwd + the (Hp*Wp, Dp, TN) broadcast
        # intermediate + a possible dot-input copy (~3x Kp*TN), plus whw.
        tmp = (3 * Kp + Hp * Wp) * tn * weight_dtype.itemsize
        io = 2 * (8 * tn * 4) + 2 * (Cp * tn * 4)        # coords (3->8 sublanes) + out
        return field_bytes + tmp + io + (2 << 20)

    if tile_n is None:
        tile_n = 128
        for cand in (1024, 512, 256):
            if vmem_estimate(cand) <= vmem_limit:
                tile_n = cand
                break
        tile_n = min(tile_n, max(128, _round_up(max(n, 1), 128)))
    if tile_n % 128 != 0:
        raise ValueError("tile_n must be a multiple of 128")
    if vmem_estimate(tile_n) > vmem_limit:
        # TODO(synk): large-field path (factored contraction / DMA corner gather).
        raise NotImplementedError("field too large for the VMEM-resident kernel")

    n_pad = _round_up(max(n, 1), tile_n)
    # Lane-dense (3, N) coordinate layout: each coordinate is a contiguous row.
    coords_t = jnp.pad(coords, ((0, n_pad - n), (0, 0))).T               # (3, n_pad)

    kernel = functools.partial(_trilinear_kernel, Hp=Hp, Wp=Wp, Dp=Dp,
                               H=H, W=W, D=D, weight_dtype=weight_dtype)

    out_t = pl.pallas_call(
        kernel,
        out_shape=jax.ShapeDtypeStruct((Cp, n_pad), jnp.float32),
        grid_spec=pltpu.PrefetchScalarGridSpec(
            num_scalar_prefetch=0,
            grid=(n_pad // tile_n,),
            in_specs=[pl.BlockSpec((3, tile_n), lambda i: (0, i)),
                      # Constant index_map: the field block is fetched once and
                      # re-used across all grid steps (no per-step re-DMA).
                      pl.BlockSpec((Cp, Kp), lambda i: (0, 0))],
            out_specs=pl.BlockSpec((Cp, tile_n), lambda i: (0, i))),
        compiler_params=pltpu.CompilerParams(
            dimension_semantics=("parallel",),
            vmem_limit_bytes=int(vmem_limit)),
    )(coords_t, field_flat)

    out = out_t[:C, :n].T.reshape(batch_shape + (C,)).astype(out_dtype)
    if squeeze_c:
        out = out[..., 0]
    return out


def _reference(field, x, extent=2.0):
    """Pure numpy reference with identical semantics."""
    field = np.asarray(field, np.float32)
    squeeze_c = False
    if field.ndim == 3:
        field = field[None]
        squeeze_c = True
    C, H, W, D = field.shape
    extent = np.broadcast_to(np.asarray(extent, np.float32), (3,))
    sizes = np.array([H, W, D], np.float32)

    pts = np.asarray(x, np.float32).reshape(-1, 3)
    c = (pts * (2.0 / extent) + 1.0) * 0.5 * (sizes - 1.0)
    c = np.clip(c, 0.0, sizes - 1.0)
    i0 = np.floor(c).astype(np.int32)
    frac = c - i0
    i1 = np.minimum(i0 + 1, (sizes - 1).astype(np.int32))

    out = np.zeros((pts.shape[0], C), np.float32)
    for nn in range(pts.shape[0]):
        (h0, w0, d0), (h1, w1, d1) = i0[nn], i1[nn]
        fh, fw, fd = frac[nn]
        for hi, whh in ((h0, 1.0 - fh), (h1, fh)):
            for wi, www in ((w0, 1.0 - fw), (w1, fw)):
                for di, wdd in ((d0, 1.0 - fd), (d1, fd)):
                    out[nn] += whh * www * wdd * field[:, hi, wi, di]

    out = out.reshape(np.asarray(x).shape[:-1] + (C,))
    if squeeze_c:
        out = out[..., 0]
    return out


if __name__ == "__main__":
    key = jax.random.PRNGKey(0)
    k_field, k_x = jax.random.split(key)

    # Deterministic synthetic parameters: multi-channel field (C, H, W, D).
    C, H, W, D = 4, 8, 8, 8
    field = jax.random.normal(k_field, (C, H, W, D), jnp.float32)
    extent = 2.0

    # Query points (batch=2, 512 each); range extends past the extent so the
    # border-clamping path is exercised.
    x = jax.random.uniform(k_x, (2, 512, 3), jnp.float32, minval=-1.3, maxval=1.3)

    out = trilinear_scalar_field(field, x, extent)
    out = jax.block_until_ready(out)

    ref = _reference(np.asarray(field), np.asarray(x), extent)
    # Field and weights stay f32 (matches the PyTorch module); tolerance covers
    # the TPU MXU's default reduced-precision f32 matmul passes.
    np.testing.assert_allclose(np.asarray(out), ref, rtol=2e-2, atol=2e-2)
    assert out.shape == (2, 512, C)

    print("KERNEL_OK")
</pallas_src>

<mosaic_0001>
module attributes {stable_mosaic.version = 11 : i64} {
  func.func @_trilinear_kernel(%arg0: i32, %arg1: memref<3x1024xf32, #tpu.memory_space<vmem>>, %arg2: memref<8x512xf32, #tpu.memory_space<vmem>>, %arg3: memref<8x1024xf32, #tpu.memory_space<vmem>>) attributes {dimension_semantics = [#tpu.dimension_semantics<parallel>], iteration_bounds = array<i64: 1>, scalar_prefetch = 0 : i64, scratch_operands = 0 : i64, tpu.core_type = #tpu.core_type<tc>, window_params = [{transform_indices = @transform_0, window_bounds = array<i64: 3, 1024>}, {pipeline_mode = #tpu.pipeline_mode<synchronous>, transform_indices = @transform_1, window_bounds = array<i64: 8, 512>}, {transform_indices = @transform_2, window_bounds = array<i64: 8, 1024>}]} {
    %c0 = arith.constant 0 : index
    %c0_0 = arith.constant 0 : index
    %0 = vector.load %arg1[%c0, %c0_0] : memref<3x1024xf32, #tpu.memory_space<vmem>>, vector<1x1024xf32>
    %cst = arith.constant 0.000000e+00 : f32
    %cst_1 = arith.constant 7.000000e+00 : f32
    %1 = vector.broadcast %cst : f32 to vector<1x1024xf32>
    %2 = arith.maximumf %1, %0 : vector<1x1024xf32>
    %3 = vector.broadcast %cst_1 : f32 to vector<1x1024xf32>
    %4 = arith.minimumf %3, %2 : vector<1x1024xf32>
    %5 = tpu.iota {dimensions = array<i32: 0>} : vector<8x1024xi32>
    %6 = arith.sitofp %5 : vector<8x1024xi32> to vector<8x1024xf32>
    %7 = vector.broadcast %4 : vector<1x1024xf32> to vector<8x1024xf32>
    %8 = arith.subf %6, %7 : vector<8x1024xf32>
    %9 = math.absf %8 : vector<8x1024xf32>
    %cst_2 = arith.constant 1.000000e+00 : f32
    %10 = vector.broadcast %cst_2 : f32 to vector<8x1024xf32>
    %11 = arith.subf %10, %9 : vector<8x1024xf32>
    %cst_3 = arith.constant 0.000000e+00 : f32
    %12 = vector.broadcast %cst_3 : f32 to vector<8x1024xf32>
    %13 = arith.maximumf %12, %11 : vector<8x1024xf32>
    %c1 = arith.constant 1 : index
    %c0_4 = arith.constant 0 : index
    %14 = vector.load %arg1[%c1, %c0_4] : memref<3x1024xf32, #tpu.memory_space<vmem>>, vector<1x1024xf32>
    %cst_5 = arith.constant 0.000000e+00 : f32
    %cst_6 = arith.constant 7.000000e+00 : f32
    %15 = vector.broadcast %cst_5 : f32 to vector<1x1024xf32>
    %16 = arith.maximumf %15, %14 : vector<1x1024xf32>
    %17 = vector.broadcast %cst_6 : f32 to vector<1x1024xf32>
    %18 = arith.minimumf %17, %16 : vector<1x1024xf32>
    %19 = tpu.iota {dimensions = array<i32: 0>} : vector<8x1024xi32>
    %20 = arith.sitofp %19 : vector<8x1024xi32> to vector<8x1024xf32>
    %21 = vector.broadcast %18 : vector<1x1024xf32> to vector<8x1024xf32>
    %22 = arith.subf %20, %21 : vector<8x1024xf32>
    %23 = math.absf %22 : vector<8x1024xf32>
    %cst_7 = arith.constant 1.000000e+00 : f32
    %24 = vector.broadcast %cst_7 : f32 to vector<8x1024xf32>
    %25 = arith.subf %24, %23 : vector<8x1024xf32>
    %cst_8 = arith.constant 0.000000e+00 : f32
    %26 = vector.broadcast %cst_8 : f32 to vector<8x1024xf32>
    %27 = arith.maximumf %26, %25 : vector<8x1024xf32>
    %c2 = arith.constant 2 : index
    %c0_9 = arith.constant 0 : index
    %28 = vector.load %arg1[%c2, %c0_9] : memref<3x1024xf32, #tpu.memory_space<vmem>>, vector<1x1024xf32>
    %cst_10 = arith.constant 0.000000e+00 : f32
    %cst_11 = arith.constant 7.000000e+00 : f32
    %29 = vector.broadcast %cst_10 : f32 to vector<1x1024xf32>
    %30 = arith.maximumf %29, %28 : vector<1x1024xf32>
    %31 = vector.broadcast %cst_11 : f32 to vector<1x1024xf32>
    %32 = arith.minimumf %31, %30 : vector<1x1024xf32>
    %33 = tpu.iota {dimensions = array<i32: 0>} : vector<8x1024xi32>
    %34 = arith.sitofp %33 : vector<8x1024xi32> to vector<8x1024xf32>
    %35 = vector.broadcast %32 : vector<1x1024xf32> to vector<8x1024xf32>
    %36 = arith.subf %34, %35 : vector<8x1024xf32>
    %37 = math.absf %36 : vector<8x1024xf32>
    %cst_12 = arith.constant 1.000000e+00 : f32
    %38 = vector.broadcast %cst_12 : f32 to vector<8x1024xf32>
    %39 = arith.subf %38, %37 : vector<8x1024xf32>
    %cst_13 = arith.constant 0.000000e+00 : f32
    %40 = vector.broadcast %cst_13 : f32 to vector<8x1024xf32>
    %41 = arith.maximumf %40, %39 : vector<8x1024xf32>
    %42 = vector.shape_cast %13 : vector<8x1024xf32> to vector<8x1x1024xf32>
    %43 = vector.shape_cast %27 : vector<8x1024xf32> to vector<1x8x1024xf32>
    %44 = vector.broadcast %42 : vector<8x1x1024xf32> to vector<8x8x1024xf32>
    %45 = vector.broadcast %43 : vector<1x8x1024xf32> to vector<8x8x1024xf32>
    %46 = arith.mulf %44, %45 : vector<8x8x1024xf32>
    %47 = vector.shape_cast %46 : vector<8x8x1024xf32> to vector<64x1024xf32>
    %48 = vector.shape_cast %47 : vector<64x1024xf32> to vector<64x1x1024xf32>
    %49 = vector.shape_cast %41 : vector<8x1024xf32> to vector<1x8x1024xf32>
    %50 = vector.broadcast %48 : vector<64x1x1024xf32> to vector<64x8x1024xf32>
    %51 = vector.broadcast %49 : vector<1x8x1024xf32> to vector<64x8x1024xf32>
    %52 = arith.mulf %50, %51 : vector<64x8x1024xf32>
    %53 = vector.shape_cast %52 : vector<64x8x1024xf32> to vector<512x1024xf32>
    %c0_14 = arith.constant 0 : index
    %c0_15 = arith.constant 0 : index
    %54 = vector.load %arg2[%c0_14, %c0_15] : memref<8x512xf32, #tpu.memory_space<vmem>>, vector<8x512xf32>
    %cst_16 = arith.constant dense<0.000000e+00> : vector<8x1024xf32>
    %55 = tpu.matmul %54, %53, %cst_16 {dimension_numbers = #tpu.dot_dimension_numbers<[1], [0], [0], [1], [0, 0, 1, 1], [], []>} : vector<8x512xf32>, vector<512x1024xf32>, vector<8x1024xf32> -> vector<8x1024xf32>
    %c0_17 = arith.constant 0 : index
    %c0_18 = arith.constant 0 : index
    %56 = vector.load %arg3[%c0_17, %c0_18] : memref<8x1024xf32, #tpu.memory_space<vmem>>, vector<8x1024xf32>
    tpu.vector_store %arg3[%c0_17, %c0_18], %55 {strides = array<i32>} : memref<8x1024xf32, #tpu.memory_space<vmem>>, vector<8x1024xf32>,
    return
  }
  func.func @transform_0(%arg0: i32) -> (i32, i32) {
    %c0_i32 = arith.constant 0 : i32
    %c0_i32_0 = arith.constant 0 : i32
    return %c0_i32, %arg0 : i32, i32
  }
  func.func @transform_1(%arg0: i32) -> (i32, i32) {
    %c0_i32 = arith.constant 0 : i32
    %c0_i32_0 = arith.constant 0 : i32
    %c0_i32_1 = arith.constant 0 : i32
    return %c0_i32, %c0_i32_0 : i32, i32
  }
  func.func @transform_2(%arg0: i32) -> (i32, i32) {
    %c0_i32 = arith.constant 0 : i32
    %c0_i32_0 = arith.constant 0 : i32
    return %c0_i32, %arg0 : i32, i32
  }
}

</mosaic_0001>

<llo_original>
// kernel: tpu_custom_call.1
$region0: #{tpu_custom_call.1}
  #allocation0 [shape = 'u32[]', space=smem, size = 0x4, offset = 0x4, fixed_abs, tag = 'smem constant byte address 0x4 - core index']
  #allocation1 [shape = 'u32[144,128]{1,0:T(1,128)}', space=vmem, size = 0x12000, scoped, tag = 'internal scratch']
  %s0 = inlined_call_operand.hbm [shape: f32[3,1024], index: 0, kind: input, shape index: {}]
  %s1 = inlined_call_operand.hbm [shape: f32[8,512], index: 1, kind: input, shape index: {}]
  %s2 = inlined_call_operand.hbm [shape: f32[8,1024], index: 2, kind: output, shape index: {}]
  %s3 = sld [smem:[#allocation0]]
  $region26: #{tpu_custom_call.1} parent=0
    _
  %s5 = ssub.s32 1, %s3
  %s6 = scalar_select 0, %s5, %s3
  $region1: #{tpu_custom_call.1} parent=0
    #allocation2 [shape = 'u8[16384]{0}', space=vmem, size = 0x4000, scoped, tag = 'input window, operand 0, single buffered']
    #allocation3 [shape = 's32[1]{0}', space=sflag, size = 0x4, scoped, tag = 'scoped memory for tpu_custom_call.1']
    #allocation4 [shape = 's32[1]{0}', space=sflag, size = 0x4, scoped, tag = 'scoped memory for tpu_custom_call.1']
    #allocation5 [shape = 'u8[16384]{0}', space=vmem, size = 0x4000, scoped, tag = 'input window, operand 1, single buffered']
    #allocation6 [shape = 's32[1]{0}', space=sflag, size = 0x4, scoped, tag = 'scoped memory for tpu_custom_call.1']
    #allocation7 [shape = 'u8[32768]{0}', space=vmem, size = 0x8000, scoped, tag = 'output window, operand 0, single buffered']
    %7 = vsyncpa [#allocation3], 0
    %8 = vsyncpa [#allocation6], 0
    %9 = vsyncpa [#allocation4], 0
    // Predicated region
    $region2: #{tpu_custom_call.1} parent=1 // pred_check
      _
    $region3: #{tpu_custom_call.1} parent=1 // pred_check_branch
      %11 = sbr.rel (0) target = $region5
    $region4: #{tpu_custom_call.1} parent=1 // pred_region
      %s13 = ssub.s32 512, 512
      %14 = vsyncadd [#allocation3], %s13
      %s16 = sshll.u32 [#allocation2], 4
      %s17 = int_to_ptr.vmem [resolvable:$true] %s16
      %19 = dma.hbm_to_vmem [thread:$0]  %s0, 512, %s17, [#allocation3]
    $region5: #{tpu_custom_call.1} parent=1 // pred_fallthru
      _
    // Predicated region
    $region6: #{tpu_custom_call.1} parent=1 // pred_check
      _
    $region7: #{tpu_custom_call.1} parent=1 // pred_check_branch
      %21 = sbr.rel (0) target = $region9
    $region8: #{tpu_custom_call.1} parent=1 // pred_region
      %s23 = ssub.s32 512, 512
      %24 = vsyncadd [#allocation6], %s23
      %s26 = sshll.u32 [#allocation5], 4
      %s27 = int_to_ptr.vmem [resolvable:$true] %s26
      %29 = dma.hbm_to_vmem [thread:$0]  %s1, 512, %s27, [#allocation6]
    $region9: #{tpu_custom_call.1} parent=1 // pred_fallthru
      _
    // Predicated region
    $region10: #{tpu_custom_call.1} parent=1 // pred_check
      _
    $region11: #{tpu_custom_call.1} parent=1 // pred_check_branch
      %31 = sbr.rel (0) target = $region13
    $region12: #{tpu_custom_call.1} parent=1 // pred_region
      %32 = dma.done [#allocation3], 512
    $region13: #{tpu_custom_call.1} parent=1 // pred_fallthru
      _
    // Predicated region
    $region14: #{tpu_custom_call.1} parent=1 // pred_check
      _
    $region15: #{tpu_custom_call.1} parent=1 // pred_check_branch
      %34 = sbr.rel (0) target = $region17
    $region16: #{tpu_custom_call.1} parent=1 // pred_region
      %35 = dma.done [#allocation6], 512
    $region17: #{tpu_custom_call.1} parent=1 // pred_fallthru
      _
    %v36 = vld [vmem:[#allocation2] ss:$4 sm:$0xff]
    %v37 = vmax.f32 %v36, 0.0
    %v38 = vmin.f32 %v37, 7.0
    %v39 = vlaneseq
    %v40 = vshrl.u32 %v39, 7
    %v41 = vcvt.s32.f32 %v40
    %v43 = vlaneseq
    %v44 = vshrl.u32 %v43, 7
    %v45 = vsub.s32 0, %v44
    %v46 = vrot.slane %v38, %v45
    %v47 = vlaneseq
    %v48 = vshrl.u32 %v47, 7
    %v49 = vsub.s32 1, %v48
    %v50 = vrot.slane %v38, %v49
    %v51 = vlaneseq
    %v52 = vshrl.u32 %v51, 7
    %v53 = vsub.s32 2, %v52
    %v54 = vrot.slane %v38, %v53
    %v55 = vlaneseq
    %v56 = vshrl.u32 %v55, 7
    %v57 = vsub.s32 3, %v56
    %v58 = vrot.slane %v38, %v57
    %v59 = vlaneseq
    %v60 = vshrl.u32 %v59, 7
    %v61 = vsub.s32 4, %v60
    %v62 = vrot.slane %v38, %v61
    %v63 = vlaneseq
    %v64 = vshrl.u32 %v63, 7
    %v65 = vsub.s32 5, %v64
    %v66 = vrot.slane %v38, %v65
    %v67 = vlaneseq
    %v68 = vshrl.u32 %v67, 7
    %v69 = vsub.s32 6, %v68
    %v70 = vrot.slane %v38, %v69
    %v71 = vlaneseq
    %v72 = vshrl.u32 %v71, 7
    %v73 = vsub.s32 7, %v72
    %v74 = vrot.slane %v38, %v73
    %v83 = vsub.f32 %v41, %v46
    %v84 = vsub.f32 %v41, %v50
    %v85 = vsub.f32 %v41, %v54
    %v86 = vsub.f32 %v41, %v58
    %v87 = vsub.f32 %v41, %v62
    %v88 = vsub.f32 %v41, %v66
    %v89 = vsub.f32 %v41, %v70
    %v90 = vsub.f32 %v41, %v74
    %v91 = vand.u32 2147483647, %v83
    %v92 = vand.u32 2147483647, %v84
    %v93 = vand.u32 2147483647, %v85
    %v94 = vand.u32 2147483647, %v86
    %v95 = vand.u32 2147483647, %v87
    %v96 = vand.u32 2147483647, %v88
    %v97 = vand.u32 2147483647, %v89
    %v98 = vand.u32 2147483647, %v90
    %v99 = vsub.f32 1.0, %v91
    %v100 = vsub.f32 1.0, %v92
    %v101 = vsub.f32 1.0, %v93
    %v102 = vsub.f32 1.0, %v94
    %v103 = vsub.f32 1.0, %v95
    %v104 = vsub.f32 1.0, %v96
    %v105 = vsub.f32 1.0, %v97
    %v106 = vsub.f32 1.0, %v98
    %v107 = vmax.f32 %v99, 0.0
    %v108 = vmax.f32 %v100, 0.0
    %v109 = vmax.f32 %v101, 0.0
    %v110 = vmax.f32 %v102, 0.0
    %v111 = vmax.f32 %v103, 0.0
    %v112 = vmax.f32 %v104, 0.0
    %v113 = vmax.f32 %v105, 0.0
    %v114 = vmax.f32 %v106, 0.0
    %s115 = scalar_lea.vmem [#allocation2], 1
    %v116 = vld [vmem:[%s115] ss:$4 sm:$0xff]
    %v117 = vmax.f32 %v116, 0.0
    %v118 = vmin.f32 %v117, 7.0
    %v120 = vlaneseq
    %v121 = vshrl.u32 %v120, 7
    %v122 = vsub.s32 0, %v121
    %v123 = vrot.slane %v118, %v122
    %v124 = vlaneseq
    %v125 = vshrl.u32 %v124, 7
    %v126 = vsub.s32 1, %v125
    %v127 = vrot.slane %v118, %v126
    %v128 = vlaneseq
    %v129 = vshrl.u32 %v128, 7
    %v130 = vsub.s32 2, %v129
    %v131 = vrot.slane %v118, %v130
    %v132 = vlaneseq
    %v133 = vshrl.u32 %v132, 7
    %v134 = vsub.s32 3, %v133
    %v135 = vrot.slane %v118, %v134
    %v136 = vlaneseq
    %v137 = vshrl.u32 %v136, 7
    %v138 = vsub.s32 4, %v137
    %v139 = vrot.slane %v118, %v138
    %v140 = vlaneseq
    %v141 = vshrl.u32 %v140, 7
    %v142 = vsub.s32 5, %v141
    %v143 = vrot.slane %v118, %v142
    %v144 = vlaneseq
    %v145 = vshrl.u32 %v144, 7
    %v146 = vsub.s32 6, %v145
    %v147 = vrot.slane %v118, %v146
    %v148 = vlaneseq
    %v149 = vshrl.u32 %v148, 7
    %v150 = vsub.s32 7, %v149
    %v151 = vrot.slane %v118, %v150
    %v160 = vsub.f32 %v41, %v123
    %v161 = vsub.f32 %v41, %v127
    %v162 = vsub.f32 %v41, %v131
    %v163 = vsub.f32 %v41, %v135
    %v164 = vsub.f32 %v41, %v139
    %v165 = vsub.f32 %v41, %v143
    %v166 = vsub.f32 %v41, %v147
    %v167 = vsub.f32 %v41, %v151
    %v168 = vand.u32 2147483647, %v160
    %v169 = vand.u32 2147483647, %v161
    %v170 = vand.u32 2147483647, %v162
    %v171 = vand.u32 2147483647, %v163
    %v172 = vand.u32 2147483647, %v164
    %v173 = vand.u32 2147483647, %v165
    %v174 = vand.u32 2147483647, %v166
    %v175 = vand.u32 2147483647, %v167
    %v176 = vsub.f32 1.0, %v168
    %v177 = vsub.f32 1.0, %v169
    %v178 = vsub.f32 1.0, %v170
    %v179 = vsub.f32 1.0, %v171
    %v180 = vsub.f32 1.0, %v172
    %v181 = vsub.f32 1.0, %v173
    %v182 = vsub.f32 1.0, %v174
    %v183 = vsub.f32 1.0, %v175
    %v184 = vmax.f32 %v176, 0.0
    %v185 = vmax.f32 %v177, 0.0
    %v186 = vmax.f32 %v178, 0.0
    %v187 = vmax.f32 %v179, 0.0
    %v188 = vmax.f32 %v180, 0.0
    %v189 = vmax.f32 %v181, 0.0
    %v190 = vmax.f32 %v182, 0.0
    %v191 = vmax.f32 %v183, 0.0
    %s192 = scalar_lea.vmem [#allocation2], 2
    %v193 = vld [vmem:[%s192] ss:$4 sm:$0xff]
    %v194 = vmax.f32 %v193, 0.0
    %v195 = vmin.f32 %v194, 7.0
    %v197 = vlaneseq
    %v198 = vshrl.u32 %v197, 7
    %v199 = vsub.s32 0, %v198
    %v200 = vrot.slane %v195, %v199
    %v201 = vlaneseq
    %v202 = vshrl.u32 %v201, 7
    %v203 = vsub.s32 1, %v202
    %v204 = vrot.slane %v195, %v203
    %v205 = vlaneseq
    %v206 = vshrl.u32 %v205, 7
    %v207 = vsub.s32 2, %v206
    %v208 = vrot.slane %v195, %v207
    %v209 = vlaneseq
    %v210 = vshrl.u32 %v209, 7
    %v211 = vsub.s32 3, %v210
    %v212 = vrot.slane %v195, %v211
    %v213 = vlaneseq
    %v214 = vshrl.u32 %v213, 7
    %v215 = vsub.s32 4, %v214
    %v216 = vrot.slane %v195, %v215
    %v217 = vlaneseq
    %v218 = vshrl.u32 %v217, 7
    %v219 = vsub.s32 5, %v218
    %v220 = vrot.slane %v195, %v219
    %v221 = vlaneseq
    %v222 = vshrl.u32 %v221, 7
    %v223 = vsub.s32 6, %v222
    %v224 = vrot.slane %v195, %v223
    %v225 = vlaneseq
    %v226 = vshrl.u32 %v225, 7
    %v227 = vsub.s32 7, %v226
    %v228 = vrot.slane %v195, %v227
    %v237 = vsub.f32 %v41, %v200
    %v238 = vsub.f32 %v41, %v204
    %v239 = vsub.f32 %v41, %v208
    %v240 = vsub.f32 %v41, %v212
    %v241 = vsub.f32 %v41, %v216
    %v242 = vsub.f32 %v41, %v220
    %v243 = vsub.f32 %v41, %v224
    %v244 = vsub.f32 %v41, %v228
    %v245 = vand.u32 2147483647, %v237
    %v246 = vand.u32 2147483647, %v238
    %v247 = vand.u32 2147483647, %v239
    %v248 = vand.u32 2147483647, %v240
    %v249 = vand.u32 2147483647, %v241
    %v250 = vand.u32 2147483647, %v242
    %v251 = vand.u32 2147483647, %v243
    %v252 = vand.u32 2147483647, %v244
    %v253 = vsub.f32 1.0, %v245
    %v254 = vsub.f32 1.0, %v246
    %v255 = vsub.f32 1.0, %v247
    %v256 = vsub.f32 1.0, %v248
    %v257 = vsub.f32 1.0, %v249
    %v258 = vsub.f32 1.0, %v250
    %v259 = vsub.f32 1.0, %v251
    %v260 = vsub.f32 1.0, %v252
    %v261 = vmax.f32 %v253, 0.0
    %v262 = vmax.f32 %v254, 0.0
    %v263 = vmax.f32 %v255, 0.0
    %v264 = vmax.f32 %v256, 0.0
    %v265 = vmax.f32 %v257, 0.0
    %v266 = vmax.f32 %v258, 0.0
    %v267 = vmax.f32 %v259, 0.0
    %v268 = vmax.f32 %v260, 0.0
    %v277 = vcombine.low %v107, %v108
    %v278 = vcombine.high %v107, %v108
    %v279 = vcombine.low %v109, %v110
    %v280 = vcombine.high %v109, %v110
    %v281 = vcombine.low %v111, %v112
    %v282 = vcombine.high %v111, %v112
    %v283 = vcombine.low %v113, %v114
    %v284 = vcombine.high %v113, %v114
    %v286 = vunpack.c.l.s4 1966171168
    %v287 = vunpack.c.0.s8 %v286
    %v288 = vlaneseq
    %v289 = vshrl.u32 %v288, 7
    %v290 = vsub.s32 %v287, %v289
    %v291 = vrot.slane %v277, %v290
    %v293 = vunpack.c.l.s4 1966171168
    %v294 = vunpack.c.0.s8 %v293
    %v295 = vlaneseq
    %v296 = vshrl.u32 %v295, 7
    %v297 = vsub.s32 %v294, %v296
    %v298 = vrot.slane %v278, %v297
    %v300 = vunpack.c.l.s4 1966171168
    %v301 = vunpack.c.0.s8 %v300
    %v302 = vlaneseq
    %v303 = vshrl.u32 %v302, 7
    %v304 = vsub.s32 %v301, %v303
    %v305 = vrot.slane %v279, %v304
    %v307 = vunpack.c.l.s4 1966171168
    %v308 = vunpack.c.0.s8 %v307
    %v309 = vlaneseq
    %v310 = vshrl.u32 %v309, 7
    %v311 = vsub.s32 %v308, %v310
    %v312 = vrot.slane %v280, %v311
    %v314 = vunpack.c.l.s4 1966171168
    %v315 = vunpack.c.0.s8 %v314
    %v316 = vlaneseq
    %v317 = vshrl.u32 %v316, 7
    %v318 = vsub.s32 %v315, %v317
    %v319 = vrot.slane %v281, %v318
    %v321 = vunpack.c.l.s4 1966171168
    %v322 = vunpack.c.0.s8 %v321
    %v323 = vlaneseq
    %v324 = vshrl.u32 %v323, 7
    %v325 = vsub.s32 %v322, %v324
    %v326 = vrot.slane %v282, %v325
    %v328 = vunpack.c.l.s4 1966171168
    %v329 = vunpack.c.0.s8 %v328
    %v330 = vlaneseq
    %v331 = vshrl.u32 %v330, 7
    %v332 = vsub.s32 %v329, %v331
    %v333 = vrot.slane %v283, %v332
    %v335 = vunpack.c.l.s4 1966171168
    %v336 = vunpack.c.0.s8 %v335
    %v337 = vlaneseq
    %v338 = vshrl.u32 %v337, 7
    %v339 = vsub.s32 %v336, %v338
    %v340 = vrot.slane %v284, %v339
    %v341 = vcombine.low %v291, %v305
    %v342 = vcombine.high %v291, %v305
    %v343 = vcombine.low %v298, %v312
    %v344 = vcombine.high %v298, %v312
    %v345 = vcombine.low %v319, %v333
    %v346 = vcombine.high %v319, %v333
    %v347 = vcombine.low %v326, %v340
    %v348 = vcombine.high %v326, %v340
    %v350 = vunpack.c.l.s4 1966171168
    %v351 = vunpack.c.0.s8 %v350
    %v352 = vlaneseq
    %v353 = vshrl.u32 %v352, 7
    %v354 = vsub.s32 %v351, %v353
    %v355 = vrot.slane %v341, %v354
    %v357 = vunpack.c.l.s4 1966171168
    %v358 = vunpack.c.0.s8 %v357
    %v359 = vlaneseq
    %v360 = vshrl.u32 %v359, 7
    %v361 = vsub.s32 %v358, %v360
    %v362 = vrot.slane %v343, %v361
    %v364 = vunpack.c.l.s4 1966171168
    %v365 = vunpack.c.0.s8 %v364
    %v366 = vlaneseq
    %v367 = vshrl.u32 %v366, 7
    %v368 = vsub.s32 %v365, %v367
    %v369 = vrot.slane %v342, %v368
    %v371 = vunpack.c.l.s4 1966171168
    %v372 = vunpack.c.0.s8 %v371
    %v373 = vlaneseq
    %v374 = vshrl.u32 %v373, 7
    %v375 = vsub.s32 %v372, %v374
    %v376 = vrot.slane %v344, %v375
    %v378 = vunpack.c.l.s4 1966171168
    %v379 = vunpack.c.0.s8 %v378
    %v380 = vlaneseq
    %v381 = vshrl.u32 %v380, 7
    %v382 = vsub.s32 %v379, %v381
    %v383 = vrot.slane %v345, %v382
    %v385 = vunpack.c.l.s4 1966171168
    %v386 = vunpack.c.0.s8 %v385
    %v387 = vlaneseq
    %v388 = vshrl.u32 %v387, 7
    %v389 = vsub.s32 %v386, %v388
    %v390 = vrot.slane %v347, %v389
    %v392 = vunpack.c.l.s4 1966171168
    %v393 = vunpack.c.0.s8 %v392
    %v394 = vlaneseq
    %v395 = vshrl.u32 %v394, 7
    %v396 = vsub.s32 %v393, %v395
    %v397 = vrot.slane %v346, %v396
    %v399 = vunpack.c.l.s4 1966171168
    %v400 = vunpack.c.0.s8 %v399
    %v401 = vlaneseq
    %v402 = vshrl.u32 %v401, 7
    %v403 = vsub.s32 %v400, %v402
    %v404 = vrot.slane %v348, %v403
    %v405 = vcombine.low %v355, %v383
    %v406 = vcombine.high %v355, %v383
    %v407 = vcombine.low %v362, %v390
    %v408 = vcombine.high %v362, %v390
    %v409 = vcombine.low %v369, %v397
    %v410 = vcombine.high %v369, %v397
    %v411 = vcombine.low %v376, %v404
    %v412 = vcombine.high %v376, %v404
    %v413 = vlaneseq
    %v414 = vshrl.u32 %v413, 7
    %v415 = vsub.s32 0, %v414
    %v416 = vrot.slane %v405, %v415
    %v417 = vlaneseq
    %v418 = vshrl.u32 %v417, 7
    %v419 = vsub.s32 1, %v418
    %v420 = vrot.slane %v405, %v419
    %v421 = vlaneseq
    %v422 = vshrl.u32 %v421, 7
    %v423 = vsub.s32 2, %v422
    %v424 = vrot.slane %v405, %v423
    %v425 = vlaneseq
    %v426 = vshrl.u32 %v425, 7
    %v427 = vsub.s32 3, %v426
    %v428 = vrot.slane %v405, %v427
    %v429 = vlaneseq
    %v430 = vshrl.u32 %v429, 7
    %v431 = vsub.s32 4, %v430
    %v432 = vrot.slane %v405, %v431
    %v433 = vlaneseq
    %v434 = vshrl.u32 %v433, 7
    %v435 = vsub.s32 5, %v434
    %v436 = vrot.slane %v405, %v435
    %v437 = vlaneseq
    %v438 = vshrl.u32 %v437, 7
    %v439 = vsub.s32 6, %v438
    %v440 = vrot.slane %v405, %v439
    %v441 = vlaneseq
    %v442 = vshrl.u32 %v441, 7
    %v443 = vsub.s32 7, %v442
    %v444 = vrot.slane %v405, %v443
    %v445 = vlaneseq
    %v446 = vshrl.u32 %v445, 7
    %v447 = vsub.s32 0, %v446
    %v448 = vrot.slane %v409, %v447
    %v449 = vlaneseq
    %v450 = vshrl.u32 %v449, 7
    %v451 = vsub.s32 1, %v450
    %v452 = vrot.slane %v409, %v451
    %v453 = vlaneseq
    %v454 = vshrl.u32 %v453, 7
    %v455 = vsub.s32 2, %v454
    %v456 = vrot.slane %v409, %v455
    %v457 = vlaneseq
    %v458 = vshrl.u32 %v457, 7
    %v459 = vsub.s32 3, %v458
    %v460 = vrot.slane %v409, %v459
    %v461 = vlaneseq
    %v462 = vshrl.u32 %v461, 7
    %v463 = vsub.s32 4, %v462
    %v464 = vrot.slane %v409, %v463
    %v465 = vlaneseq
    %v466 = vshrl.u32 %v465, 7
    %v467 = vsub.s32 5, %v466
    %v468 = vrot.slane %v409, %v467
    %v469 = vlaneseq
    %v470 = vshrl.u32 %v469, 7
    %v471 = vsub.s32 6, %v470
    %v472 = vrot.slane %v409, %v471
    %v473 = vlaneseq
    %v474 = vshrl.u32 %v473, 7
    %v475 = vsub.s32 7, %v474
    %v476 = vrot.slane %v409, %v475
    %v477 = vlaneseq
    %v478 = vshrl.u32 %v477, 7
    %v479 = vsub.s32 0, %v478
    %v480 = vrot.slane %v406, %v479
    %v481 = vlaneseq
    %v482 = vshrl.u32 %v481, 7
    %v483 = vsub.s32 1, %v482
    %v484 = vrot.slane %v406, %v483
    %v485 = vlaneseq
    %v486 = vshrl.u32 %v485, 7
    %v487 = vsub.s32 2, %v486
    %v488 = vrot.slane %v406, %v487
    %v489 = vlaneseq
    %v490 = vshrl.u32 %v489, 7
    %v491 = vsub.s32 3, %v490
    %v492 = vrot.slane %v406, %v491
    %v493 = vlaneseq
    %v494 = vshrl.u32 %v493, 7
    %v495 = vsub.s32 4, %v494
    %v496 = vrot.slane %v406, %v495
    %v497 = vlaneseq
    %v498 = vshrl.u32 %v497, 7
    %v499 = vsub.s32 5, %v498
    %v500 = vrot.slane %v406, %v499
    %v501 = vlaneseq
    %v502 = vshrl.u32 %v501, 7
    %v503 = vsub.s32 6, %v502
    %v504 = vrot.slane %v406, %v503
    %v505 = vlaneseq
    %v506 = vshrl.u32 %v505, 7
    %v507 = vsub.s32 7, %v506
    %v508 = vrot.slane %v406, %v507
    %v509 = vlaneseq
    %v510 = vshrl.u32 %v509, 7
    %v511 = vsub.s32 0, %v510
    %v512 = vrot.slane %v410, %v511
    %v513 = vlaneseq
    %v514 = vshrl.u32 %v513, 7
    %v515 = vsub.s32 1, %v514
    %v516 = vrot.slane %v410, %v515
    %v517 = vlaneseq
    %v518 = vshrl.u32 %v517, 7
    %v519 = vsub.s32 2, %v518
    %v520 = vrot.slane %v410, %v519
    %v521 = vlaneseq
    %v522 = vshrl.u32 %v521, 7
    %v523 = vsub.s32 3, %v522
    %v524 = vrot.slane %v410, %v523
    %v525 = vlaneseq
    %v526 = vshrl.u32 %v525, 7
    %v527 = vsub.s32 4, %v526
    %v528 = vrot.slane %v410, %v527
    %v529 = vlaneseq
    %v530 = vshrl.u32 %v529, 7
    %v531 = vsub.s32 5, %v530
    %v532 = vrot.slane %v410, %v531
    %v533 = vlaneseq
    %v534 = vshrl.u32 %v533, 7
    %v535 = vsub.s32 6, %v534
    %v536 = vrot.slane %v410, %v535
    %v537 = vlaneseq
    %v538 = vshrl.u32 %v537, 7
    %v539 = vsub.s32 7, %v538
    %v540 = vrot.slane %v410, %v539
    %v541 = vlaneseq
    %v542 = vshrl.u32 %v541, 7
    %v543 = vsub.s32 0, %v542
    %v544 = vrot.slane %v407, %v543
    %v545 = vlaneseq
    %v546 = vshrl.u32 %v545, 7
    %v547 = vsub.s32 1, %v546
    %v548 = vrot.slane %v407, %v547
    %v549 = vlaneseq
    %v550 = vshrl.u32 %v549, 7
    %v551 = vsub.s32 2, %v550
    %v552 = vrot.slane %v407, %v551
    %v553 = vlaneseq
    %v554 = vshrl.u32 %v553, 7
    %v555 = vsub.s32 3, %v554
    %v556 = vrot.slane %v407, %v555
    %v557 = vlaneseq
    %v558 = vshrl.u32 %v557, 7
    %v559 = vsub.s32 4, %v558
    %v560 = vrot.slane %v407, %v559
    %v561 = vlaneseq
    %v562 = vshrl.u32 %v561, 7
    %v563 = vsub.s32 5, %v562
    %v564 = vrot.slane %v407, %v563
    %v565 = vlaneseq
    %v566 = vshrl.u32 %v565, 7
    %v567 = vsub.s32 6, %v566
    %v568 = vrot.slane %v407, %v567
    %v569 = vlaneseq
    %v570 = vshrl.u32 %v569, 7
    %v571 = vsub.s32 7, %v570
    %v572 = vrot.slane %v407, %v571
    %v573 = vlaneseq
    %v574 = vshrl.u32 %v573, 7
    %v575 = vsub.s32 0, %v574
    %v576 = vrot.slane %v411, %v575
    %v577 = vlaneseq
    %v578 = vshrl.u32 %v577, 7
    %v579 = vsub.s32 1, %v578
    %v580 = vrot.slane %v411, %v579
    %v581 = vlaneseq
    %v582 = vshrl.u32 %v581, 7
    %v583 = vsub.s32 2, %v582
    %v584 = vrot.slane %v411, %v583
    %v585 = vlaneseq
    %v586 = vshrl.u32 %v585, 7
    %v587 = vsub.s32 3, %v586
    %v588 = vrot.slane %v411, %v587
    %v589 = vlaneseq
    %v590 = vshrl.u32 %v589, 7
    %v591 = vsub.s32 4, %v590
    %v592 = vrot.slane %v411, %v591
    %v593 = vlaneseq
    %v594 = vshrl.u32 %v593, 7
    %v595 = vsub.s32 5, %v594
    %v596 = vrot.slane %v411, %v595
    %v597 = vlaneseq
    %v598 = vshrl.u32 %v597, 7
    %v599 = vsub.s32 6, %v598
    %v600 = vrot.slane %v411, %v599
    %v601 = vlaneseq
    %v602 = vshrl.u32 %v601, 7
    %v603 = vsub.s32 7, %v602
    %v604 = vrot.slane %v411, %v603
    %v605 = vlaneseq
    %v606 = vshrl.u32 %v605, 7
    %v607 = vsub.s32 0, %v606
    %v608 = vrot.slane %v408, %v607
    %v609 = vlaneseq
    %v610 = vshrl.u32 %v609, 7
    %v611 = vsub.s32 1, %v610
    %v612 = vrot.slane %v408, %v611
    %v613 = vlaneseq
    %v614 = vshrl.u32 %v613, 7
    %v615 = vsub.s32 2, %v614
    %v616 = vrot.slane %v408, %v615
    %v617 = vlaneseq
    %v618 = vshrl.u32 %v617, 7
    %v619 = vsub.s32 3, %v618
    %v620 = vrot.slane %v408, %v619
    %v621 = vlaneseq
    %v622 = vshrl.u32 %v621, 7
    %v623 = vsub.s32 4, %v622
    %v624 = vrot.slane %v408, %v623
    %v625 = vlaneseq
    %v626 = vshrl.u32 %v625, 7
    %v627 = vsub.s32 5, %v626
    %v628 = vrot.slane %v408, %v627
    %v629 = vlaneseq
    %v630 = vshrl.u32 %v629, 7
    %v631 = vsub.s32 6, %v630
    %v632 = vrot.slane %v408, %v631
    %v633 = vlaneseq
    %v634 = vshrl.u32 %v633, 7
    %v635 = vsub.s32 7, %v634
    %v636 = vrot.slane %v408, %v635
    %v637 = vlaneseq
    %v638 = vshrl.u32 %v637, 7
    %v639 = vsub.s32 0, %v638
    %v640 = vrot.slane %v412, %v639
    %v641 = vlaneseq
    %v642 = vshrl.u32 %v641, 7
    %v643 = vsub.s32 1, %v642
    %v644 = vrot.slane %v412, %v643
    %v645 = vlaneseq
    %v646 = vshrl.u32 %v645, 7
    %v647 = vsub.s32 2, %v646
    %v648 = vrot.slane %v412, %v647
    %v649 = vlaneseq
    %v650 = vshrl.u32 %v649, 7
    %v651 = vsub.s32 3, %v650
    %v652 = vrot.slane %v412, %v651
    %v653 = vlaneseq
    %v654 = vshrl.u32 %v653, 7
    %v655 = vsub.s32 4, %v654
    %v656 = vrot.slane %v412, %v655
    %v657 = vlaneseq
    %v658 = vshrl.u32 %v657, 7
    %v659 = vsub.s32 5, %v658
    %v660 = vrot.slane %v412, %v659
    %v661 = vlaneseq
    %v662 = vshrl.u32 %v661, 7
    %v663 = vsub.s32 6, %v662
    %v664 = vrot.slane %v412, %v663
    %v665 = vlaneseq
    %v666 = vshrl.u32 %v665, 7
    %v667 = vsub.s32 7, %v666
    %v668 = vrot.slane %v412, %v667
    %v733 = vmul.f32 %v416, %v184
    %v734 = vmul.f32 %v420, %v185
    %v735 = vmul.f32 %v424, %v186
    %v736 = vmul.f32 %v428, %v187
    %v737 = vmul.f32 %v432, %v188
    %v738 = vmul.f32 %v436, %v189
    %v739 = vmul.f32 %v440, %v190
    %v740 = vmul.f32 %v444, %v191
    %v741 = vmul.f32 %v448, %v184
    %v742 = vmul.f32 %v452, %v185
    %v743 = vmul.f32 %v456, %v186
    %v744 = vmul.f32 %v460, %v187
    %v745 = vmul.f32 %v464, %v188
    %v746 = vmul.f32 %v468, %v189
    %v747 = vmul.f32 %v472, %v190
    %v748 = vmul.f32 %v476, %v191
    %v749 = vmul.f32 %v480, %v184
    %v750 = vmul.f32 %v484, %v185
    %v751 = vmul.f32 %v488, %v186
    %v752 = vmul.f32 %v492, %v187
    %v753 = vmul.f32 %v496, %v188
    %v754 = vmul.f32 %v500, %v189
    %v755 = vmul.f32 %v504, %v190
    %v756 = vmul.f32 %v508, %v191
    %v757 = vmul.f32 %v512, %v184
    %v758 = vmul.f32 %v516, %v185
    %v759 = vmul.f32 %v520, %v186
    %v760 = vmul.f32 %v524, %v187
    %v761 = vmul.f32 %v528, %v188
    %v762 = vmul.f32 %v532, %v189
    %v763 = vmul.f32 %v536, %v190
    %v764 = vmul.f32 %v540, %v191
    %v765 = vmul.f32 %v544, %v184
    %v766 = vmul.f32 %v548, %v185
    %v767 = vmul.f32 %v552, %v186
    %v768 = vmul.f32 %v556, %v187
    %v769 = vmul.f32 %v560, %v188
    %v770 = vmul.f32 %v564, %v189
    %v771 = vmul.f32 %v568, %v190
    %v772 = vmul.f32 %v572, %v191
    %v773 = vmul.f32 %v576, %v184
    %v774 = vmul.f32 %v580, %v185
    %v775 = vmul.f32 %v584, %v186
    %v776 = vmul.f32 %v588, %v187
    %v777 = vmul.f32 %v592, %v188
    %v778 = vmul.f32 %v596, %v189
    %v779 = vmul.f32 %v600, %v190
    %v780 = vmul.f32 %v604, %v191
    %v781 = vmul.f32 %v608, %v184
    %v782 = vmul.f32 %v612, %v185
    %v783 = vmul.f32 %v616, %v186
    %v784 = vmul.f32 %v620, %v187
    %v785 = vmul.f32 %v624, %v188
    %v786 = vmul.f32 %v628, %v189
    %v787 = vmul.f32 %v632, %v190
    %v788 = vmul.f32 %v636, %v191
    %v789 = vmul.f32 %v640, %v184
    %v790 = vmul.f32 %v644, %v185
    %v791 = vmul.f32 %v648, %v186
    %v792 = vmul.f32 %v652, %v187
    %v793 = vmul.f32 %v656, %v188
    %v794 = vmul.f32 %v660, %v189
    %v795 = vmul.f32 %v664, %v190
    %v796 = vmul.f32 %v668, %v191
    %v861 = vcombine.low %v733, %v734
    %v862 = vcombine.high %v733, %v734
    %v863 = vcombine.low %v735, %v736
    %v864 = vcombine.high %v735, %v736
    %v865 = vcombine.low %v737, %v738
    %v866 = vcombine.high %v737, %v738
    %v867 = vcombine.low %v739, %v740
    %v868 = vcombine.high %v739, %v740
    %v870 = vunpack.c.l.s4 1966171168
    %v871 = vunpack.c.0.s8 %v870
    %v872 = vlaneseq
    %v873 = vshrl.u32 %v872, 7
    %v874 = vsub.s32 %v871, %v873
    %v875 = vrot.slane %v861, %v874
    %v877 = vunpack.c.l.s4 1966171168
    %v878 = vunpack.c.0.s8 %v877
    %v879 = vlaneseq
    %v880 = vshrl.u32 %v879, 7
    %v881 = vsub.s32 %v878, %v880
    %v882 = vrot.slane %v862, %v881
    %v884 = vunpack.c.l.s4 1966171168
    %v885 = vunpack.c.0.s8 %v884
    %v886 = vlaneseq
    %v887 = vshrl.u32 %v886, 7
    %v888 = vsub.s32 %v885, %v887
    %v889 = vrot.slane %v863, %v888
    %v891 = vunpack.c.l.s4 1966171168
    %v892 = vunpack.c.0.s8 %v891
    %v893 = vlaneseq
    %v894 = vshrl.u32 %v893, 7
    %v895 = vsub.s32 %v892, %v894
    %v896 = vrot.slane %v864, %v895
    %v898 = vunpack.c.l.s4 1966171168
    %v899 = vunpack.c.0.s8 %v898
    %v900 = vlaneseq
    %v901 = vshrl.u32 %v900, 7
    %v902 = vsub.s32 %v899, %v901
    %v903 = vrot.slane %v865, %v902
    %v905 = vunpack.c.l.s4 1966171168
    %v906 = vunpack.c.0.s8 %v905
    %v907 = vlaneseq
    %v908 = vshrl.u32 %v907, 7
    %v909 = vsub.s32 %v906, %v908
    %v910 = vrot.slane %v866, %v909
    %v912 = vunpack.c.l.s4 1966171168
    %v913 = vunpack.c.0.s8 %v912
    %v914 = vlaneseq
    %v915 = vshrl.u32 %v914, 7
    %v916 = vsub.s32 %v913, %v915
    %v917 = vrot.slane %v867, %v916
    %v919 = vunpack.c.l.s4 1966171168
    %v920 = vunpack.c.0.s8 %v919
    %v921 = vlaneseq
    %v922 = vshrl.u32 %v921, 7
    %v923 = vsub.s32 %v920, %v922
    %v924 = vrot.slane %v868, %v923
    %v925 = vcombine.low %v875, %v889
    %v926 = vcombine.high %v875, %v889
    %v927 = vcombine.low %v882, %v896
    %v928 = vcombine.high %v882, %v896
    %v929 = vcombine.low %v903, %v917
    %v930 = vcombine.high %v903, %v917
    %v931 = vcombine.low %v910, %v924
    %v932 = vcombine.high %v910, %v924
    %v934 = vunpack.c.l.s4 1966171168
    %v935 = vunpack.c.0.s8 %v934
    %v936 = vlaneseq
    %v937 = vshrl.u32 %v936, 7
    %v938 = vsub.s32 %v935, %v937
    %v939 = vrot.slane %v925, %v938
    %v941 = vunpack.c.l.s4 1966171168
    %v942 = vunpack.c.0.s8 %v941
    %v943 = vlaneseq
    %v944 = vshrl.u32 %v943, 7
    %v945 = vsub.s32 %v942, %v944
    %v946 = vrot.slane %v927, %v945
    %v948 = vunpack.c.l.s4 1966171168
    %v949 = vunpack.c.0.s8 %v948
    %v950 = vlaneseq
    %v951 = vshrl.u32 %v950, 7
    %v952 = vsub.s32 %v949, %v951
    %v953 = vrot.slane %v926, %v952
    %v955 = vunpack.c.l.s4 1966171168
    %v956 = vunpack.c.0.s8 %v955
    %v957 = vlaneseq
    %v958 = vshrl.u32 %v957, 7
    %v959 = vsub.s32 %v956, %v958
    %v960 = vrot.slane %v928, %v959
    %v962 = vunpack.c.l.s4 1966171168
    %v963 = vunpack.c.0.s8 %v962
    %v964 = vlaneseq
    %v965 = vshrl.u32 %v964, 7
    %v966 = vsub.s32 %v963, %v965
    %v967 = vrot.slane %v929, %v966
    %v969 = vunpack.c.l.s4 1966171168
    %v970 = vunpack.c.0.s8 %v969
    %v971 = vlaneseq
    %v972 = vshrl.u32 %v971, 7
    %v973 = vsub.s32 %v970, %v972
    %v974 = vrot.slane %v931, %v973
    %v976 = vunpack.c.l.s4 1966171168
    %v977 = vunpack.c.0.s8 %v976
    %v978 = vlaneseq
    %v979 = vshrl.u32 %v978, 7
    %v980 = vsub.s32 %v977, %v979
    %v981 = vrot.slane %v930, %v980
    %v983 = vunpack.c.l.s4 1966171168
    %v984 = vunpack.c.0.s8 %v983
    %v985 = vlaneseq
    %v986 = vshrl.u32 %v985, 7
    %v987 = vsub.s32 %v984, %v986
    %v988 = vrot.slane %v932, %v987
    %v989 = vcombine.low %v939, %v967
    %v990 = vcombine.high %v939, %v967
    %v991 = vcombine.low %v946, %v974
    %v992 = vcombine.high %v946, %v974
    %v993 = vcombine.low %v953, %v981
    %v994 = vcombine.high %v953, %v981
    %v995 = vcombine.low %v960, %v988
    %v996 = vcombine.high %v960, %v988
    %v997 = vcombine.low %v741, %v742
    %v998 = vcombine.high %v741, %v742
    %v999 = vcombine.low %v743, %v744
    %v1000 = vcombine.high %v743, %v744
    %v1001 = vcombine.low %v745, %v746
    %v1002 = vcombine.high %v745, %v746
    %v1003 = vcombine.low %v747, %v748
    %v1004 = vcombine.high %v747, %v748
    %v1006 = vunpack.c.l.s4 1966171168
    %v1007 = vunpack.c.0.s8 %v1006
    %v1008 = vlaneseq
    %v1009 = vshrl.u32 %v1008, 7
    %v1010 = vsub.s32 %v1007, %v1009
    %v1011 = vrot.slane %v997, %v1010
    %v1013 = vunpack.c.l.s4 1966171168
    %v1014 = vunpack.c.0.s8 %v1013
    %v1015 = vlaneseq
    %v1016 = vshrl.u32 %v1015, 7
    %v1017 = vsub.s32 %v1014, %v1016
    %v1018 = vrot.slane %v998, %v1017
    %v1020 = vunpack.c.l.s4 1966171168
    %v1021 = vunpack.c.0.s8 %v1020
    %v1022 = vlaneseq
    %v1023 = vshrl.u32 %v1022, 7
    %v1024 = vsub.s32 %v1021, %v1023
    %v1025 = vrot.slane %v999, %v1024
    %v1027 = vunpack.c.l.s4 1966171168
    %v1028 = vunpack.c.0.s8 %v1027
    %v1029 = vlaneseq
    %v1030 = vshrl.u32 %v1029, 7
    %v1031 = vsub.s32 %v1028, %v1030
    %v1032 = vrot.slane %v1000, %v1031
    %v1034 = vunpack.c.l.s4 1966171168
    %v1035 = vunpack.c.0.s8 %v1034
    %v1036 = vlaneseq
    %v1037 = vshrl.u32 %v1036, 7
    %v1038 = vsub.s32 %v1035, %v1037
    %v1039 = vrot.slane %v1001, %v1038
    %v1041 = vunpack.c.l.s4 1966171168
    %v1042 = vunpack.c.0.s8 %v1041
    %v1043 = vlaneseq
    %v1044 = vshrl.u32 %v1043, 7
    %v1045 = vsub.s32 %v1042, %v1044
    %v1046 = vrot.slane %v1002, %v1045
    %v1048 = vunpack.c.l.s4 1966171168
    %v1049 = vunpack.c.0.s8 %v1048
    %v1050 = vlaneseq
    %v1051 = vshrl.u32 %v1050, 7
    %v1052 = vsub.s32 %v1049, %v1051
    %v1053 = vrot.slane %v1003, %v1052
    %v1055 = vunpack.c.l.s4 1966171168
    %v1056 = vunpack.c.0.s8 %v1055
    %v1057 = vlaneseq
    %v1058 = vshrl.u32 %v1057, 7
    %v1059 = vsub.s32 %v1056, %v1058
    %v1060 = vrot.slane %v1004, %v1059
    %v1061 = vcombine.low %v1011, %v1025
    %v1062 = vcombine.high %v1011, %v1025
    %v1063 = vcombine.low %v1018, %v1032
    %v1064 = vcombine.high %v1018, %v1032
    %v1065 = vcombine.low %v1039, %v1053
    %v1066 = vcombine.high %v1039, %v1053
    %v1067 = vcombine.low %v1046, %v1060
    %v1068 = vcombine.high %v1046, %v1060
    %v1070 = vunpack.c.l.s4 1966171168
    %v1071 = vunpack.c.0.s8 %v1070
    %v1072 = vlaneseq
    %v1073 = vshrl.u32 %v1072, 7
    %v1074 = vsub.s32 %v1071, %v1073
    %v1075 = vrot.slane %v1061, %v1074
    %v1077 = vunpack.c.l.s4 1966171168
    %v1078 = vunpack.c.0.s8 %v1077
    %v1079 = vlaneseq
    %v1080 = vshrl.u32 %v1079, 7
    %v1081 = vsub.s32 %v1078, %v1080
    %v1082 = vrot.slane %v1063, %v1081
    %v1084 = vunpack.c.l.s4 1966171168
    %v1085 = vunpack.c.0.s8 %v1084
    %v1086 = vlaneseq
    %v1087 = vshrl.u32 %v1086, 7
    %v1088 = vsub.s32 %v1085, %v1087
    %v1089 = vrot.slane %v1062, %v1088
    %v1091 = vunpack.c.l.s4 1966171168
    %v1092 = vunpack.c.0.s8 %v1091
    %v1093 = vlaneseq
    %v1094 = vshrl.u32 %v1093, 7
    %v1095 = vsub.s32 %v1092, %v1094
    %v1096 = vrot.slane %v1064, %v1095
    %v1098 = vunpack.c.l.s4 1966171168
    %v1099 = vunpack.c.0.s8 %v1098
    %v1100 = vlaneseq
    %v1101 = vshrl.u32 %v1100, 7
    %v1102 = vsub.s32 %v1099, %v1101
    %v1103 = vrot.slane %v1065, %v1102
    %v1105 = vunpack.c.l.s4 1966171168
    %v1106 = vunpack.c.0.s8 %v1105
    %v1107 = vlaneseq
    %v1108 = vshrl.u32 %v1107, 7
    %v1109 = vsub.s32 %v1106, %v1108
    %v1110 = vrot.slane %v1067, %v1109
    %v1112 = vunpack.c.l.s4 1966171168
    %v1113 = vunpack.c.0.s8 %v1112
    %v1114 = vlaneseq
    %v1115 = vshrl.u32 %v1114, 7
    %v1116 = vsub.s32 %v1113, %v1115
    %v1117 = vrot.slane %v1066, %v1116
    %v1119 = vunpack.c.l.s4 1966171168
    %v1120 = vunpack.c.0.s8 %v1119
    %v1121 = vlaneseq
    %v1122 = vshrl.u32 %v1121, 7
    %v1123 = vsub.s32 %v1120, %v1122
    %v1124 = vrot.slane %v1068, %v1123
    %v1125 = vcombine.low %v1075, %v1103
    %v1126 = vcombine.high %v1075, %v1103
    %v1127 = vcombine.low %v1082, %v1110
    %v1128 = vcombine.high %v1082, %v1110
    %v1129 = vcombine.low %v1089, %v1117
    %v1130 = vcombine.high %v1089, %v1117
    %v1131 = vcombine.low %v1096, %v1124
    %v1132 = vcombine.high %v1096, %v1124
    %v1133 = vcombine.low %v749, %v750
    %v1134 = vcombine.high %v749, %v750
    %v1135 = vcombine.low %v751, %v752
    %v1136 = vcombine.high %v751, %v752
    %v1137 = vcombine.low %v753, %v754
    %v1138 = vcombine.high %v753, %v754
    %v1139 = vcombine.low %v755, %v756
    %v1140 = vcombine.high %v755, %v756
    %v1142 = vunpack.c.l.s4 1966171168
    %v1143 = vunpack.c.0.s8 %v1142
    %v1144 = vlaneseq
    %v1145 = vshrl.u32 %v1144, 7
    %v1146 = vsub.s32 %v1143, %v1145
    %v1147 = vrot.slane %v1133, %v1146
    %v1149 = vunpack.c.l.s4 1966171168
    %v1150 = vunpack.c.0.s8 %v1149
    %v1151 = vlaneseq
    %v1152 = vshrl.u32 %v1151, 7
    %v1153 = vsub.s32 %v1150, %v1152
    %v1154 = vrot.slane %v1134, %v1153
    %v1156 = vunpack.c.l.s4 1966171168
    %v1157 = vunpack.c.0.s8 %v1156
    %v1158 = vlaneseq
    %v1159 = vshrl.u32 %v1158, 7
    %v1160 = vsub.s32 %v1157, %v1159
    %v1161 = vrot.slane %v1135, %v1160
    %v1163 = vunpack.c.l.s4 1966171168
    %v1164 = vunpack.c.0.s8 %v1163
    %v1165 = vlaneseq
    %v1166 = vshrl.u32 %v1165, 7
    %v1167 = vsub.s32 %v1164, %v1166
    %v1168 = vrot.slane %v1136, %v1167
    %v1170 = vunpack.c.l.s4 1966171168
    %v1171 = vunpack.c.0.s8 %v1170
    %v1172 = vlaneseq
    %v1173 = vshrl.u32 %v1172, 7
    %v1174 = vsub.s32 %v1171, %v1173
    %v1175 = vrot.slane %v1137, %v1174
    %v1177 = vunpack.c.l.s4 1966171168
    %v1178 = vunpack.c.0.s8 %v1177
    %v1179 = vlaneseq
    %v1180 = vshrl.u32 %v1179, 7
    %v1181 = vsub.s32 %v1178, %v1180
    %v1182 = vrot.slane %v1138, %v1181
    %v1184 = vunpack.c.l.s4 1966171168
    %v1185 = vunpack.c.0.s8 %v1184
    %v1186 = vlaneseq
    %v1187 = vshrl.u32 %v1186, 7
    %v1188 = vsub.s32 %v1185, %v1187
    %v1189 = vrot.slane %v1139, %v1188
    %v1191 = vunpack.c.l.s4 1966171168
    %v1192 = vunpack.c.0.s8 %v1191
    %v1193 = vlaneseq
    %v1194 = vshrl.u32 %v1193, 7
    %v1195 = vsub.s32 %v1192, %v1194
    %v1196 = vrot.slane %v1140, %v1195
    %v1197 = vcombine.low %v1147, %v1161
    %v1198 = vcombine.high %v1147, %v1161
    %v1199 = vcombine.low %v1154, %v1168
    %v1200 = vcombine.high %v1154, %v1168
    %v1201 = vcombine.low %v1175, %v1189
    %v1202 = vcombine.high %v1175, %v1189
    %v1203 = vcombine.low %v1182, %v1196
    %v1204 = vcombine.high %v1182, %v1196
    %v1206 = vunpack.c.l.s4 1966171168
    %v1207 = vunpack.c.0.s8 %v1206
    %v1208 = vlaneseq
    %v1209 = vshrl.u32 %v1208, 7
    %v1210 = vsub.s32 %v1207, %v1209
    %v1211 = vrot.slane %v1197, %v1210
    %v1213 = vunpack.c.l.s4 1966171168
    %v1214 = vunpack.c.0.s8 %v1213
    %v1215 = vlaneseq
    %v1216 = vshrl.u32 %v1215, 7
    %v1217 = vsub.s32 %v1214, %v1216
    %v1218 = vrot.slane %v1199, %v1217
    %v1220 = vunpack.c.l.s4 1966171168
    %v1221 = vunpack.c.0.s8 %v1220
    %v1222 = vlaneseq
    %v1223 = vshrl.u32 %v1222, 7
    %v1224 = vsub.s32 %v1221, %v1223
    %v1225 = vrot.slane %v1198, %v1224
    %v1227 = vunpack.c.l.s4 1966171168
    %v1228 = vunpack.c.0.s8 %v1227
    %v1229 = vlaneseq
    %v1230 = vshrl.u32 %v1229, 7
    %v1231 = vsub.s32 %v1228, %v1230
    %v1232 = vrot.slane %v1200, %v1231
    %v1234 = vunpack.c.l.s4 1966171168
    %v1235 = vunpack.c.0.s8 %v1234
    %v1236 = vlaneseq
    %v1237 = vshrl.u32 %v1236, 7
    %v1238 = vsub.s32 %v1235, %v1237
    %v1239 = vrot.slane %v1201, %v1238
    %v1241 = vunpack.c.l.s4 1966171168
    %v1242 = vunpack.c.0.s8 %v1241
    %v1243 = vlaneseq
    %v1244 = vshrl.u32 %v1243, 7
    %v1245 = vsub.s32 %v1242, %v1244
    %v1246 = vrot.slane %v1203, %v1245
    %v1248 = vunpack.c.l.s4 1966171168
    %v1249 = vunpack.c.0.s8 %v1248
    %v1250 = vlaneseq
    %v1251 = vshrl.u32 %v1250, 7
    %v1252 = vsub.s32 %v1249, %v1251
    %v1253 = vrot.slane %v1202, %v1252
    %v1255 = vunpack.c.l.s4 1966171168
    %v1256 = vunpack.c.0.s8 %v1255
    %v1257 = vlaneseq
    %v1258 = vshrl.u32 %v1257, 7
    %v1259 = vsub.s32 %v1256, %v1258
    %v1260 = vrot.slane %v1204, %v1259
    %v1261 = vcombine.low %v1211, %v1239
    %v1262 = vcombine.high %v1211, %v1239
    %v1263 = vcombine.low %v1218, %v1246
    %v1264 = vcombine.high %v1218, %v1246
    %v1265 = vcombine.low %v1225, %v1253
    %v1266 = vcombine.high %v1225, %v1253
    %v1267 = vcombine.low %v1232, %v1260
    %v1268 = vcombine.high %v1232, %v1260
    %v1269 = vcombine.low %v757, %v758
    %v1270 = vcombine.high %v757, %v758
    %v1271 = vcombine.low %v759, %v760
    %v1272 = vcombine.high %v759, %v760
    %v1273 = vcombine.low %v761, %v762
    %v1274 = vcombine.high %v761, %v762
    %v1275 = vcombine.low %v763, %v764
    %v1276 = vcombine.high %v763, %v764
    %v1278 = vunpack.c.l.s4 1966171168
    %v1279 = vunpack.c.0.s8 %v1278
    %v1280 = vlaneseq
    %v1281 = vshrl.u32 %v1280, 7
    %v1282 = vsub.s32 %v1279, %v1281
    %v1283 = vrot.slane %v1269, %v1282
    %v1285 = vunpack.c.l.s4 1966171168
    %v1286 = vunpack.c.0.s8 %v1285
    %v1287 = vlaneseq
    %v1288 = vshrl.u32 %v1287, 7
    %v1289 = vsub.s32 %v1286, %v1288
    %v1290 = vrot.slane %v1270, %v1289
    %v1292 = vunpack.c.l.s4 1966171168
    %v1293 = vunpack.c.0.s8 %v1292
    %v1294 = vlaneseq
    %v1295 = vshrl.u32 %v1294, 7
    %v1296 = vsub.s32 %v1293, %v1295
    %v1297 = vrot.slane %v1271, %v1296
    %v1299 = vunpack.c.l.s4 1966171168
    %v1300 = vunpack.c.0.s8 %v1299
    %v1301 = vlaneseq
    %v1302 = vshrl.u32 %v1301, 7
    %v1303 = vsub.s32 %v1300, %v1302
    %v1304 = vrot.slane %v1272, %v1303
    %v1306 = vunpack.c.l.s4 1966171168
    %v1307 = vunpack.c.0.s8 %v1306
    %v1308 = vlaneseq
    %v1309 = vshrl.u32 %v1308, 7
    %v1310 = vsub.s32 %v1307, %v1309
    %v1311 = vrot.slane %v1273, %v1310
    %v1313 = vunpack.c.l.s4 1966171168
    %v1314 = vunpack.c.0.s8 %v1313
    %v1315 = vlaneseq
    %v1316 = vshrl.u32 %v1315, 7
    %v1317 = vsub.s32 %v1314, %v1316
    %v1318 = vrot.slane %v1274, %v1317
    %v1320 = vunpack.c.l.s4 1966171168
    %v1321 = vunpack.c.0.s8 %v1320
    %v1322 = vlaneseq
    %v1323 = vshrl.u32 %v1322, 7
    %v1324 = vsub.s32 %v1321, %v1323
    %v1325 = vrot.slane %v1275, %v1324
    %v1327 = vunpack.c.l.s4 1966171168
    %v1328 = vunpack.c.0.s8 %v1327
    %v1329 = vlaneseq
    %v1330 = vshrl.u32 %v1329, 7
    %v1331 = vsub.s32 %v1328, %v1330
    %v1332 = vrot.slane %v1276, %v1331
    %v1333 = vcombine.low %v1283, %v1297
    %v1334 = vcombine.high %v1283, %v1297
    %v1335 = vcombine.low %v1290, %v1304
    %v1336 = vcombine.high %v1290, %v1304
    %v1337 = vcombine.low %v1311, %v1325
    %v1338 = vcombine.high %v1311, %v1325
    %v1339 = vcombine.low %v1318, %v1332
    %v1340 = vcombine.high %v1318, %v1332
    %v1342 = vunpack.c.l.s4 1966171168
    %v1343 = vunpack.c.0.s8 %v1342
    %v1344 = vlaneseq
    %v1345 = vshrl.u32 %v1344, 7
    %v1346 = vsub.s32 %v1343, %v1345
    %v1347 = vrot.slane %v1333, %v1346
    %v1349 = vunpack.c.l.s4 1966171168
    %v1350 = vunpack.c.0.s8 %v1349
    %v1351 = vlaneseq
    %v1352 = vshrl.u32 %v1351, 7
    %v1353 = vsub.s32 %v1350, %v1352
    %v1354 = vrot.slane %v1335, %v1353
    %v1356 = vunpack.c.l.s4 1966171168
    %v1357 = vunpack.c.0.s8 %v1356
    %v1358 = vlaneseq
    %v1359 = vshrl.u32 %v1358, 7
    %v1360 = vsub.s32 %v1357, %v1359
    %v1361 = vrot.slane %v1334, %v1360
    %v1363 = vunpack.c.l.s4 1966171168
    %v1364 = vunpack.c.0.s8 %v1363
    %v1365 = vlaneseq
    %v1366 = vshrl.u32 %v1365, 7
    %v1367 = vsub.s32 %v1364, %v1366
    %v1368 = vrot.slane %v1336, %v1367
    %v1370 = vunpack.c.l.s4 1966171168
    %v1371 = vunpack.c.0.s8 %v1370
    %v1372 = vlaneseq
    %v1373 = vshrl.u32 %v1372, 7
    %v1374 = vsub.s32 %v1371, %v1373
    %v1375 = vrot.slane %v1337, %v1374
    %v1377 = vunpack.c.l.s4 1966171168
    %v1378 = vunpack.c.0.s8 %v1377
    %v1379 = vlaneseq
    %v1380 = vshrl.u32 %v1379, 7
    %v1381 = vsub.s32 %v1378, %v1380
    %v1382 = vrot.slane %v1339, %v1381
    %v1384 = vunpack.c.l.s4 1966171168
    %v1385 = vunpack.c.0.s8 %v1384
    %v1386 = vlaneseq
    %v1387 = vshrl.u32 %v1386, 7
    %v1388 = vsub.s32 %v1385, %v1387
    %v1389 = vrot.slane %v1338, %v1388
    %v1391 = vunpack.c.l.s4 1966171168
    %v1392 = vunpack.c.0.s8 %v1391
    %v1393 = vlaneseq
    %v1394 = vshrl.u32 %v1393, 7
    %v1395 = vsub.s32 %v1392, %v1394
    %v1396 = vrot.slane %v1340, %v1395
    %v1397 = vcombine.low %v1347, %v1375
    %v1398 = vcombine.high %v1347, %v1375
    %v1399 = vcombine.low %v1354, %v1382
    %v1400 = vcombine.high %v1354, %v1382
    %v1401 = vcombine.low %v1361, %v1389
    %v1402 = vcombine.high %v1361, %v1389
    %v1403 = vcombine.low %v1368, %v1396
    %v1404 = vcombine.high %v1368, %v1396
    %v1405 = vcombine.low %v765, %v766
    %v1406 = vcombine.high %v765, %v766
    %v1407 = vcombine.low %v767, %v768
    %v1408 = vcombine.high %v767, %v768
    %v1409 = vcombine.low %v769, %v770
    %v1410 = vcombine.high %v769, %v770
    %v1411 = vcombine.low %v771, %v772
    %v1412 = vcombine.high %v771, %v772
    %v1414 = vunpack.c.l.s4 1966171168
    %v1415 = vunpack.c.0.s8 %v1414
    %v1416 = vlaneseq
    %v1417 = vshrl.u32 %v1416, 7
    %v1418 = vsub.s32 %v1415, %v1417
    %v1419 = vrot.slane %v1405, %v1418
    %v1421 = vunpack.c.l.s4 1966171168
    %v1422 = vunpack.c.0.s8 %v1421
    %v1423 = vlaneseq
    %v1424 = vshrl.u32 %v1423, 7
    %v1425 = vsub.s32 %v1422, %v1424
    %v1426 = vrot.slane %v1406, %v1425
    %v1428 = vunpack.c.l.s4 1966171168
    %v1429 = vunpack.c.0.s8 %v1428
    %v1430 = vlaneseq
    %v1431 = vshrl.u32 %v1430, 7
    %v1432 = vsub.s32 %v1429, %v1431
    %v1433 = vrot.slane %v1407, %v1432
    %v1435 = vunpack.c.l.s4 1966171168
    %v1436 = vunpack.c.0.s8 %v1435
    %v1437 = vlaneseq
    %v1438 = vshrl.u32 %v1437, 7
    %v1439 = vsub.s32 %v1436, %v1438
    %v1440 = vrot.slane %v1408, %v1439
    %v1442 = vunpack.c.l.s4 1966171168
    %v1443 = vunpack.c.0.s8 %v1442
    %v1444 = vlaneseq
    %v1445 = vshrl.u32 %v1444, 7
    %v1446 = vsub.s32 %v1443, %v1445
    %v1447 = vrot.slane %v1409, %v1446
    %v1449 = vunpack.c.l.s4 1966171168
    %v1450 = vunpack.c.0.s8 %v1449
    %v1451 = vlaneseq
    %v1452 = vshrl.u32 %v1451, 7
    %v1453 = vsub.s32 %v1450, %v1452
    %v1454 = vrot.slane %v1410, %v1453
    %v1456 = vunpack.c.l.s4 1966171168
    %v1457 = vunpack.c.0.s8 %v1456
    %v1458 = vlaneseq
    %v1459 = vshrl.u32 %v1458, 7
    %v1460 = vsub.s32 %v1457, %v1459
    %v1461 = vrot.slane %v1411, %v1460
    %v1463 = vunpack.c.l.s4 1966171168
    %v1464 = vunpack.c.0.s8 %v1463
    %v1465 = vlaneseq
    %v1466 = vshrl.u32 %v1465, 7
    %v1467 = vsub.s32 %v1464, %v1466
    %v1468 = vrot.slane %v1412, %v1467
    %v1469 = vcombine.low %v1419, %v1433
    %v1470 = vcombine.high %v1419, %v1433
    %v1471 = vcombine.low %v1426, %v1440
    %v1472 = vcombine.high %v1426, %v1440
    %v1473 = vcombine.low %v1447, %v1461
    %v1474 = vcombine.high %v1447, %v1461
    %v1475 = vcombine.low %v1454, %v1468
    %v1476 = vcombine.high %v1454, %v1468
    %v1478 = vunpack.c.l.s4 1966171168
    %v1479 = vunpack.c.0.s8 %v1478
    %v1480 = vlaneseq
    %v1481 = vshrl.u32 %v1480, 7
    %v1482 = vsub.s32 %v1479, %v1481
    %v1483 = vrot.slane %v1469, %v1482
    %v1485 = vunpack.c.l.s4 1966171168
    %v1486 = vunpack.c.0.s8 %v1485
    %v1487 = vlaneseq
    %v1488 = vshrl.u32 %v1487, 7
    %v1489 = vsub.s32 %v1486, %v1488
    %v1490 = vrot.slane %v1471, %v1489
    %v1492 = vunpack.c.l.s4 1966171168
    %v1493 = vunpack.c.0.s8 %v1492
    %v1494 = vlaneseq
    %v1495 = vshrl.u32 %v1494, 7
    %v1496 = vsub.s32 %v1493, %v1495
    %v1497 = vrot.slane %v1470, %v1496
    %v1499 = vunpack.c.l.s4 1966171168
    %v1500 = vunpack.c.0.s8 %v1499
    %v1501 = vlaneseq
    %v1502 = vshrl.u32 %v1501, 7
    %v1503 = vsub.s32 %v1500, %v1502
    %v1504 = vrot.slane %v1472, %v1503
    %v1506 = vunpack.c.l.s4 1966171168
    %v1507 = vunpack.c.0.s8 %v1506
    %v1508 = vlaneseq
    %v1509 = vshrl.u32 %v1508, 7
    %v1510 = vsub.s32 %v1507, %v1509
    %v1511 = vrot.slane %v1473, %v1510
    %v1513 = vunpack.c.l.s4 1966171168
    %v1514 = vunpack.c.0.s8 %v1513
    %v1515 = vlaneseq
    %v1516 = vshrl.u32 %v1515, 7
    %v1517 = vsub.s32 %v1514, %v1516
    %v1518 = vrot.slane %v1475, %v1517
    %v1520 = vunpack.c.l.s4 1966171168
    %v1521 = vunpack.c.0.s8 %v1520
    %v1522 = vlaneseq
    %v1523 = vshrl.u32 %v1522, 7
    %v1524 = vsub.s32 %v1521, %v1523
    %v1525 = vrot.slane %v1474, %v1524
    %v1527 = vunpack.c.l.s4 1966171168
    %v1528 = vunpack.c.0.s8 %v1527
    %v1529 = vlaneseq
    %v1530 = vshrl.u32 %v1529, 7
    %v1531 = vsub.s32 %v1528, %v1530
    %v1532 = vrot.slane %v1476, %v1531
    %v1533 = vcombine.low %v1483, %v1511
    %v1534 = vcombine.high %v1483, %v1511
    %v1535 = vcombine.low %v1490, %v1518
    %v1536 = vcombine.high %v1490, %v1518
    %v1537 = vcombine.low %v1497, %v1525
    %v1538 = vcombine.high %v1497, %v1525
    %v1539 = vcombine.low %v1504, %v1532
    %v1540 = vcombine.high %v1504, %v1532
    %v1541 = vcombine.low %v773, %v774
    %v1542 = vcombine.high %v773, %v774
    %v1543 = vcombine.low %v775, %v776
    %v1544 = vcombine.high %v775, %v776
    %v1545 = vcombine.low %v777, %v778
    %v1546 = vcombine.high %v777, %v778
    %v1547 = vcombine.low %v779, %v780
    %v1548 = vcombine.high %v779, %v780
    %v1550 = vunpack.c.l.s4 1966171168
    %v1551 = vunpack.c.0.s8 %v1550
    %v1552 = vlaneseq
    %v1553 = vshrl.u32 %v1552, 7
    %v1554 = vsub.s32 %v1551, %v1553
    %v1555 = vrot.slane %v1541, %v1554
    %v1557 = vunpack.c.l.s4 1966171168
    %v1558 = vunpack.c.0.s8 %v1557
    %v1559 = vlaneseq
    %v1560 = vshrl.u32 %v1559, 7
    %v1561 = vsub.s32 %v1558, %v1560
    %v1562 = vrot.slane %v1542, %v1561
    %v1564 = vunpack.c.l.s4 1966171168
    %v1565 = vunpack.c.0.s8 %v1564
    %v1566 = vlaneseq
    %v1567 = vshrl.u32 %v1566, 7
    %v1568 = vsub.s32 %v1565, %v1567
    %v1569 = vrot.slane %v1543, %v1568
    %v1571 = vunpack.c.l.s4 1966171168
    %v1572 = vunpack.c.0.s8 %v1571
    %v1573 = vlaneseq
    %v1574 = vshrl.u32 %v1573, 7
    %v1575 = vsub.s32 %v1572, %v1574
    %v1576 = vrot.slane %v1544, %v1575
    %v1578 = vunpack.c.l.s4 1966171168
    %v1579 = vunpack.c.0.s8 %v1578
    %v1580 = vlaneseq
    %v1581 = vshrl.u32 %v1580, 7
    %v1582 = vsub.s32 %v1579, %v1581
    %v1583 = vrot.slane %v1545, %v1582
    %v1585 = vunpack.c.l.s4 1966171168
    %v1586 = vunpack.c.0.s8 %v1585
    %v1587 = vlaneseq
    %v1588 = vshrl.u32 %v1587, 7
    %v1589 = vsub.s32 %v1586, %v1588
    %v1590 = vrot.slane %v1546, %v1589
    %v1592 = vunpack.c.l.s4 1966171168
    %v1593 = vunpack.c.0.s8 %v1592
    %v1594 = vlaneseq
    %v1595 = vshrl.u32 %v1594, 7
    %v1596 = vsub.s32 %v1593, %v1595
    %v1597 = vrot.slane %v1547, %v1596
    %v1599 = vunpack.c.l.s4 1966171168
    %v1600 = vunpack.c.0.s8 %v1599
    %v1601 = vlaneseq
    %v1602 = vshrl.u32 %v1601, 7
    %v1603 = vsub.s32 %v1600, %v1602
    %v1604 = vrot.slane %v1548, %v1603
    %v1605 = vcombine.low %v1555, %v1569
    %v1606 = vcombine.high %v1555, %v1569
    %v1607 = vcombine.low %v1562, %v1576
    %v1608 = vcombine.high %v1562, %v1576
    %v1609 = vcombine.low %v1583, %v1597
    %v1610 = vcombine.high %v1583, %v1597
    %v1611 = vcombine.low %v1590, %v1604
    %v1612 = vcombine.high %v1590, %v1604
    %v1614 = vunpack.c.l.s4 1966171168
    %v1615 = vunpack.c.0.s8 %v1614
    %v1616 = vlaneseq
    %v1617 = vshrl.u32 %v1616, 7
    %v1618 = vsub.s32 %v1615, %v1617
    %v1619 = vrot.slane %v1605, %v1618
    %v1621 = vunpack.c.l.s4 1966171168
    %v1622 = vunpack.c.0.s8 %v1621
    %v1623 = vlaneseq
    %v1624 = vshrl.u32 %v1623, 7
    %v1625 = vsub.s32 %v1622, %v1624
    %v1626 = vrot.slane %v1607, %v1625
    %v1628 = vunpack.c.l.s4 1966171168
    %v1629 = vunpack.c.0.s8 %v1628
    %v1630 = vlaneseq
    %v1631 = vshrl.u32 %v1630, 7
    %v1632 = vsub.s32 %v1629, %v1631
    %v1633 = vrot.slane %v1606, %v1632
    %v1635 = vunpack.c.l.s4 1966171168
    %v1636 = vunpack.c.0.s8 %v1635
    %v1637 = vlaneseq
    %v1638 = vshrl.u32 %v1637, 7
    %v1639 = vsub.s32 %v1636, %v1638
    %v1640 = vrot.slane %v1608, %v1639
    %v1642 = vunpack.c.l.s4 1966171168
    %v1643 = vunpack.c.0.s8 %v1642
    %v1644 = vlaneseq
    %v1645 = vshrl.u32 %v1644, 7
    %v1646 = vsub.s32 %v1643, %v1645
    %v1647 = vrot.slane %v1609, %v1646
    %v1649 = vunpack.c.l.s4 1966171168
    %v1650 = vunpack.c.0.s8 %v1649
    %v1651 = vlaneseq
    %v1652 = vshrl.u32 %v1651, 7
    %v1653 = vsub.s32 %v1650, %v1652
    %v1654 = vrot.slane %v1611, %v1653
    %v1656 = vunpack.c.l.s4 1966171168
    %v1657 = vunpack.c.0.s8 %v1656
    %v1658 = vlaneseq
    %v1659 = vshrl.u32 %v1658, 7
    %v1660 = vsub.s32 %v1657, %v1659
    %v1661 = vrot.slane %v1610, %v1660
    %v1663 = vunpack.c.l.s4 1966171168
    %v1664 = vunpack.c.0.s8 %v1663
    %v1665 = vlaneseq
    %v1666 = vshrl.u32 %v1665, 7
    %v1667 = vsub.s32 %v1664, %v1666
    %v1668 = vrot.slane %v1612, %v1667
    %v1669 = vcombine.low %v1619, %v1647
    %v1670 = vcombine.high %v1619, %v1647
    %v1671 = vcombine.low %v1626, %v1654
    %v1672 = vcombine.high %v1626, %v1654
    %v1673 = vcombine.low %v1633, %v1661
    %v1674 = vcombine.high %v1633, %v1661
    %v1675 = vcombine.low %v1640, %v1668
    %v1676 = vcombine.high %v1640, %v1668
    %v1677 = vcombine.low %v781, %v782
    %v1678 = vcombine.high %v781, %v782
    %v1679 = vcombine.low %v783, %v784
    %v1680 = vcombine.high %v783, %v784
    %v1681 = vcombine.low %v785, %v786
    %v1682 = vcombine.high %v785, %v786
    %v1683 = vcombine.low %v787, %v788
    %v1684 = vcombine.high %v787, %v788
    %v1686 = vunpack.c.l.s4 1966171168
    %v1687 = vunpack.c.0.s8 %v1686
    %v1688 = vlaneseq
    %v1689 = vshrl.u32 %v1688, 7
    %v1690 = vsub.s32 %v1687, %v1689
    %v1691 = vrot.slane %v1677, %v1690
    %v1693 = vunpack.c.l.s4 1966171168
    %v1694 = vunpack.c.0.s8 %v1693
    %v1695 = vlaneseq
    %v1696 = vshrl.u32 %v1695, 7
    %v1697 = vsub.s32 %v1694, %v1696
    %v1698 = vrot.slane %v1678, %v1697
    %v1700 = vunpack.c.l.s4 1966171168
    %v1701 = vunpack.c.0.s8 %v1700
    %v1702 = vlaneseq
    %v1703 = vshrl.u32 %v1702, 7
    %v1704 = vsub.s32 %v1701, %v1703
    %v1705 = vrot.slane %v1679, %v1704
    %v1707 = vunpack.c.l.s4 1966171168
    %v1708 = vunpack.c.0.s8 %v1707
    %v1709 = vlaneseq
    %v1710 = vshrl.u32 %v1709, 7
    %v1711 = vsub.s32 %v1708, %v1710
    %v1712 = vrot.slane %v1680, %v1711
    %v1714 = vunpack.c.l.s4 1966171168
    %v1715 = vunpack.c.0.s8 %v1714
    %v1716 = vlaneseq
    %v1717 = vshrl.u32 %v1716, 7
    %v1718 = vsub.s32 %v1715, %v1717
    %v1719 = vrot.slane %v1681, %v1718
    %v1721 = vunpack.c.l.s4 1966171168
    %v1722 = vunpack.c.0.s8 %v1721
    %v1723 = vlaneseq
    %v1724 = vshrl.u32 %v1723, 7
    %v1725 = vsub.s32 %v1722, %v1724
    %v1726 = vrot.slane %v1682, %v1725
    %v1728 = vunpack.c.l.s4 1966171168
    %v1729 = vunpack.c.0.s8 %v1728
    %v1730 = vlaneseq
    %v1731 = vshrl.u32 %v1730, 7
    %v1732 = vsub.s32 %v1729, %v1731
    %v1733 = vrot.slane %v1683, %v1732
    %v1735 = vunpack.c.l.s4 1966171168
    %v1736 = vunpack.c.0.s8 %v1735
    %v1737 = vlaneseq
    %v1738 = vshrl.u32 %v1737, 7
    %v1739 = vsub.s32 %v1736, %v1738
    %v1740 = vrot.slane %v1684, %v1739
    %v1741 = vcombine.low %v1691, %v1705
    %v1742 = vcombine.high %v1691, %v1705
    %v1743 = vcombine.low %v1698, %v1712
    %v1744 = vcombine.high %v1698, %v1712
    %v1745 = vcombine.low %v1719, %v1733
    %v1746 = vcombine.high %v1719, %v1733
    %v1747 = vcombine.low %v1726, %v1740
    %v1748 = vcombine.high %v1726, %v1740
    %v1750 = vunpack.c.l.s4 1966171168
    %v1751 = vunpack.c.0.s8 %v1750
    %v1752 = vlaneseq
    %v1753 = vshrl.u32 %v1752, 7
    %v1754 = vsub.s32 %v1751, %v1753
    %v1755 = vrot.slane %v1741, %v1754
    %v1757 = vunpack.c.l.s4 1966171168
    %v1758 = vunpack.c.0.s8 %v1757
    %v1759 = vlaneseq
    %v1760 = vshrl.u32 %v1759, 7
    %v1761 = vsub.s32 %v1758, %v1760
    %v1762 = vrot.slane %v1743, %v1761
    %v1764 = vunpack.c.l.s4 1966171168
    %v1765 = vunpack.c.0.s8 %v1764
    %v1766 = vlaneseq
    %v1767 = vshrl.u32 %v1766, 7
    %v1768 = vsub.s32 %v1765, %v1767
    %v1769 = vrot.slane %v1742, %v1768
    %v1771 = vunpack.c.l.s4 1966171168
    %v1772 = vunpack.c.0.s8 %v1771
    %v1773 = vlaneseq
    %v1774 = vshrl.u32 %v1773, 7
    %v1775 = vsub.s32 %v1772, %v1774
    %v1776 = vrot.slane %v1744, %v1775
    %v1778 = vunpack.c.l.s4 1966171168
    %v1779 = vunpack.c.0.s8 %v1778
    %v1780 = vlaneseq
    %v1781 = vshrl.u32 %v1780, 7
    %v1782 = vsub.s32 %v1779, %v1781
    %v1783 = vrot.slane %v1745, %v1782
    %v1785 = vunpack.c.l.s4 1966171168
    %v1786 = vunpack.c.0.s8 %v1785
    %v1787 = vlaneseq
    %v1788 = vshrl.u32 %v1787, 7
    %v1789 = vsub.s32 %v1786, %v1788
    %v1790 = vrot.slane %v1747, %v1789
    %v1792 = vunpack.c.l.s4 1966171168
    %v1793 = vunpack.c.0.s8 %v1792
    %v1794 = vlaneseq
    %v1795 = vshrl.u32 %v1794, 7
    %v1796 = vsub.s32 %v1793, %v1795
    %v1797 = vrot.slane %v1746, %v1796
    %v1799 = vunpack.c.l.s4 1966171168
    %v1800 = vunpack.c.0.s8 %v1799
    %v1801 = vlaneseq
    %v1802 = vshrl.u32 %v1801, 7
    %v1803 = vsub.s32 %v1800, %v1802
    %v1804 = vrot.slane %v1748, %v1803
    %v1805 = vcombine.low %v1755, %v1783
    %v1806 = vcombine.high %v1755, %v1783
    %v1807 = vcombine.low %v1762, %v1790
    %v1808 = vcombine.high %v1762, %v1790
    %v1809 = vcombine.low %v1769, %v1797
    %v1810 = vcombine.high %v1769, %v1797
    %v1811 = vcombine.low %v1776, %v1804
    %v1812 = vcombine.high %v1776, %v1804
    %v1813 = vcombine.low %v789, %v790
    %v1814 = vcombine.high %v789, %v790
    %v1815 = vcombine.low %v791, %v792
    %v1816 = vcombine.high %v791, %v792
    %v1817 = vcombine.low %v793, %v794
    %v1818 = vcombine.high %v793, %v794
    %v1819 = vcombine.low %v795, %v796
    %v1820 = vcombine.high %v795, %v796
    %v1822 = vunpack.c.l.s4 1966171168
    %v1823 = vunpack.c.0.s8 %v1822
    %v1824 = vlaneseq
    %v1825 = vshrl.u32 %v1824, 7
    %v1826 = vsub.s32 %v1823, %v1825
    %v1827 = vrot.slane %v1813, %v1826
    %v1829 = vunpack.c.l.s4 1966171168
    %v1830 = vunpack.c.0.s8 %v1829
    %v1831 = vlaneseq
    %v1832 = vshrl.u32 %v1831, 7
    %v1833 = vsub.s32 %v1830, %v1832
    %v1834 = vrot.slane %v1814, %v1833
    %v1836 = vunpack.c.l.s4 1966171168
    %v1837 = vunpack.c.0.s8 %v1836
    %v1838 = vlaneseq
    %v1839 = vshrl.u32 %v1838, 7
    %v1840 = vsub.s32 %v1837, %v1839
    %v1841 = vrot.slane %v1815, %v1840
    %v1843 = vunpack.c.l.s4 1966171168
    %v1844 = vunpack.c.0.s8 %v1843
    %v1845 = vlaneseq
    %v1846 = vshrl.u32 %v1845, 7
    %v1847 = vsub.s32 %v1844, %v1846
    %v1848 = vrot.slane %v1816, %v1847
    %v1850 = vunpack.c.l.s4 1966171168
    %v1851 = vunpack.c.0.s8 %v1850
    %v1852 = vlaneseq
    %v1853 = vshrl.u32 %v1852, 7
    %v1854 = vsub.s32 %v1851, %v1853
    %v1855 = vrot.slane %v1817, %v1854
    %v1857 = vunpack.c.l.s4 1966171168
    %v1858 = vunpack.c.0.s8 %v1857
    %v1859 = vlaneseq
    %v1860 = vshrl.u32 %v1859, 7
    %v1861 = vsub.s32 %v1858, %v1860
    %v1862 = vrot.slane %v1818, %v1861
    %v1864 = vunpack.c.l.s4 1966171168
    %v1865 = vunpack.c.0.s8 %v1864
    %v1866 = vlaneseq
    %v1867 = vshrl.u32 %v1866, 7
    %v1868 = vsub.s32 %v1865, %v1867
    %v1869 = vrot.slane %v1819, %v1868
    %v1871 = vunpack.c.l.s4 1966171168
    %v1872 = vunpack.c.0.s8 %v1871
    %v1873 = vlaneseq
    %v1874 = vshrl.u32 %v1873, 7
    %v1875 = vsub.s32 %v1872, %v1874
    %v1876 = vrot.slane %v1820, %v1875
    %v1877 = vcombine.low %v1827, %v1841
    %v1878 = vcombine.high %v1827, %v1841
    %v1879 = vcombine.low %v1834, %v1848
    %v1880 = vcombine.high %v1834, %v1848
    %v1881 = vcombine.low %v1855, %v1869
    %v1882 = vcombine.high %v1855, %v1869
    %v1883 = vcombine.low %v1862, %v1876
    %v1884 = vcombine.high %v1862, %v1876
    %v1886 = vunpack.c.l.s4 1966171168
    %v1887 = vunpack.c.0.s8 %v1886
    %v1888 = vlaneseq
    %v1889 = vshrl.u32 %v1888, 7
    %v1890 = vsub.s32 %v1887, %v1889
    %v1891 = vrot.slane %v1877, %v1890
    %v1893 = vunpack.c.l.s4 1966171168
    %v1894 = vunpack.c.0.s8 %v1893
    %v1895 = vlaneseq
    %v1896 = vshrl.u32 %v1895, 7
    %v1897 = vsub.s32 %v1894, %v1896
    %v1898 = vrot.slane %v1879, %v1897
    %v1900 = vunpack.c.l.s4 1966171168
    %v1901 = vunpack.c.0.s8 %v1900
    %v1902 = vlaneseq
    %v1903 = vshrl.u32 %v1902, 7
    %v1904 = vsub.s32 %v1901, %v1903
    %v1905 = vrot.slane %v1878, %v1904
    %v1907 = vunpack.c.l.s4 1966171168
    %v1908 = vunpack.c.0.s8 %v1907
    %v1909 = vlaneseq
    %v1910 = vshrl.u32 %v1909, 7
    %v1911 = vsub.s32 %v1908, %v1910
    %v1912 = vrot.slane %v1880, %v1911
    %v1914 = vunpack.c.l.s4 1966171168
    %v1915 = vunpack.c.0.s8 %v1914
    %v1916 = vlaneseq
    %v1917 = vshrl.u32 %v1916, 7
    %v1918 = vsub.s32 %v1915, %v1917
    %v1919 = vrot.slane %v1881, %v1918
    %v1921 = vunpack.c.l.s4 1966171168
    %v1922 = vunpack.c.0.s8 %v1921
    %v1923 = vlaneseq
    %v1924 = vshrl.u32 %v1923, 7
    %v1925 = vsub.s32 %v1922, %v1924
    %v1926 = vrot.slane %v1883, %v1925
    %v1928 = vunpack.c.l.s4 1966171168
    %v1929 = vunpack.c.0.s8 %v1928
    %v1930 = vlaneseq
    %v1931 = vshrl.u32 %v1930, 7
    %v1932 = vsub.s32 %v1929, %v1931
    %v1933 = vrot.slane %v1882, %v1932
    %v1935 = vunpack.c.l.s4 1966171168
    %v1936 = vunpack.c.0.s8 %v1935
    %v1937 = vlaneseq
    %v1938 = vshrl.u32 %v1937, 7
    %v1939 = vsub.s32 %v1936, %v1938
    %v1940 = vrot.slane %v1884, %v1939
    %v1941 = vcombine.low %v1891, %v1919
    %v1942 = vcombine.high %v1891, %v1919
    %v1943 = vcombine.low %v1898, %v1926
    %v1944 = vcombine.high %v1898, %v1926
    %v1945 = vcombine.low %v1905, %v1933
    %v1946 = vcombine.high %v1905, %v1933
    %v1947 = vcombine.low %v1912, %v1940
    %v1948 = vcombine.high %v1912, %v1940
    %v1949 = vlaneseq
    %v1950 = vshrl.u32 %v1949, 7
    %v1951 = vsub.s32 0, %v1950
    %v1952 = vrot.slane %v989, %v1951
    %v1953 = vlaneseq
    %v1954 = vshrl.u32 %v1953, 7
    %v1955 = vsub.s32 1, %v1954
    %v1956 = vrot.slane %v989, %v1955
    %v1957 = vlaneseq
    %v1958 = vshrl.u32 %v1957, 7
    %v1959 = vsub.s32 2, %v1958
    %v1960 = vrot.slane %v989, %v1959
    %v1961 = vlaneseq
    %v1962 = vshrl.u32 %v1961, 7
    %v1963 = vsub.s32 3, %v1962
    %v1964 = vrot.slane %v989, %v1963
    %v1965 = vlaneseq
    %v1966 = vshrl.u32 %v1965, 7
    %v1967 = vsub.s32 4, %v1966
    %v1968 = vrot.slane %v989, %v1967
    %v1969 = vlaneseq
    %v1970 = vshrl.u32 %v1969, 7
    %v1971 = vsub.s32 5, %v1970
    %v1972 = vrot.slane %v989, %v1971
    %v1973 = vlaneseq
    %v1974 = vshrl.u32 %v1973, 7
    %v1975 = vsub.s32 6, %v1974
    %v1976 = vrot.slane %v989, %v1975
    %v1977 = vlaneseq
    %v1978 = vshrl.u32 %v1977, 7
    %v1979 = vsub.s32 7, %v1978
    %v1980 = vrot.slane %v989, %v1979
    %v1981 = vlaneseq
    %v1982 = vshrl.u32 %v1981, 7
    %v1983 = vsub.s32 0, %v1982
    %v1984 = vrot.slane %v993, %v1983
    %v1985 = vlaneseq
    %v1986 = vshrl.u32 %v1985, 7
    %v1987 = vsub.s32 1, %v1986
    %v1988 = vrot.slane %v993, %v1987
    %v1989 = vlaneseq
    %v1990 = vshrl.u32 %v1989, 7
    %v1991 = vsub.s32 2, %v1990
    %v1992 = vrot.slane %v993, %v1991
    %v1993 = vlaneseq
    %v1994 = vshrl.u32 %v1993, 7
    %v1995 = vsub.s32 3, %v1994
    %v1996 = vrot.slane %v993, %v1995
    %v1997 = vlaneseq
    %v1998 = vshrl.u32 %v1997, 7
    %v1999 = vsub.s32 4, %v1998
    %v2000 = vrot.slane %v993, %v1999
    %v2001 = vlaneseq
    %v2002 = vshrl.u32 %v2001, 7
    %v2003 = vsub.s32 5, %v2002
    %v2004 = vrot.slane %v993, %v2003
    %v2005 = vlaneseq
    %v2006 = vshrl.u32 %v2005, 7
    %v2007 = vsub.s32 6, %v2006
    %v2008 = vrot.slane %v993, %v2007
    %v2009 = vlaneseq
    %v2010 = vshrl.u32 %v2009, 7
    %v2011 = vsub.s32 7, %v2010
    %v2012 = vrot.slane %v993, %v2011
    %v2013 = vlaneseq
    %v2014 = vshrl.u32 %v2013, 7
    %v2015 = vsub.s32 0, %v2014
    %v2016 = vrot.slane %v990, %v2015
    %v2017 = vlaneseq
    %v2018 = vshrl.u32 %v2017, 7
    %v2019 = vsub.s32 1, %v2018
    %v2020 = vrot.slane %v990, %v2019
    %v2021 = vlaneseq
    %v2022 = vshrl.u32 %v2021, 7
    %v2023 = vsub.s32 2, %v2022
    %v2024 = vrot.slane %v990, %v2023
    %v2025 = vlaneseq
    %v2026 = vshrl.u32 %v2025, 7
    %v2027 = vsub.s32 3, %v2026
    %v2028 = vrot.slane %v990, %v2027
    %v2029 = vlaneseq
    %v2030 = vshrl.u32 %v2029, 7
    %v2031 = vsub.s32 4, %v2030
    %v2032 = vrot.slane %v990, %v2031
    %v2033 = vlaneseq
    %v2034 = vshrl.u32 %v2033, 7
    %v2035 = vsub.s32 5, %v2034
    %v2036 = vrot.slane %v990, %v2035
    %v2037 = vlaneseq
    %v2038 = vshrl.u32 %v2037, 7
    %v2039 = vsub.s32 6, %v2038
    %v2040 = vrot.slane %v990, %v2039
    %v2041 = vlaneseq
    %v2042 = vshrl.u32 %v2041, 7
    %v2043 = vsub.s32 7, %v2042
    %v2044 = vrot.slane %v990, %v2043
    %v2045 = vlaneseq
    %v2046 = vshrl.u32 %v2045, 7
    %v2047 = vsub.s32 0, %v2046
    %v2048 = vrot.slane %v994, %v2047
    %v2049 = vlaneseq
    %v2050 = vshrl.u32 %v2049, 7
    %v2051 = vsub.s32 1, %v2050
    %v2052 = vrot.slane %v994, %v2051
    %v2053 = vlaneseq
    %v2054 = vshrl.u32 %v2053, 7
    %v2055 = vsub.s32 2, %v2054
    %v2056 = vrot.slane %v994, %v2055
    %v2057 = vlaneseq
    %v2058 = vshrl.u32 %v2057, 7
    %v2059 = vsub.s32 3, %v2058
    %v2060 = vrot.slane %v994, %v2059
    %v2061 = vlaneseq
    %v2062 = vshrl.u32 %v2061, 7
    %v2063 = vsub.s32 4, %v2062
    %v2064 = vrot.slane %v994, %v2063
    %v2065 = vlaneseq
    %v2066 = vshrl.u32 %v2065, 7
    %v2067 = vsub.s32 5, %v2066
    %v2068 = vrot.slane %v994, %v2067
    %v2069 = vlaneseq
    %v2070 = vshrl.u32 %v2069, 7
    %v2071 = vsub.s32 6, %v2070
    %v2072 = vrot.slane %v994, %v2071
    %v2073 = vlaneseq
    %v2074 = vshrl.u32 %v2073, 7
    %v2075 = vsub.s32 7, %v2074
    %v2076 = vrot.slane %v994, %v2075
    %v2077 = vlaneseq
    %v2078 = vshrl.u32 %v2077, 7
    %v2079 = vsub.s32 0, %v2078
    %v2080 = vrot.slane %v991, %v2079
    %v2081 = vlaneseq
    %v2082 = vshrl.u32 %v2081, 7
    %v2083 = vsub.s32 1, %v2082
    %v2084 = vrot.slane %v991, %v2083
    %v2085 = vlaneseq
    %v2086 = vshrl.u32 %v2085, 7
    %v2087 = vsub.s32 2, %v2086
    %v2088 = vrot.slane %v991, %v2087
    %v2089 = vlaneseq
    %v2090 = vshrl.u32 %v2089, 7
    %v2091 = vsub.s32 3, %v2090
    %v2092 = vrot.slane %v991, %v2091
    %v2093 = vlaneseq
    %v2094 = vshrl.u32 %v2093, 7
    %v2095 = vsub.s32 4, %v2094
    %v2096 = vrot.slane %v991, %v2095
    %v2097 = vlaneseq
    %v2098 = vshrl.u32 %v2097, 7
    %v2099 = vsub.s32 5, %v2098
    %v2100 = vrot.slane %v991, %v2099
    %v2101 = vlaneseq
    %v2102 = vshrl.u32 %v2101, 7
    %v2103 = vsub.s32 6, %v2102
    %v2104 = vrot.slane %v991, %v2103
    %v2105 = vlaneseq
    %v2106 = vshrl.u32 %v2105, 7
    %v2107 = vsub.s32 7, %v2106
    %v2108 = vrot.slane %v991, %v2107
    %v2109 = vlaneseq
    %v2110 = vshrl.u32 %v2109, 7
    %v2111 = vsub.s32 0, %v2110
    %v2112 = vrot.slane %v995, %v2111
    %v2113 = vlaneseq
    %v2114 = vshrl.u32 %v2113, 7
    %v2115 = vsub.s32 1, %v2114
    %v2116 = vrot.slane %v995, %v2115
    %v2117 = vlaneseq
    %v2118 = vshrl.u32 %v2117, 7
    %v2119 = vsub.s32 2, %v2118
    %v2120 = vrot.slane %v995, %v2119
    %v2121 = vlaneseq
    %v2122 = vshrl.u32 %v2121, 7
    %v2123 = vsub.s32 3, %v2122
    %v2124 = vrot.slane %v995, %v2123
    %v2125 = vlaneseq
    %v2126 = vshrl.u32 %v2125, 7
    %v2127 = vsub.s32 4, %v2126
    %v2128 = vrot.slane %v995, %v2127
    %v2129 = vlaneseq
    %v2130 = vshrl.u32 %v2129, 7
    %v2131 = vsub.s32 5, %v2130
    %v2132 = vrot.slane %v995, %v2131
    %v2133 = vlaneseq
    %v2134 = vshrl.u32 %v2133, 7
    %v2135 = vsub.s32 6, %v2134
    %v2136 = vrot.slane %v995, %v2135
    %v2137 = vlaneseq
    %v2138 = vshrl.u32 %v2137, 7
    %v2139 = vsub.s32 7, %v2138
    %v2140 = vrot.slane %v995, %v2139
    %v2141 = vlaneseq
    %v2142 = vshrl.u32 %v2141, 7
    %v2143 = vsub.s32 0, %v2142
    %v2144 = vrot.slane %v992, %v2143
    %v2145 = vlaneseq
    %v2146 = vshrl.u32 %v2145, 7
    %v2147 = vsub.s32 1, %v2146
    %v2148 = vrot.slane %v992, %v2147
    %v2149 = vlaneseq
    %v2150 = vshrl.u32 %v2149, 7
    %v2151 = vsub.s32 2, %v2150
    %v2152 = vrot.slane %v992, %v2151
    %v2153 = vlaneseq
    %v2154 = vshrl.u32 %v2153, 7
    %v2155 = vsub.s32 3, %v2154
    %v2156 = vrot.slane %v992, %v2155
    %v2157 = vlaneseq
    %v2158 = vshrl.u32 %v2157, 7
    %v2159 = vsub.s32 4, %v2158
    %v2160 = vrot.slane %v992, %v2159
    %v2161 = vlaneseq
    %v2162 = vshrl.u32 %v2161, 7
    %v2163 = vsub.s32 5, %v2162
    %v2164 = vrot.slane %v992, %v2163
    %v2165 = vlaneseq
    %v2166 = vshrl.u32 %v2165, 7
    %v2167 = vsub.s32 6, %v2166
    %v2168 = vrot.slane %v992, %v2167
    %v2169 = vlaneseq
    %v2170 = vshrl.u32 %v2169, 7
    %v2171 = vsub.s32 7, %v2170
    %v2172 = vrot.slane %v992, %v2171
    %v2173 = vlaneseq
    %v2174 = vshrl.u32 %v2173, 7
    %v2175 = vsub.s32 0, %v2174
    %v2176 = vrot.slane %v996, %v2175
    %v2177 = vlaneseq
    %v2178 = vshrl.u32 %v2177, 7
    %v2179 = vsub.s32 1, %v2178
    %v2180 = vrot.slane %v996, %v2179
    %v2181 = vlaneseq
    %v2182 = vshrl.u32 %v2181, 7
    %v2183 = vsub.s32 2, %v2182
    %v2184 = vrot.slane %v996, %v2183
    %v2185 = vlaneseq
    %v2186 = vshrl.u32 %v2185, 7
    %v2187 = vsub.s32 3, %v2186
    %v2188 = vrot.slane %v996, %v2187
    %v2189 = vlaneseq
    %v2190 = vshrl.u32 %v2189, 7
    %v2191 = vsub.s32 4, %v2190
    %v2192 = vrot.slane %v996, %v2191
    %v2193 = vlaneseq
    %v2194 = vshrl.u32 %v2193, 7
    %v2195 = vsub.s32 5, %v2194
    %v2196 = vrot.slane %v996, %v2195
    %v2197 = vlaneseq
    %v2198 = vshrl.u32 %v2197, 7
    %v2199 = vsub.s32 6, %v2198
    %v2200 = vrot.slane %v996, %v2199
    %v2201 = vlaneseq
    %v2202 = vshrl.u32 %v2201, 7
    %v2203 = vsub.s32 7, %v2202
    %v2204 = vrot.slane %v996, %v2203
    %v2205 = vlaneseq
    %v2206 = vshrl.u32 %v2205, 7
    %v2207 = vsub.s32 0, %v2206
    %v2208 = vrot.slane %v1125, %v2207
    %v2209 = vlaneseq
    %v2210 = vshrl.u32 %v2209, 7
    %v2211 = vsub.s32 1, %v2210
    %v2212 = vrot.slane %v1125, %v2211
    %v2213 = vlaneseq
    %v2214 = vshrl.u32 %v2213, 7
    %v2215 = vsub.s32 2, %v2214
    %v2216 = vrot.slane %v1125, %v2215
    %v2217 = vlaneseq
    %v2218 = vshrl.u32 %v2217, 7
    %v2219 = vsub.s32 3, %v2218
    %v2220 = vrot.slane %v1125, %v2219
    %v2221 = vlaneseq
    %v2222 = vshrl.u32 %v2221, 7
    %v2223 = vsub.s32 4, %v2222
    %v2224 = vrot.slane %v1125, %v2223
    %v2225 = vlaneseq
    %v2226 = vshrl.u32 %v2225, 7
    %v2227 = vsub.s32 5, %v2226
    %v2228 = vrot.slane %v1125, %v2227
    %v2229 = vlaneseq
    %v2230 = vshrl.u32 %v2229, 7
    %v2231 = vsub.s32 6, %v2230
    %v2232 = vrot.slane %v1125, %v2231
    %v2233 = vlaneseq
    %v2234 = vshrl.u32 %v2233, 7
    %v2235 = vsub.s32 7, %v2234
    %v2236 = vrot.slane %v1125, %v2235
    %v2237 = vlaneseq
    %v2238 = vshrl.u32 %v2237, 7
    %v2239 = vsub.s32 0, %v2238
    %v2240 = vrot.slane %v1129, %v2239
    %v2241 = vlaneseq
    %v2242 = vshrl.u32 %v2241, 7
    %v2243 = vsub.s32 1, %v2242
    %v2244 = vrot.slane %v1129, %v2243
    %v2245 = vlaneseq
    %v2246 = vshrl.u32 %v2245, 7
    %v2247 = vsub.s32 2, %v2246
    %v2248 = vrot.slane %v1129, %v2247
    %v2249 = vlaneseq
    %v2250 = vshrl.u32 %v2249, 7
    %v2251 = vsub.s32 3, %v2250
    %v2252 = vrot.slane %v1129, %v2251
    %v2253 = vlaneseq
    %v2254 = vshrl.u32 %v2253, 7
    %v2255 = vsub.s32 4, %v2254
    %v2256 = vrot.slane %v1129, %v2255
    %v2257 = vlaneseq
    %v2258 = vshrl.u32 %v2257, 7
    %v2259 = vsub.s32 5, %v2258
    %v2260 = vrot.slane %v1129, %v2259
    %v2261 = vlaneseq
    %v2262 = vshrl.u32 %v2261, 7
    %v2263 = vsub.s32 6, %v2262
    %v2264 = vrot.slane %v1129, %v2263
    %v2265 = vlaneseq
    %v2266 = vshrl.u32 %v2265, 7
    %v2267 = vsub.s32 7, %v2266
    %v2268 = vrot.slane %v1129, %v2267
    %v2269 = vlaneseq
    %v2270 = vshrl.u32 %v2269, 7
    %v2271 = vsub.s32 0, %v2270
    %v2272 = vrot.slane %v1126, %v2271
    %v2273 = vlaneseq
    %v2274 = vshrl.u32 %v2273, 7
    %v2275 = vsub.s32 1, %v2274
    %v2276 = vrot.slane %v1126, %v2275
    %v2277 = vlaneseq
    %v2278 = vshrl.u32 %v2277, 7
    %v2279 = vsub.s32 2, %v2278
    %v2280 = vrot.slane %v1126, %v2279
    %v2281 = vlaneseq
    %v2282 = vshrl.u32 %v2281, 7
    %v2283 = vsub.s32 3, %v2282
    %v2284 = vrot.slane %v1126, %v2283
    %v2285 = vlaneseq
    %v2286 = vshrl.u32 %v2285, 7
    %v2287 = vsub.s32 4, %v2286
    %v2288 = vrot.slane %v1126, %v2287
    %v2289 = vlaneseq
    %v2290 = vshrl.u32 %v2289, 7
    %v2291 = vsub.s32 5, %v2290
    %v2292 = vrot.slane %v1126, %v2291
    %v2293 = vlaneseq
    %v2294 = vshrl.u32 %v2293, 7
    %v2295 = vsub.s32 6, %v2294
    %v2296 = vrot.slane %v1126, %v2295
    %v2297 = vlaneseq
    %v2298 = vshrl.u32 %v2297, 7
    %v2299 = vsub.s32 7, %v2298
    %v2300 = vrot.slane %v1126, %v2299
    %v2301 = vlaneseq
    %v2302 = vshrl.u32 %v2301, 7
    %v2303 = vsub.s32 0, %v2302
    %v2304 = vrot.slane %v1130, %v2303
    %v2305 = vlaneseq
    %v2306 = vshrl.u32 %v2305, 7
    %v2307 = vsub.s32 1, %v2306
    %v2308 = vrot.slane %v1130, %v2307
    %v2309 = vlaneseq
    %v2310 = vshrl.u32 %v2309, 7
    %v2311 = vsub.s32 2, %v2310
    %v2312 = vrot.slane %v1130, %v2311
    %v2313 = vlaneseq
    %v2314 = vshrl.u32 %v2313, 7
    %v2315 = vsub.s32 3, %v2314
    %v2316 = vrot.slane %v1130, %v2315
    %v2317 = vlaneseq
    %v2318 = vshrl.u32 %v2317, 7
    %v2319 = vsub.s32 4, %v2318
    %v2320 = vrot.slane %v1130, %v2319
    %v2321 = vlaneseq
    %v2322 = vshrl.u32 %v2321, 7
    %v2323 = vsub.s32 5, %v2322
    %v2324 = vrot.slane %v1130, %v2323
    %v2325 = vlaneseq
    %v2326 = vshrl.u32 %v2325, 7
    %v2327 = vsub.s32 6, %v2326
    %v2328 = vrot.slane %v1130, %v2327
    %v2329 = vlaneseq
    %v2330 = vshrl.u32 %v2329, 7
    %v2331 = vsub.s32 7, %v2330
    %v2332 = vrot.slane %v1130, %v2331
    %v2333 = vlaneseq
    %v2334 = vshrl.u32 %v2333, 7
    %v2335 = vsub.s32 0, %v2334
    %v2336 = vrot.slane %v1127, %v2335
    %v2337 = vlaneseq
    %v2338 = vshrl.u32 %v2337, 7
    %v2339 = vsub.s32 1, %v2338
    %v2340 = vrot.slane %v1127, %v2339
    %v2341 = vlaneseq
    %v2342 = vshrl.u32 %v2341, 7
    %v2343 = vsub.s32 2, %v2342
    %v2344 = vrot.slane %v1127, %v2343
    %v2345 = vlaneseq
    %v2346 = vshrl.u32 %v2345, 7
    %v2347 = vsub.s32 3, %v2346
    %v2348 = vrot.slane %v1127, %v2347
    %v2349 = vlaneseq
    %v2350 = vshrl.u32 %v2349, 7
    %v2351 = vsub.s32 4, %v2350
    %v2352 = vrot.slane %v1127, %v2351
    %v2353 = vlaneseq
    %v2354 = vshrl.u32 %v2353, 7
    %v2355 = vsub.s32 5, %v2354
    %v2356 = vrot.slane %v1127, %v2355
    %v2357 = vlaneseq
    %v2358 = vshrl.u32 %v2357, 7
    %v2359 = vsub.s32 6, %v2358
    %v2360 = vrot.slane %v1127, %v2359
    %v2361 = vlaneseq
    %v2362 = vshrl.u32 %v2361, 7
    %v2363 = vsub.s32 7, %v2362
    %v2364 = vrot.slane %v1127, %v2363
    %v2365 = vlaneseq
    %v2366 = vshrl.u32 %v2365, 7
    %v2367 = vsub.s32 0, %v2366
    %v2368 = vrot.slane %v1131, %v2367
    %v2369 = vlaneseq
    %v2370 = vshrl.u32 %v2369, 7
    %v2371 = vsub.s32 1, %v2370
    %v2372 = vrot.slane %v1131, %v2371
    %v2373 = vlaneseq
    %v2374 = vshrl.u32 %v2373, 7
    %v2375 = vsub.s32 2, %v2374
    %v2376 = vrot.slane %v1131, %v2375
    %v2377 = vlaneseq
    %v2378 = vshrl.u32 %v2377, 7
    %v2379 = vsub.s32 3, %v2378
    %v2380 = vrot.slane %v1131, %v2379
    %v2381 = vlaneseq
    %v2382 = vshrl.u32 %v2381, 7
    %v2383 = vsub.s32 4, %v2382
    %v2384 = vrot.slane %v1131, %v2383
    %v2385 = vlaneseq
    %v2386 = vshrl.u32 %v2385, 7
    %v2387 = vsub.s32 5, %v2386
    %v2388 = vrot.slane %v1131, %v2387
    %v2389 = vlaneseq
    %v2390 = vshrl.u32 %v2389, 7
    %v2391 = vsub.s32 6, %v2390
    %v2392 = vrot.slane %v1131, %v2391
    %v2393 = vlaneseq
    %v2394 = vshrl.u32 %v2393, 7
    %v2395 = vsub.s32 7, %v2394
    %v2396 = vrot.slane %v1131, %v2395
    %v2397 = vlaneseq
    %v2398 = vshrl.u32 %v2397, 7
    %v2399 = vsub.s32 0, %v2398
    %v2400 = vrot.slane %v1128, %v2399
    %v2401 = vlaneseq
    %v2402 = vshrl.u32 %v2401, 7
    %v2403 = vsub.s32 1, %v2402
    %v2404 = vrot.slane %v1128, %v2403
    %v2405 = vlaneseq
    %v2406 = vshrl.u32 %v2405, 7
    %v2407 = vsub.s32 2, %v2406
    %v2408 = vrot.slane %v1128, %v2407
    %v2409 = vlaneseq
    %v2410 = vshrl.u32 %v2409, 7
    %v2411 = vsub.s32 3, %v2410
    %v2412 = vrot.slane %v1128, %v2411
    %v2413 = vlaneseq
    %v2414 = vshrl.u32 %v2413, 7
    %v2415 = vsub.s32 4, %v2414
    %v2416 = vrot.slane %v1128, %v2415
    %v2417 = vlaneseq
    %v2418 = vshrl.u32 %v2417, 7
    %v2419 = vsub.s32 5, %v2418
    %v2420 = vrot.slane %v1128, %v2419
    %v2421 = vlaneseq
    %v2422 = vshrl.u32 %v2421, 7
    %v2423 = vsub.s32 6, %v2422
    %v2424 = vrot.slane %v1128, %v2423
    %v2425 = vlaneseq
    %v2426 = vshrl.u32 %v2425, 7
    %v2427 = vsub.s32 7, %v2426
    %v2428 = vrot.slane %v1128, %v2427
    %v2429 = vlaneseq
    %v2430 = vshrl.u32 %v2429, 7
    %v2431 = vsub.s32 0, %v2430
    %v2432 = vrot.slane %v1132, %v2431
    %v2433 = vlaneseq
    %v2434 = vshrl.u32 %v2433, 7
    %v2435 = vsub.s32 1, %v2434
    %v2436 = vrot.slane %v1132, %v2435
    %v2437 = vlaneseq
    %v2438 = vshrl.u32 %v2437, 7
    %v2439 = vsub.s32 2, %v2438
    %v2440 = vrot.slane %v1132, %v2439
    %v2441 = vlaneseq
    %v2442 = vshrl.u32 %v2441, 7
    %v2443 = vsub.s32 3, %v2442
    %v2444 = vrot.slane %v1132, %v2443
    %v2445 = vlaneseq
    %v2446 = vshrl.u32 %v2445, 7
    %v2447 = vsub.s32 4, %v2446
    %v2448 = vrot.slane %v1132, %v2447
    %v2449 = vlaneseq
    %v2450 = vshrl.u32 %v2449, 7
    %v2451 = vsub.s32 5, %v2450
    %v2452 = vrot.slane %v1132, %v2451
    %v2453 = vlaneseq
    %v2454 = vshrl.u32 %v2453, 7
    %v2455 = vsub.s32 6, %v2454
    %v2456 = vrot.slane %v1132, %v2455
    %v2457 = vlaneseq
    %v2458 = vshrl.u32 %v2457, 7
    %v2459 = vsub.s32 7, %v2458
    %v2460 = vrot.slane %v1132, %v2459
    %v2461 = vlaneseq
    %v2462 = vshrl.u32 %v2461, 7
    %v2463 = vsub.s32 0, %v2462
    %v2464 = vrot.slane %v1261, %v2463
    %v2465 = vlaneseq
    %v2466 = vshrl.u32 %v2465, 7
    %v2467 = vsub.s32 1, %v2466
    %v2468 = vrot.slane %v1261, %v2467
    %v2469 = vlaneseq
    %v2470 = vshrl.u32 %v2469, 7
    %v2471 = vsub.s32 2, %v2470
    %v2472 = vrot.slane %v1261, %v2471
    %v2473 = vlaneseq
    %v2474 = vshrl.u32 %v2473, 7
    %v2475 = vsub.s32 3, %v2474
    %v2476 = vrot.slane %v1261, %v2475
    %v2477 = vlaneseq
    %v2478 = vshrl.u32 %v2477, 7
    %v2479 = vsub.s32 4, %v2478
    %v2480 = vrot.slane %v1261, %v2479
    %v2481 = vlaneseq
    %v2482 = vshrl.u32 %v2481, 7
    %v2483 = vsub.s32 5, %v2482
    %v2484 = vrot.slane %v1261, %v2483
    %v2485 = vlaneseq
    %v2486 = vshrl.u32 %v2485, 7
    %v2487 = vsub.s32 6, %v2486
    %v2488 = vrot.slane %v1261, %v2487
    %v2489 = vlaneseq
    %v2490 = vshrl.u32 %v2489, 7
    %v2491 = vsub.s32 7, %v2490
    %v2492 = vrot.slane %v1261, %v2491
    %v2493 = vlaneseq
    %v2494 = vshrl.u32 %v2493, 7
    %v2495 = vsub.s32 0, %v2494
    %v2496 = vrot.slane %v1265, %v2495
    %v2497 = vlaneseq
    %v2498 = vshrl.u32 %v2497, 7
    %v2499 = vsub.s32 1, %v2498
    %v2500 = vrot.slane %v1265, %v2499
    %v2501 = vlaneseq
    %v2502 = vshrl.u32 %v2501, 7
    %v2503 = vsub.s32 2, %v2502
    %v2504 = vrot.slane %v1265, %v2503
    %v2505 = vlaneseq
    %v2506 = vshrl.u32 %v2505, 7
    %v2507 = vsub.s32 3, %v2506
    %v2508 = vrot.slane %v1265, %v2507
    %v2509 = vlaneseq
    %v2510 = vshrl.u32 %v2509, 7
    %v2511 = vsub.s32 4, %v2510
    %v2512 = vrot.slane %v1265, %v2511
    %v2513 = vlaneseq
    %v2514 = vshrl.u32 %v2513, 7
    %v2515 = vsub.s32 5, %v2514
    %v2516 = vrot.slane %v1265, %v2515
    %v2517 = vlaneseq
    %v2518 = vshrl.u32 %v2517, 7
    %v2519 = vsub.s32 6, %v2518
    %v2520 = vrot.slane %v1265, %v2519
    %v2521 = vlaneseq
    %v2522 = vshrl.u32 %v2521, 7
    %v2523 = vsub.s32 7, %v2522
    %v2524 = vrot.slane %v1265, %v2523
    %v2525 = vlaneseq
    %v2526 = vshrl.u32 %v2525, 7
    %v2527 = vsub.s32 0, %v2526
    %v2528 = vrot.slane %v1262, %v2527
    %v2529 = vlaneseq
    %v2530 = vshrl.u32 %v2529, 7
    %v2531 = vsub.s32 1, %v2530
    %v2532 = vrot.slane %v1262, %v2531
    %v2533 = vlaneseq
    %v2534 = vshrl.u32 %v2533, 7
    %v2535 = vsub.s32 2, %v2534
    %v2536 = vrot.slane %v1262, %v2535
    %v2537 = vlaneseq
    %v2538 = vshrl.u32 %v2537, 7
    %v2539 = vsub.s32 3, %v2538
    %v2540 = vrot.slane %v1262, %v2539
    %v2541 = vlaneseq
    %v2542 = vshrl.u32 %v2541, 7
    %v2543 = vsub.s32 4, %v2542
    %v2544 = vrot.slane %v1262, %v2543
    %v2545 = vlaneseq
    %v2546 = vshrl.u32 %v2545, 7
    %v2547 = vsub.s32 5, %v2546
    %v2548 = vrot.slane %v1262, %v2547
    %v2549 = vlaneseq
    %v2550 = vshrl.u32 %v2549, 7
    %v2551 = vsub.s32 6, %v2550
    %v2552 = vrot.slane %v1262, %v2551
    %v2553 = vlaneseq
    %v2554 = vshrl.u32 %v2553, 7
    %v2555 = vsub.s32 7, %v2554
    %v2556 = vrot.slane %v1262, %v2555
    %v2557 = vlaneseq
    %v2558 = vshrl.u32 %v2557, 7
    %v2559 = vsub.s32 0, %v2558
    %v2560 = vrot.slane %v1266, %v2559
    %v2561 = vlaneseq
    %v2562 = vshrl.u32 %v2561, 7
    %v2563 = vsub.s32 1, %v2562
    %v2564 = vrot.slane %v1266, %v2563
    %v2565 = vlaneseq
    %v2566 = vshrl.u32 %v2565, 7
    %v2567 = vsub.s32 2, %v2566
    %v2568 = vrot.slane %v1266, %v2567
    %v2569 = vlaneseq
    %v2570 = vshrl.u32 %v2569, 7
    %v2571 = vsub.s32 3, %v2570
    %v2572 = vrot.slane %v1266, %v2571
    %v2573 = vlaneseq
    %v2574 = vshrl.u32 %v2573, 7
    %v2575 = vsub.s32 4, %v2574
    %v2576 = vrot.slane %v1266, %v2575
    %v2577 = vlaneseq
    %v2578 = vshrl.u32 %v2577, 7
    %v2579 = vsub.s32 5, %v2578
    %v2580 = vrot.slane %v1266, %v2579
    %v2581 = vlaneseq
    %v2582 = vshrl.u32 %v2581, 7
    %v2583 = vsub.s32 6, %v2582
    %v2584 = vrot.slane %v1266, %v2583
    %v2585 = vlaneseq
    %v2586 = vshrl.u32 %v2585, 7
    %v2587 = vsub.s32 7, %v2586
    %v2588 = vrot.slane %v1266, %v2587
    %v2589 = vlaneseq
    %v2590 = vshrl.u32 %v2589, 7
    %v2591 = vsub.s32 0, %v2590
    %v2592 = vrot.slane %v1263, %v2591
    %v2593 = vlaneseq
    %v2594 = vshrl.u32 %v2593, 7
    %v2595 = vsub.s32 1, %v2594
    %v2596 = vrot.slane %v1263, %v2595
    %v2597 = vlaneseq
    %v2598 = vshrl.u32 %v2597, 7
    %v2599 = vsub.s32 2, %v2598
    %v2600 = vrot.slane %v1263, %v2599
    %v2601 = vlaneseq
    %v2602 = vshrl.u32 %v2601, 7
    %v2603 = vsub.s32 3, %v2602
    %v2604 = vrot.slane %v1263, %v2603
    %v2605 = vlaneseq
    %v2606 = vshrl.u32 %v2605, 7
    %v2607 = vsub.s32 4, %v2606
    %v2608 = vrot.slane %v1263, %v2607
    %v2609 = vlaneseq
    %v2610 = vshrl.u32 %v2609, 7
    %v2611 = vsub.s32 5, %v2610
    %v2612 = vrot.slane %v1263, %v2611
    %v2613 = vlaneseq
    %v2614 = vshrl.u32 %v2613, 7
    %v2615 = vsub.s32 6, %v2614
    %v2616 = vrot.slane %v1263, %v2615
    %v2617 = vlaneseq
    %v2618 = vshrl.u32 %v2617, 7
    %v2619 = vsub.s32 7, %v2618
    %v2620 = vrot.slane %v1263, %v2619
    %v2621 = vlaneseq
    %v2622 = vshrl.u32 %v2621, 7
    %v2623 = vsub.s32 0, %v2622
    %v2624 = vrot.slane %v1267, %v2623
    %v2625 = vlaneseq
    %v2626 = vshrl.u32 %v2625, 7
    %v2627 = vsub.s32 1, %v2626
    %v2628 = vrot.slane %v1267, %v2627
    %v2629 = vlaneseq
    %v2630 = vshrl.u32 %v2629, 7
    %v2631 = vsub.s32 2, %v2630
    %v2632 = vrot.slane %v1267, %v2631
    %v2633 = vlaneseq
    %v2634 = vshrl.u32 %v2633, 7
    %v2635 = vsub.s32 3, %v2634
    %v2636 = vrot.slane %v1267, %v2635
    %v2637 = vlaneseq
    %v2638 = vshrl.u32 %v2637, 7
    %v2639 = vsub.s32 4, %v2638
    %v2640 = vrot.slane %v1267, %v2639
    %v2641 = vlaneseq
    %v2642 = vshrl.u32 %v2641, 7
    %v2643 = vsub.s32 5, %v2642
    %v2644 = vrot.slane %v1267, %v2643
    %v2645 = vlaneseq
    %v2646 = vshrl.u32 %v2645, 7
    %v2647 = vsub.s32 6, %v2646
    %v2648 = vrot.slane %v1267, %v2647
    %v2649 = vlaneseq
    %v2650 = vshrl.u32 %v2649, 7
    %v2651 = vsub.s32 7, %v2650
    %v2652 = vrot.slane %v1267, %v2651
    %v2653 = vlaneseq
    %v2654 = vshrl.u32 %v2653, 7
    %v2655 = vsub.s32 0, %v2654
    %v2656 = vrot.slane %v1264, %v2655
    %v2657 = vlaneseq
    %v2658 = vshrl.u32 %v2657, 7
    %v2659 = vsub.s32 1, %v2658
    %v2660 = vrot.slane %v1264, %v2659
    %v2661 = vlaneseq
    %v2662 = vshrl.u32 %v2661, 7
    %v2663 = vsub.s32 2, %v2662
    %v2664 = vrot.slane %v1264, %v2663
    %v2665 = vlaneseq
    %v2666 = vshrl.u32 %v2665, 7
    %v2667 = vsub.s32 3, %v2666
    %v2668 = vrot.slane %v1264, %v2667
    %v2669 = vlaneseq
    %v2670 = vshrl.u32 %v2669, 7
    %v2671 = vsub.s32 4, %v2670
    %v2672 = vrot.slane %v1264, %v2671
    %v2673 = vlaneseq
    %v2674 = vshrl.u32 %v2673, 7
    %v2675 = vsub.s32 5, %v2674
    %v2676 = vrot.slane %v1264, %v2675
    %v2677 = vlaneseq
    %v2678 = vshrl.u32 %v2677, 7
    %v2679 = vsub.s32 6, %v2678
    %v2680 = vrot.slane %v1264, %v2679
    %v2681 = vlaneseq
    %v2682 = vshrl.u32 %v2681, 7
    %v2683 = vsub.s32 7, %v2682
    %v2684 = vrot.slane %v1264, %v2683
    %v2685 = vlaneseq
    %v2686 = vshrl.u32 %v2685, 7
    %v2687 = vsub.s32 0, %v2686
    %v2688 = vrot.slane %v1268, %v2687
    %v2689 = vlaneseq
    %v2690 = vshrl.u32 %v2689, 7
    %v2691 = vsub.s32 1, %v2690
    %v2692 = vrot.slane %v1268, %v2691
    %v2693 = vlaneseq
    %v2694 = vshrl.u32 %v2693, 7
    %v2695 = vsub.s32 2, %v2694
    %v2696 = vrot.slane %v1268, %v2695
    %v2697 = vlaneseq
    %v2698 = vshrl.u32 %v2697, 7
    %v2699 = vsub.s32 3, %v2698
    %v2700 = vrot.slane %v1268, %v2699
    %v2701 = vlaneseq
    %v2702 = vshrl.u32 %v2701, 7
    %v2703 = vsub.s32 4, %v2702
    %v2704 = vrot.slane %v1268, %v2703
    %v2705 = vlaneseq
    %v2706 = vshrl.u32 %v2705, 7
    %v2707 = vsub.s32 5, %v2706
    %v2708 = vrot.slane %v1268, %v2707
    %v2709 = vlaneseq
    %v2710 = vshrl.u32 %v2709, 7
    %v2711 = vsub.s32 6, %v2710
    %v2712 = vrot.slane %v1268, %v2711
    %v2713 = vlaneseq
    %v2714 = vshrl.u32 %v2713, 7
    %v2715 = vsub.s32 7, %v2714
    %v2716 = vrot.slane %v1268, %v2715
    %v2717 = vlaneseq
    %v2718 = vshrl.u32 %v2717, 7
    %v2719 = vsub.s32 0, %v2718
    %v2720 = vrot.slane %v1397, %v2719
    %v2721 = vlaneseq
    %v2722 = vshrl.u32 %v2721, 7
    %v2723 = vsub.s32 1, %v2722
    %v2724 = vrot.slane %v1397, %v2723
    %v2725 = vlaneseq
    %v2726 = vshrl.u32 %v2725, 7
    %v2727 = vsub.s32 2, %v2726
    %v2728 = vrot.slane %v1397, %v2727
    %v2729 = vlaneseq
    %v2730 = vshrl.u32 %v2729, 7
    %v2731 = vsub.s32 3, %v2730
    %v2732 = vrot.slane %v1397, %v2731
    %v2733 = vlaneseq
    %v2734 = vshrl.u32 %v2733, 7
    %v2735 = vsub.s32 4, %v2734
    %v2736 = vrot.slane %v1397, %v2735
    %v2737 = vlaneseq
    %v2738 = vshrl.u32 %v2737, 7
    %v2739 = vsub.s32 5, %v2738
    %v2740 = vrot.slane %v1397, %v2739
    %v2741 = vlaneseq
    %v2742 = vshrl.u32 %v2741, 7
    %v2743 = vsub.s32 6, %v2742
    %v2744 = vrot.slane %v1397, %v2743
    %v2745 = vlaneseq
    %v2746 = vshrl.u32 %v2745, 7
    %v2747 = vsub.s32 7, %v2746
    %v2748 = vrot.slane %v1397, %v2747
    %v2749 = vlaneseq
    %v2750 = vshrl.u32 %v2749, 7
    %v2751 = vsub.s32 0, %v2750
    %v2752 = vrot.slane %v1401, %v2751
    %v2753 = vlaneseq
    %v2754 = vshrl.u32 %v2753, 7
    %v2755 = vsub.s32 1, %v2754
    %v2756 = vrot.slane %v1401, %v2755
    %v2757 = vlaneseq
    %v2758 = vshrl.u32 %v2757, 7
    %v2759 = vsub.s32 2, %v2758
    %v2760 = vrot.slane %v1401, %v2759
    %v2761 = vlaneseq
    %v2762 = vshrl.u32 %v2761, 7
    %v2763 = vsub.s32 3, %v2762
    %v2764 = vrot.slane %v1401, %v2763
    %v2765 = vlaneseq
    %v2766 = vshrl.u32 %v2765, 7
    %v2767 = vsub.s32 4, %v2766
    %v2768 = vrot.slane %v1401, %v2767
    %v2769 = vlaneseq
    %v2770 = vshrl.u32 %v2769, 7
    %v2771 = vsub.s32 5, %v2770
    %v2772 = vrot.slane %v1401, %v2771
    %v2773 = vlaneseq
    %v2774 = vshrl.u32 %v2773, 7
    %v2775 = vsub.s32 6, %v2774
    %v2776 = vrot.slane %v1401, %v2775
    %v2777 = vlaneseq
    %v2778 = vshrl.u32 %v2777, 7
    %v2779 = vsub.s32 7, %v2778
    %v2780 = vrot.slane %v1401, %v2779
    %v2781 = vlaneseq
    %v2782 = vshrl.u32 %v2781, 7
    %v2783 = vsub.s32 0, %v2782
    %v2784 = vrot.slane %v1398, %v2783
    %v2785 = vlaneseq
    %v2786 = vshrl.u32 %v2785, 7
    %v2787 = vsub.s32 1, %v2786
    %v2788 = vrot.slane %v1398, %v2787
    %v2789 = vlaneseq
    %v2790 = vshrl.u32 %v2789, 7
    %v2791 = vsub.s32 2, %v2790
    %v2792 = vrot.slane %v1398, %v2791
    %v2793 = vlaneseq
    %v2794 = vshrl.u32 %v2793, 7
    %v2795 = vsub.s32 3, %v2794
    %v2796 = vrot.slane %v1398, %v2795
    %v2797 = vlaneseq
    %v2798 = vshrl.u32 %v2797, 7
    %v2799 = vsub.s32 4, %v2798
    %v2800 = vrot.slane %v1398, %v2799
    %v2801 = vlaneseq
    %v2802 = vshrl.u32 %v2801, 7
    %v2803 = vsub.s32 5, %v2802
    %v2804 = vrot.slane %v1398, %v2803
    %v2805 = vlaneseq
    %v2806 = vshrl.u32 %v2805, 7
    %v2807 = vsub.s32 6, %v2806
    %v2808 = vrot.slane %v1398, %v2807
    %v2809 = vlaneseq
    %v2810 = vshrl.u32 %v2809, 7
    %v2811 = vsub.s32 7, %v2810
    %v2812 = vrot.slane %v1398, %v2811
    %v2813 = vlaneseq
    %v2814 = vshrl.u32 %v2813, 7
    %v2815 = vsub.s32 0, %v2814
    %v2816 = vrot.slane %v1402, %v2815
    %v2817 = vlaneseq
    %v2818 = vshrl.u32 %v2817, 7
    %v2819 = vsub.s32 1, %v2818
    %v2820 = vrot.slane %v1402, %v2819
    %v2821 = vlaneseq
    %v2822 = vshrl.u32 %v2821, 7
    %v2823 = vsub.s32 2, %v2822
    %v2824 = vrot.slane %v1402, %v2823
    %v2825 = vlaneseq
    %v2826 = vshrl.u32 %v2825, 7
    %v2827 = vsub.s32 3, %v2826
    %v2828 = vrot.slane %v1402, %v2827
    %v2829 = vlaneseq
    %v2830 = vshrl.u32 %v2829, 7
    %v2831 = vsub.s32 4, %v2830
    %v2832 = vrot.slane %v1402, %v2831
    %v2833 = vlaneseq
    %v2834 = vshrl.u32 %v2833, 7
    %v2835 = vsub.s32 5, %v2834
    %v2836 = vrot.slane %v1402, %v2835
    %v2837 = vlaneseq
    %v2838 = vshrl.u32 %v2837, 7
    %v2839 = vsub.s32 6, %v2838
    %v2840 = vrot.slane %v1402, %v2839
    %v2841 = vlaneseq
    %v2842 = vshrl.u32 %v2841, 7
    %v2843 = vsub.s32 7, %v2842
    %v2844 = vrot.slane %v1402, %v2843
    %v2845 = vlaneseq
    %v2846 = vshrl.u32 %v2845, 7
    %v2847 = vsub.s32 0, %v2846
    %v2848 = vrot.slane %v1399, %v2847
    %v2849 = vlaneseq
    %v2850 = vshrl.u32 %v2849, 7
    %v2851 = vsub.s32 1, %v2850
    %v2852 = vrot.slane %v1399, %v2851
    %v2853 = vlaneseq
    %v2854 = vshrl.u32 %v2853, 7
    %v2855 = vsub.s32 2, %v2854
    %v2856 = vrot.slane %v1399, %v2855
    %v2857 = vlaneseq
    %v2858 = vshrl.u32 %v2857, 7
    %v2859 = vsub.s32 3, %v2858
    %v2860 = vrot.slane %v1399, %v2859
    %v2861 = vlaneseq
    %v2862 = vshrl.u32 %v2861, 7
    %v2863 = vsub.s32 4, %v2862
    %v2864 = vrot.slane %v1399, %v2863
    %v2865 = vlaneseq
    %v2866 = vshrl.u32 %v2865, 7
    %v2867 = vsub.s32 5, %v2866
    %v2868 = vrot.slane %v1399, %v2867
    %v2869 = vlaneseq
    %v2870 = vshrl.u32 %v2869, 7
    %v2871 = vsub.s32 6, %v2870
    %v2872 = vrot.slane %v1399, %v2871
    %v2873 = vlaneseq
    %v2874 = vshrl.u32 %v2873, 7
    %v2875 = vsub.s32 7, %v2874
    %v2876 = vrot.slane %v1399, %v2875
    %v2877 = vlaneseq
    %v2878 = vshrl.u32 %v2877, 7
    %v2879 = vsub.s32 0, %v2878
    %v2880 = vrot.slane %v1403, %v2879
    %v2881 = vlaneseq
    %v2882 = vshrl.u32 %v2881, 7
    %v2883 = vsub.s32 1, %v2882
    %v2884 = vrot.slane %v1403, %v2883
    %v2885 = vlaneseq
    %v2886 = vshrl.u32 %v2885, 7
    %v2887 = vsub.s32 2, %v2886
    %v2888 = vrot.slane %v1403, %v2887
    %v2889 = vlaneseq
    %v2890 = vshrl.u32 %v2889, 7
    %v2891 = vsub.s32 3, %v2890
    %v2892 = vrot.slane %v1403, %v2891
    %v2893 = vlaneseq
    %v2894 = vshrl.u32 %v2893, 7
    %v2895 = vsub.s32 4, %v2894
    %v2896 = vrot.slane %v1403, %v2895
    %v2897 = vlaneseq
    %v2898 = vshrl.u32 %v2897, 7
    %v2899 = vsub.s32 5, %v2898
    %v2900 = vrot.slane %v1403, %v2899
    %v2901 = vlaneseq
    %v2902 = vshrl.u32 %v2901, 7
    %v2903 = vsub.s32 6, %v2902
    %v2904 = vrot.slane %v1403, %v2903
    %v2905 = vlaneseq
    %v2906 = vshrl.u32 %v2905, 7
    %v2907 = vsub.s32 7, %v2906
    %v2908 = vrot.slane %v1403, %v2907
    %v2909 = vlaneseq
    %v2910 = vshrl.u32 %v2909, 7
    %v2911 = vsub.s32 0, %v2910
    %v2912 = vrot.slane %v1400, %v2911
    %v2913 = vlaneseq
    %v2914 = vshrl.u32 %v2913, 7
    %v2915 = vsub.s32 1, %v2914
    %v2916 = vrot.slane %v1400, %v2915
    %v2917 = vlaneseq
    %v2918 = vshrl.u32 %v2917, 7
    %v2919 = vsub.s32 2, %v2918
    %v2920 = vrot.slane %v1400, %v2919
    %v2921 = vlaneseq
    %v2922 = vshrl.u32 %v2921, 7
    %v2923 = vsub.s32 3, %v2922
    %v2924 = vrot.slane %v1400, %v2923
    %v2925 = vlaneseq
    %v2926 = vshrl.u32 %v2925, 7
    %v2927 = vsub.s32 4, %v2926
    %v2928 = vrot.slane %v1400, %v2927
    %v2929 = vlaneseq
    %v2930 = vshrl.u32 %v2929, 7
    %v2931 = vsub.s32 5, %v2930
    %v2932 = vrot.slane %v1400, %v2931
    %v2933 = vlaneseq
    %v2934 = vshrl.u32 %v2933, 7
    %v2935 = vsub.s32 6, %v2934
    %v2936 = vrot.slane %v1400, %v2935
    %v2937 = vlaneseq
    %v2938 = vshrl.u32 %v2937, 7
    %v2939 = vsub.s32 7, %v2938
    %v2940 = vrot.slane %v1400, %v2939
    %v2941 = vlaneseq
    %v2942 = vshrl.u32 %v2941, 7
    %v2943 = vsub.s32 0, %v2942
    %v2944 = vrot.slane %v1404, %v2943
    %v2945 = vlaneseq
    %v2946 = vshrl.u32 %v2945, 7
    %v2947 = vsub.s32 1, %v2946
    %v2948 = vrot.slane %v1404, %v2947
    %v2949 = vlaneseq
    %v2950 = vshrl.u32 %v2949, 7
    %v2951 = vsub.s32 2, %v2950
    %v2952 = vrot.slane %v1404, %v2951
    %v2953 = vlaneseq
    %v2954 = vshrl.u32 %v2953, 7
    %v2955 = vsub.s32 3, %v2954
    %v2956 = vrot.slane %v1404, %v2955
    %v2957 = vlaneseq
    %v2958 = vshrl.u32 %v2957, 7
    %v2959 = vsub.s32 4, %v2958
    %v2960 = vrot.slane %v1404, %v2959
    %v2961 = vlaneseq
    %v2962 = vshrl.u32 %v2961, 7
    %v2963 = vsub.s32 5, %v2962
    %v2964 = vrot.slane %v1404, %v2963
    %v2965 = vlaneseq
    %v2966 = vshrl.u32 %v2965, 7
    %v2967 = vsub.s32 6, %v2966
    %v2968 = vrot.slane %v1404, %v2967
    %v2969 = vlaneseq
    %v2970 = vshrl.u32 %v2969, 7
    %v2971 = vsub.s32 7, %v2970
    %v2972 = vrot.slane %v1404, %v2971
    %v2973 = vlaneseq
    %v2974 = vshrl.u32 %v2973, 7
    %v2975 = vsub.s32 0, %v2974
    %v2976 = vrot.slane %v1533, %v2975
    %v2977 = vlaneseq
    %v2978 = vshrl.u32 %v2977, 7
    %v2979 = vsub.s32 1, %v2978
    %v2980 = vrot.slane %v1533, %v2979
    %v2981 = vlaneseq
    %v2982 = vshrl.u32 %v2981, 7
    %v2983 = vsub.s32 2, %v2982
    %v2984 = vrot.slane %v1533, %v2983
    %v2985 = vlaneseq
    %v2986 = vshrl.u32 %v2985, 7
    %v2987 = vsub.s32 3, %v2986
    %v2988 = vrot.slane %v1533, %v2987
    %v2989 = vlaneseq
    %v2990 = vshrl.u32 %v2989, 7
    %v2991 = vsub.s32 4, %v2990
    %v2992 = vrot.slane %v1533, %v2991
    %v2993 = vlaneseq
    %v2994 = vshrl.u32 %v2993, 7
    %v2995 = vsub.s32 5, %v2994
    %v2996 = vrot.slane %v1533, %v2995
    %v2997 = vlaneseq
    %v2998 = vshrl.u32 %v2997, 7
    %v2999 = vsub.s32 6, %v2998
    %v3000 = vrot.slane %v1533, %v2999
    %v3001 = vlaneseq
    %v3002 = vshrl.u32 %v3001, 7
    %v3003 = vsub.s32 7, %v3002
    %v3004 = vrot.slane %v1533, %v3003
    %v3005 = vlaneseq
    %v3006 = vshrl.u32 %v3005, 7
    %v3007 = vsub.s32 0, %v3006
    %v3008 = vrot.slane %v1537, %v3007
    %v3009 = vlaneseq
    %v3010 = vshrl.u32 %v3009, 7
    %v3011 = vsub.s32 1, %v3010
    %v3012 = vrot.slane %v1537, %v3011
    %v3013 = vlaneseq
    %v3014 = vshrl.u32 %v3013, 7
    %v3015 = vsub.s32 2, %v3014
    %v3016 = vrot.slane %v1537, %v3015
    %v3017 = vlaneseq
    %v3018 = vshrl.u32 %v3017, 7
    %v3019 = vsub.s32 3, %v3018
    %v3020 = vrot.slane %v1537, %v3019
    %v3021 = vlaneseq
    %v3022 = vshrl.u32 %v3021, 7
    %v3023 = vsub.s32 4, %v3022
    %v3024 = vrot.slane %v1537, %v3023
    %v3025 = vlaneseq
    %v3026 = vshrl.u32 %v3025, 7
    %v3027 = vsub.s32 5, %v3026
    %v3028 = vrot.slane %v1537, %v3027
    %v3029 = vlaneseq
    %v3030 = vshrl.u32 %v3029, 7
    %v3031 = vsub.s32 6, %v3030
    %v3032 = vrot.slane %v1537, %v3031
    %v3033 = vlaneseq
    %v3034 = vshrl.u32 %v3033, 7
    %v3035 = vsub.s32 7, %v3034
    %v3036 = vrot.slane %v1537, %v3035
    %v3037 = vlaneseq
    %v3038 = vshrl.u32 %v3037, 7
    %v3039 = vsub.s32 0, %v3038
    %v3040 = vrot.slane %v1534, %v3039
    %v3041 = vlaneseq
    %v3042 = vshrl.u32 %v3041, 7
    %v3043 = vsub.s32 1, %v3042
    %v3044 = vrot.slane %v1534, %v3043
    %v3045 = vlaneseq
    %v3046 = vshrl.u32 %v3045, 7
    %v3047 = vsub.s32 2, %v3046
    %v3048 = vrot.slane %v1534, %v3047
    %v3049 = vlaneseq
    %v3050 = vshrl.u32 %v3049, 7
    %v3051 = vsub.s32 3, %v3050
    %v3052 = vrot.slane %v1534, %v3051
    %v3053 = vlaneseq
    %v3054 = vshrl.u32 %v3053, 7
    %v3055 = vsub.s32 4, %v3054
    %v3056 = vrot.slane %v1534, %v3055
    %v3057 = vlaneseq
    %v3058 = vshrl.u32 %v3057, 7
    %v3059 = vsub.s32 5, %v3058
    %v3060 = vrot.slane %v1534, %v3059
    %v3061 = vlaneseq
    %v3062 = vshrl.u32 %v3061, 7
    %v3063 = vsub.s32 6, %v3062
    %v3064 = vrot.slane %v1534, %v3063
    %v3065 = vlaneseq
    %v3066 = vshrl.u32 %v3065, 7
    %v3067 = vsub.s32 7, %v3066
    %v3068 = vrot.slane %v1534, %v3067
    %v3069 = vlaneseq
    %v3070 = vshrl.u32 %v3069, 7
    %v3071 = vsub.s32 0, %v3070
    %v3072 = vrot.slane %v1538, %v3071
    %v3073 = vlaneseq
    %v3074 = vshrl.u32 %v3073, 7
    %v3075 = vsub.s32 1, %v3074
    %v3076 = vrot.slane %v1538, %v3075
    %v3077 = vlaneseq
    %v3078 = vshrl.u32 %v3077, 7
    %v3079 = vsub.s32 2, %v3078
    %v3080 = vrot.slane %v1538, %v3079
    %v3081 = vlaneseq
    %v3082 = vshrl.u32 %v3081, 7
    %v3083 = vsub.s32 3, %v3082
    %v3084 = vrot.slane %v1538, %v3083
    %v3085 = vlaneseq
    %v3086 = vshrl.u32 %v3085, 7
    %v3087 = vsub.s32 4, %v3086
    %v3088 = vrot.slane %v1538, %v3087
    %v3089 = vlaneseq
    %v3090 = vshrl.u32 %v3089, 7
    %v3091 = vsub.s32 5, %v3090
    %v3092 = vrot.slane %v1538, %v3091
    %v3093 = vlaneseq
    %v3094 = vshrl.u32 %v3093, 7
    %v3095 = vsub.s32 6, %v3094
    %v3096 = vrot.slane %v1538, %v3095
    %v3097 = vlaneseq
    %v3098 = vshrl.u32 %v3097, 7
    %v3099 = vsub.s32 7, %v3098
    %v3100 = vrot.slane %v1538, %v3099
    %v3101 = vlaneseq
    %v3102 = vshrl.u32 %v3101, 7
    %v3103 = vsub.s32 0, %v3102
    %v3104 = vrot.slane %v1535, %v3103
    %v3105 = vlaneseq
    %v3106 = vshrl.u32 %v3105, 7
    %v3107 = vsub.s32 1, %v3106
    %v3108 = vrot.slane %v1535, %v3107
    %v3109 = vlaneseq
    %v3110 = vshrl.u32 %v3109, 7
    %v3111 = vsub.s32 2, %v3110
    %v3112 = vrot.slane %v1535, %v3111
    %v3113 = vlaneseq
    %v3114 = vshrl.u32 %v3113, 7
    %v3115 = vsub.s32 3, %v3114
    %v3116 = vrot.slane %v1535, %v3115
    %v3117 = vlaneseq
    %v3118 = vshrl.u32 %v3117, 7
    %v3119 = vsub.s32 4, %v3118
    %v3120 = vrot.slane %v1535, %v3119
    %v3121 = vlaneseq
    %v3122 = vshrl.u32 %v3121, 7
    %v3123 = vsub.s32 5, %v3122
    %v3124 = vrot.slane %v1535, %v3123
    %v3125 = vlaneseq
    %v3126 = vshrl.u32 %v3125, 7
    %v3127 = vsub.s32 6, %v3126
    %v3128 = vrot.slane %v1535, %v3127
    %v3129 = vlaneseq
    %v3130 = vshrl.u32 %v3129, 7
    %v3131 = vsub.s32 7, %v3130
    %v3132 = vrot.slane %v1535, %v3131
    %v3133 = vlaneseq
    %v3134 = vshrl.u32 %v3133, 7
    %v3135 = vsub.s32 0, %v3134
    %v3136 = vrot.slane %v1539, %v3135
    %v3137 = vlaneseq
    %v3138 = vshrl.u32 %v3137, 7
    %v3139 = vsub.s32 1, %v3138
    %v3140 = vrot.slane %v1539, %v3139
    %v3141 = vlaneseq
    %v3142 = vshrl.u32 %v3141, 7
    %v3143 = vsub.s32 2, %v3142
    %v3144 = vrot.slane %v1539, %v3143
    %v3145 = vlaneseq
    %v3146 = vshrl.u32 %v3145, 7
    %v3147 = vsub.s32 3, %v3146
    %v3148 = vrot.slane %v1539, %v3147
    %v3149 = vlaneseq
    %v3150 = vshrl.u32 %v3149, 7
    %v3151 = vsub.s32 4, %v3150
    %v3152 = vrot.slane %v1539, %v3151
    %v3153 = vlaneseq
    %v3154 = vshrl.u32 %v3153, 7
    %v3155 = vsub.s32 5, %v3154
    %v3156 = vrot.slane %v1539, %v3155
    %v3157 = vlaneseq
    %v3158 = vshrl.u32 %v3157, 7
    %v3159 = vsub.s32 6, %v3158
    %v3160 = vrot.slane %v1539, %v3159
    %v3161 = vlaneseq
    %v3162 = vshrl.u32 %v3161, 7
    %v3163 = vsub.s32 7, %v3162
    %v3164 = vrot.slane %v1539, %v3163
    %v3165 = vlaneseq
    %v3166 = vshrl.u32 %v3165, 7
    %v3167 = vsub.s32 0, %v3166
    %v3168 = vrot.slane %v1536, %v3167
    %v3169 = vlaneseq
    %v3170 = vshrl.u32 %v3169, 7
    %v3171 = vsub.s32 1, %v3170
    %v3172 = vrot.slane %v1536, %v3171
    %v3173 = vlaneseq
    %v3174 = vshrl.u32 %v3173, 7
    %v3175 = vsub.s32 2, %v3174
    %v3176 = vrot.slane %v1536, %v3175
    %v3177 = vlaneseq
    %v3178 = vshrl.u32 %v3177, 7
    %v3179 = vsub.s32 3, %v3178
    %v3180 = vrot.slane %v1536, %v3179
    %v3181 = vlaneseq
    %v3182 = vshrl.u32 %v3181, 7
    %v3183 = vsub.s32 4, %v3182
    %v3184 = vrot.slane %v1536, %v3183
    %v3185 = vlaneseq
    %v3186 = vshrl.u32 %v3185, 7
    %v3187 = vsub.s32 5, %v3186
    %v3188 = vrot.slane %v1536, %v3187
    %v3189 = vlaneseq
    %v3190 = vshrl.u32 %v3189, 7
    %v3191 = vsub.s32 6, %v3190
    %v3192 = vrot.slane %v1536, %v3191
    %v3193 = vlaneseq
    %v3194 = vshrl.u32 %v3193, 7
    %v3195 = vsub.s32 7, %v3194
    %v3196 = vrot.slane %v1536, %v3195
    %v3197 = vlaneseq
    %v3198 = vshrl.u32 %v3197, 7
    %v3199 = vsub.s32 0, %v3198
    %v3200 = vrot.slane %v1540, %v3199
    %v3201 = vlaneseq
    %v3202 = vshrl.u32 %v3201, 7
    %v3203 = vsub.s32 1, %v3202
    %v3204 = vrot.slane %v1540, %v3203
    %v3205 = vlaneseq
    %v3206 = vshrl.u32 %v3205, 7
    %v3207 = vsub.s32 2, %v3206
    %v3208 = vrot.slane %v1540, %v3207
    %v3209 = vlaneseq
    %v3210 = vshrl.u32 %v3209, 7
    %v3211 = vsub.s32 3, %v3210
    %v3212 = vrot.slane %v1540, %v3211
    %v3213 = vlaneseq
    %v3214 = vshrl.u32 %v3213, 7
    %v3215 = vsub.s32 4, %v3214
    %v3216 = vrot.slane %v1540, %v3215
    %v3217 = vlaneseq
    %v3218 = vshrl.u32 %v3217, 7
    %v3219 = vsub.s32 5, %v3218
    %v3220 = vrot.slane %v1540, %v3219
    %v3221 = vlaneseq
    %v3222 = vshrl.u32 %v3221, 7
    %v3223 = vsub.s32 6, %v3222
    %v3224 = vrot.slane %v1540, %v3223
    %v3225 = vlaneseq
    %v3226 = vshrl.u32 %v3225, 7
    %v3227 = vsub.s32 7, %v3226
    %v3228 = vrot.slane %v1540, %v3227
    %v3229 = vlaneseq
    %v3230 = vshrl.u32 %v3229, 7
    %v3231 = vsub.s32 0, %v3230
    %v3232 = vrot.slane %v1669, %v3231
    %v3233 = vlaneseq
    %v3234 = vshrl.u32 %v3233, 7
    %v3235 = vsub.s32 1, %v3234
    %v3236 = vrot.slane %v1669, %v3235
    %v3237 = vlaneseq
    %v3238 = vshrl.u32 %v3237, 7
    %v3239 = vsub.s32 2, %v3238
    %v3240 = vrot.slane %v1669, %v3239
    %v3241 = vlaneseq
    %v3242 = vshrl.u32 %v3241, 7
    %v3243 = vsub.s32 3, %v3242
    %v3244 = vrot.slane %v1669, %v3243
    %v3245 = vlaneseq
    %v3246 = vshrl.u32 %v3245, 7
    %v3247 = vsub.s32 4, %v3246
    %v3248 = vrot.slane %v1669, %v3247
    %v3249 = vlaneseq
    %v3250 = vshrl.u32 %v3249, 7
    %v3251 = vsub.s32 5, %v3250
    %v3252 = vrot.slane %v1669, %v3251
    %v3253 = vlaneseq
    %v3254 = vshrl.u32 %v3253, 7
    %v3255 = vsub.s32 6, %v3254
    %v3256 = vrot.slane %v1669, %v3255
    %v3257 = vlaneseq
    %v3258 = vshrl.u32 %v3257, 7
    %v3259 = vsub.s32 7, %v3258
    %v3260 = vrot.slane %v1669, %v3259
    %v3261 = vlaneseq
    %v3262 = vshrl.u32 %v3261, 7
    %v3263 = vsub.s32 0, %v3262
    %v3264 = vrot.slane %v1673, %v3263
    %v3265 = vlaneseq
    %v3266 = vshrl.u32 %v3265, 7
    %v3267 = vsub.s32 1, %v3266
    %v3268 = vrot.slane %v1673, %v3267
    %v3269 = vlaneseq
    %v3270 = vshrl.u32 %v3269, 7
    %v3271 = vsub.s32 2, %v3270
    %v3272 = vrot.slane %v1673, %v3271
    %v3273 = vlaneseq
    %v3274 = vshrl.u32 %v3273, 7
    %v3275 = vsub.s32 3, %v3274
    %v3276 = vrot.slane %v1673, %v3275
    %v3277 = vlaneseq
    %v3278 = vshrl.u32 %v3277, 7
    %v3279 = vsub.s32 4, %v3278
    %v3280 = vrot.slane %v1673, %v3279
    %v3281 = vlaneseq
    %v3282 = vshrl.u32 %v3281, 7
    %v3283 = vsub.s32 5, %v3282
    %v3284 = vrot.slane %v1673, %v3283
    %v3285 = vlaneseq
    %v3286 = vshrl.u32 %v3285, 7
    %v3287 = vsub.s32 6, %v3286
    %v3288 = vrot.slane %v1673, %v3287
    %v3289 = vlaneseq
    %v3290 = vshrl.u32 %v3289, 7
    %v3291 = vsub.s32 7, %v3290
    %v3292 = vrot.slane %v1673, %v3291
    %v3293 = vlaneseq
    %v3294 = vshrl.u32 %v3293, 7
    %v3295 = vsub.s32 0, %v3294
    %v3296 = vrot.slane %v1670, %v3295
    %v3297 = vlaneseq
    %v3298 = vshrl.u32 %v3297, 7
    %v3299 = vsub.s32 1, %v3298
    %v3300 = vrot.slane %v1670, %v3299
    %v3301 = vlaneseq
    %v3302 = vshrl.u32 %v3301, 7
    %v3303 = vsub.s32 2, %v3302
    %v3304 = vrot.slane %v1670, %v3303
    %v3305 = vlaneseq
    %v3306 = vshrl.u32 %v3305, 7
    %v3307 = vsub.s32 3, %v3306
    %v3308 = vrot.slane %v1670, %v3307
    %v3309 = vlaneseq
    %v3310 = vshrl.u32 %v3309, 7
    %v3311 = vsub.s32 4, %v3310
    %v3312 = vrot.slane %v1670, %v3311
    %v3313 = vlaneseq
    %v3314 = vshrl.u32 %v3313, 7
    %v3315 = vsub.s32 5, %v3314
    %v3316 = vrot.slane %v1670, %v3315
    %v3317 = vlaneseq
    %v3318 = vshrl.u32 %v3317, 7
    %v3319 = vsub.s32 6, %v3318
    %v3320 = vrot.slane %v1670, %v3319
    %v3321 = vlaneseq
    %v3322 = vshrl.u32 %v3321, 7
    %v3323 = vsub.s32 7, %v3322
    %v3324 = vrot.slane %v1670, %v3323
    %v3325 = vlaneseq
    %v3326 = vshrl.u32 %v3325, 7
    %v3327 = vsub.s32 0, %v3326
    %v3328 = vrot.slane %v1674, %v3327
    %v3329 = vlaneseq
    %v3330 = vshrl.u32 %v3329, 7
    %v3331 = vsub.s32 1, %v3330
    %v3332 = vrot.slane %v1674, %v3331
    %v3333 = vlaneseq
    %v3334 = vshrl.u32 %v3333, 7
    %v3335 = vsub.s32 2, %v3334
    %v3336 = vrot.slane %v1674, %v3335
    %v3337 = vlaneseq
    %v3338 = vshrl.u32 %v3337, 7
    %v3339 = vsub.s32 3, %v3338
    %v3340 = vrot.slane %v1674, %v3339
    %v3341 = vlaneseq
    %v3342 = vshrl.u32 %v3341, 7
    %v3343 = vsub.s32 4, %v3342
    %v3344 = vrot.slane %v1674, %v3343
    %v3345 = vlaneseq
    %v3346 = vshrl.u32 %v3345, 7
    %v3347 = vsub.s32 5, %v3346
    %v3348 = vrot.slane %v1674, %v3347
    %v3349 = vlaneseq
    %v3350 = vshrl.u32 %v3349, 7
    %v3351 = vsub.s32 6, %v3350
    %v3352 = vrot.slane %v1674, %v3351
    %v3353 = vlaneseq
    %v3354 = vshrl.u32 %v3353, 7
    %v3355 = vsub.s32 7, %v3354
    %v3356 = vrot.slane %v1674, %v3355
    %v3357 = vlaneseq
    %v3358 = vshrl.u32 %v3357, 7
    %v3359 = vsub.s32 0, %v3358
    %v3360 = vrot.slane %v1671, %v3359
    %v3361 = vlaneseq
    %v3362 = vshrl.u32 %v3361, 7
    %v3363 = vsub.s32 1, %v3362
    %v3364 = vrot.slane %v1671, %v3363
    %v3365 = vlaneseq
    %v3366 = vshrl.u32 %v3365, 7
    %v3367 = vsub.s32 2, %v3366
    %v3368 = vrot.slane %v1671, %v3367
    %v3369 = vlaneseq
    %v3370 = vshrl.u32 %v3369, 7
    %v3371 = vsub.s32 3, %v3370
    %v3372 = vrot.slane %v1671, %v3371
    %v3373 = vlaneseq
    %v3374 = vshrl.u32 %v3373, 7
    %v3375 = vsub.s32 4, %v3374
    %v3376 = vrot.slane %v1671, %v3375
    %v3377 = vlaneseq
    %v3378 = vshrl.u32 %v3377, 7
    %v3379 = vsub.s32 5, %v3378
    %v3380 = vrot.slane %v1671, %v3379
    %v3381 = vlaneseq
    %v3382 = vshrl.u32 %v3381, 7
    %v3383 = vsub.s32 6, %v3382
    %v3384 = vrot.slane %v1671, %v3383
    %v3385 = vlaneseq
    %v3386 = vshrl.u32 %v3385, 7
    %v3387 = vsub.s32 7, %v3386
    %v3388 = vrot.slane %v1671, %v3387
    %v3389 = vlaneseq
    %v3390 = vshrl.u32 %v3389, 7
    %v3391 = vsub.s32 0, %v3390
    %v3392 = vrot.slane %v1675, %v3391
    %v3393 = vlaneseq
    %v3394 = vshrl.u32 %v3393, 7
    %v3395 = vsub.s32 1, %v3394
    %v3396 = vrot.slane %v1675, %v3395
    %v3397 = vlaneseq
    %v3398 = vshrl.u32 %v3397, 7
    %v3399 = vsub.s32 2, %v3398
    %v3400 = vrot.slane %v1675, %v3399
    %v3401 = vlaneseq
    %v3402 = vshrl.u32 %v3401, 7
    %v3403 = vsub.s32 3, %v3402
    %v3404 = vrot.slane %v1675, %v3403
    %v3405 = vlaneseq
    %v3406 = vshrl.u32 %v3405, 7
    %v3407 = vsub.s32 4, %v3406
    %v3408 = vrot.slane %v1675, %v3407
    %v3409 = vlaneseq
    %v3410 = vshrl.u32 %v3409, 7
    %v3411 = vsub.s32 5, %v3410
    %v3412 = vrot.slane %v1675, %v3411
    %v3413 = vlaneseq
    %v3414 = vshrl.u32 %v3413, 7
    %v3415 = vsub.s32 6, %v3414
    %v3416 = vrot.slane %v1675, %v3415
    %v3417 = vlaneseq
    %v3418 = vshrl.u32 %v3417, 7
    %v3419 = vsub.s32 7, %v3418
    %v3420 = vrot.slane %v1675, %v3419
    %v3421 = vlaneseq
    %v3422 = vshrl.u32 %v3421, 7
    %v3423 = vsub.s32 0, %v3422
    %v3424 = vrot.slane %v1672, %v3423
    %v3425 = vlaneseq
    %v3426 = vshrl.u32 %v3425, 7
    %v3427 = vsub.s32 1, %v3426
    %v3428 = vrot.slane %v1672, %v3427
    %v3429 = vlaneseq
    %v3430 = vshrl.u32 %v3429, 7
    %v3431 = vsub.s32 2, %v3430
    %v3432 = vrot.slane %v1672, %v3431
    %v3433 = vlaneseq
    %v3434 = vshrl.u32 %v3433, 7
    %v3435 = vsub.s32 3, %v3434
    %v3436 = vrot.slane %v1672, %v3435
    %v3437 = vlaneseq
    %v3438 = vshrl.u32 %v3437, 7
    %v3439 = vsub.s32 4, %v3438
    %v3440 = vrot.slane %v1672, %v3439
    %v3441 = vlaneseq
    %v3442 = vshrl.u32 %v3441, 7
    %v3443 = vsub.s32 5, %v3442
    %v3444 = vrot.slane %v1672, %v3443
    %v3445 = vlaneseq
    %v3446 = vshrl.u32 %v3445, 7
    %v3447 = vsub.s32 6, %v3446
    %v3448 = vrot.slane %v1672, %v3447
    %v3449 = vlaneseq
    %v3450 = vshrl.u32 %v3449, 7
    %v3451 = vsub.s32 7, %v3450
    %v3452 = vrot.slane %v1672, %v3451
    %v3453 = vlaneseq
    %v3454 = vshrl.u32 %v3453, 7
    %v3455 = vsub.s32 0, %v3454
    %v3456 = vrot.slane %v1676, %v3455
    %v3457 = vlaneseq
    %v3458 = vshrl.u32 %v3457, 7
    %v3459 = vsub.s32 1, %v3458
    %v3460 = vrot.slane %v1676, %v3459
    %v3461 = vlaneseq
    %v3462 = vshrl.u32 %v3461, 7
    %v3463 = vsub.s32 2, %v3462
    %v3464 = vrot.slane %v1676, %v3463
    %v3465 = vlaneseq
    %v3466 = vshrl.u32 %v3465, 7
    %v3467 = vsub.s32 3, %v3466
    %v3468 = vrot.slane %v1676, %v3467
    %v3469 = vlaneseq
    %v3470 = vshrl.u32 %v3469, 7
    %v3471 = vsub.s32 4, %v3470
    %v3472 = vrot.slane %v1676, %v3471
    %v3473 = vlaneseq
    %v3474 = vshrl.u32 %v3473, 7
    %v3475 = vsub.s32 5, %v3474
    %v3476 = vrot.slane %v1676, %v3475
    %v3477 = vlaneseq
    %v3478 = vshrl.u32 %v3477, 7
    %v3479 = vsub.s32 6, %v3478
    %v3480 = vrot.slane %v1676, %v3479
    %v3481 = vlaneseq
    %v3482 = vshrl.u32 %v3481, 7
    %v3483 = vsub.s32 7, %v3482
    %v3484 = vrot.slane %v1676, %v3483
    %v3485 = vlaneseq
    %v3486 = vshrl.u32 %v3485, 7
    %v3487 = vsub.s32 0, %v3486
    %v3488 = vrot.slane %v1805, %v3487
    %v3489 = vlaneseq
    %v3490 = vshrl.u32 %v3489, 7
    %v3491 = vsub.s32 1, %v3490
    %v3492 = vrot.slane %v1805, %v3491
    %v3493 = vlaneseq
    %v3494 = vshrl.u32 %v3493, 7
    %v3495 = vsub.s32 2, %v3494
    %v3496 = vrot.slane %v1805, %v3495
    %v3497 = vlaneseq
    %v3498 = vshrl.u32 %v3497, 7
    %v3499 = vsub.s32 3, %v3498
    %v3500 = vrot.slane %v1805, %v3499
    %v3501 = vlaneseq
    %v3502 = vshrl.u32 %v3501, 7
    %v3503 = vsub.s32 4, %v3502
    %v3504 = vrot.slane %v1805, %v3503
    %v3505 = vlaneseq
    %v3506 = vshrl.u32 %v3505, 7
    %v3507 = vsub.s32 5, %v3506
    %v3508 = vrot.slane %v1805, %v3507
    %v3509 = vlaneseq
    %v3510 = vshrl.u32 %v3509, 7
    %v3511 = vsub.s32 6, %v3510
    %v3512 = vrot.slane %v1805, %v3511
    %v3513 = vlaneseq
    %v3514 = vshrl.u32 %v3513, 7
    %v3515 = vsub.s32 7, %v3514
    %v3516 = vrot.slane %v1805, %v3515
    %v3517 = vlaneseq
    %v3518 = vshrl.u32 %v3517, 7
    %v3519 = vsub.s32 0, %v3518
    %v3520 = vrot.slane %v1809, %v3519
    %v3521 = vlaneseq
    %v3522 = vshrl.u32 %v3521, 7
    %v3523 = vsub.s32 1, %v3522
    %v3524 = vrot.slane %v1809, %v3523
    %v3525 = vlaneseq
    %v3526 = vshrl.u32 %v3525, 7
    %v3527 = vsub.s32 2, %v3526
    %v3528 = vrot.slane %v1809, %v3527
    %v3529 = vlaneseq
    %v3530 = vshrl.u32 %v3529, 7
    %v3531 = vsub.s32 3, %v3530
    %v3532 = vrot.slane %v1809, %v3531
    %v3533 = vlaneseq
    %v3534 = vshrl.u32 %v3533, 7
    %v3535 = vsub.s32 4, %v3534
    %v3536 = vrot.slane %v1809, %v3535
    %v3537 = vlaneseq
    %v3538 = vshrl.u32 %v3537, 7
    %v3539 = vsub.s32 5, %v3538
    %v3540 = vrot.slane %v1809, %v3539
    %v3541 = vlaneseq
    %v3542 = vshrl.u32 %v3541, 7
    %v3543 = vsub.s32 6, %v3542
    %v3544 = vrot.slane %v1809, %v3543
    %v3545 = vlaneseq
    %v3546 = vshrl.u32 %v3545, 7
    %v3547 = vsub.s32 7, %v3546
    %v3548 = vrot.slane %v1809, %v3547
    %v3549 = vlaneseq
    %v3550 = vshrl.u32 %v3549, 7
    %v3551 = vsub.s32 0, %v3550
    %v3552 = vrot.slane %v1806, %v3551
    %v3553 = vlaneseq
    %v3554 = vshrl.u32 %v3553, 7
    %v3555 = vsub.s32 1, %v3554
    %v3556 = vrot.slane %v1806, %v3555
    %v3557 = vlaneseq
    %v3558 = vshrl.u32 %v3557, 7
    %v3559 = vsub.s32 2, %v3558
    %v3560 = vrot.slane %v1806, %v3559
    %v3561 = vlaneseq
    %v3562 = vshrl.u32 %v3561, 7
    %v3563 = vsub.s32 3, %v3562
    %v3564 = vrot.slane %v1806, %v3563
    %v3565 = vlaneseq
    %v3566 = vshrl.u32 %v3565, 7
    %v3567 = vsub.s32 4, %v3566
    %v3568 = vrot.slane %v1806, %v3567
    %v3569 = vlaneseq
    %v3570 = vshrl.u32 %v3569, 7
    %v3571 = vsub.s32 5, %v3570
    %v3572 = vrot.slane %v1806, %v3571
    %v3573 = vlaneseq
    %v3574 = vshrl.u32 %v3573, 7
    %v3575 = vsub.s32 6, %v3574
    %v3576 = vrot.slane %v1806, %v3575
    %v3577 = vlaneseq
    %v3578 = vshrl.u32 %v3577, 7
    %v3579 = vsub.s32 7, %v3578
    %v3580 = vrot.slane %v1806, %v3579
    %v3581 = vlaneseq
    %v3582 = vshrl.u32 %v3581, 7
    %v3583 = vsub.s32 0, %v3582
    %v3584 = vrot.slane %v1810, %v3583
    %v3585 = vlaneseq
    %v3586 = vshrl.u32 %v3585, 7
    %v3587 = vsub.s32 1, %v3586
    %v3588 = vrot.slane %v1810, %v3587
    %v3589 = vlaneseq
    %v3590 = vshrl.u32 %v3589, 7
    %v3591 = vsub.s32 2, %v3590
    %v3592 = vrot.slane %v1810, %v3591
    %v3593 = vlaneseq
    %v3594 = vshrl.u32 %v3593, 7
    %v3595 = vsub.s32 3, %v3594
    %v3596 = vrot.slane %v1810, %v3595
    %v3597 = vlaneseq
    %v3598 = vshrl.u32 %v3597, 7
    %v3599 = vsub.s32 4, %v3598
    %v3600 = vrot.slane %v1810, %v3599
    %v3601 = vlaneseq
    %v3602 = vshrl.u32 %v3601, 7
    %v3603 = vsub.s32 5, %v3602
    %v3604 = vrot.slane %v1810, %v3603
    %v3605 = vlaneseq
    %v3606 = vshrl.u32 %v3605, 7
    %v3607 = vsub.s32 6, %v3606
    %v3608 = vrot.slane %v1810, %v3607
    %v3609 = vlaneseq
    %v3610 = vshrl.u32 %v3609, 7
    %v3611 = vsub.s32 7, %v3610
    %v3612 = vrot.slane %v1810, %v3611
    %v3613 = vlaneseq
    %v3614 = vshrl.u32 %v3613, 7
    %v3615 = vsub.s32 0, %v3614
    %v3616 = vrot.slane %v1807, %v3615
    %v3617 = vlaneseq
    %v3618 = vshrl.u32 %v3617, 7
    %v3619 = vsub.s32 1, %v3618
    %v3620 = vrot.slane %v1807, %v3619
    %v3621 = vlaneseq
    %v3622 = vshrl.u32 %v3621, 7
    %v3623 = vsub.s32 2, %v3622
    %v3624 = vrot.slane %v1807, %v3623
    %v3625 = vlaneseq
    %v3626 = vshrl.u32 %v3625, 7
    %v3627 = vsub.s32 3, %v3626
    %v3628 = vrot.slane %v1807, %v3627
    %v3629 = vlaneseq
    %v3630 = vshrl.u32 %v3629, 7
    %v3631 = vsub.s32 4, %v3630
    %v3632 = vrot.slane %v1807, %v3631
    %v3633 = vlaneseq
    %v3634 = vshrl.u32 %v3633, 7
    %v3635 = vsub.s32 5, %v3634
    %v3636 = vrot.slane %v1807, %v3635
    %v3637 = vlaneseq
    %v3638 = vshrl.u32 %v3637, 7
    %v3639 = vsub.s32 6, %v3638
    %v3640 = vrot.slane %v1807, %v3639
    %v3641 = vlaneseq
    %v3642 = vshrl.u32 %v3641, 7
    %v3643 = vsub.s32 7, %v3642
    %v3644 = vrot.slane %v1807, %v3643
    %v3645 = vlaneseq
    %v3646 = vshrl.u32 %v3645, 7
    %v3647 = vsub.s32 0, %v3646
    %v3648 = vrot.slane %v1811, %v3647
    %v3649 = vlaneseq
    %v3650 = vshrl.u32 %v3649, 7
    %v3651 = vsub.s32 1, %v3650
    %v3652 = vrot.slane %v1811, %v3651
    %v3653 = vlaneseq
    %v3654 = vshrl.u32 %v3653, 7
    %v3655 = vsub.s32 2, %v3654
    %v3656 = vrot.slane %v1811, %v3655
    %v3657 = vlaneseq
    %v3658 = vshrl.u32 %v3657, 7
    %v3659 = vsub.s32 3, %v3658
    %v3660 = vrot.slane %v1811, %v3659
    %v3661 = vlaneseq
    %v3662 = vshrl.u32 %v3661, 7
    %v3663 = vsub.s32 4, %v3662
    %v3664 = vrot.slane %v1811, %v3663
    %v3665 = vlaneseq
    %v3666 = vshrl.u32 %v3665, 7
    %v3667 = vsub.s32 5, %v3666
    %v3668 = vrot.slane %v1811, %v3667
    %v3669 = vlaneseq
    %v3670 = vshrl.u32 %v3669, 7
    %v3671 = vsub.s32 6, %v3670
    %v3672 = vrot.slane %v1811, %v3671
    %v3673 = vlaneseq
    %v3674 = vshrl.u32 %v3673, 7
    %v3675 = vsub.s32 7, %v3674
    %v3676 = vrot.slane %v1811, %v3675
    %v3677 = vlaneseq
    %v3678 = vshrl.u32 %v3677, 7
    %v3679 = vsub.s32 0, %v3678
    %v3680 = vrot.slane %v1808, %v3679
    %v3681 = vlaneseq
    %v3682 = vshrl.u32 %v3681, 7
    %v3683 = vsub.s32 1, %v3682
    %v3684 = vrot.slane %v1808, %v3683
    %v3685 = vlaneseq
    %v3686 = vshrl.u32 %v3685, 7
    %v3687 = vsub.s32 2, %v3686
    %v3688 = vrot.slane %v1808, %v3687
    %v3689 = vlaneseq
    %v3690 = vshrl.u32 %v3689, 7
    %v3691 = vsub.s32 3, %v3690
    %v3692 = vrot.slane %v1808, %v3691
    %v3693 = vlaneseq
    %v3694 = vshrl.u32 %v3693, 7
    %v3695 = vsub.s32 4, %v3694
    %v3696 = vrot.slane %v1808, %v3695
    %v3697 = vlaneseq
    %v3698 = vshrl.u32 %v3697, 7
    %v3699 = vsub.s32 5, %v3698
    %v3700 = vrot.slane %v1808, %v3699
    %v3701 = vlaneseq
    %v3702 = vshrl.u32 %v3701, 7
    %v3703 = vsub.s32 6, %v3702
    %v3704 = vrot.slane %v1808, %v3703
    %v3705 = vlaneseq
    %v3706 = vshrl.u32 %v3705, 7
    %v3707 = vsub.s32 7, %v3706
    %v3708 = vrot.slane %v1808, %v3707
    %v3709 = vlaneseq
    %v3710 = vshrl.u32 %v3709, 7
    %v3711 = vsub.s32 0, %v3710
    %v3712 = vrot.slane %v1812, %v3711
    %v3713 = vlaneseq
    %v3714 = vshrl.u32 %v3713, 7
    %v3715 = vsub.s32 1, %v3714
    %v3716 = vrot.slane %v1812, %v3715
    %v3717 = vlaneseq
    %v3718 = vshrl.u32 %v3717, 7
    %v3719 = vsub.s32 2, %v3718
    %v3720 = vrot.slane %v1812, %v3719
    %v3721 = vlaneseq
    %v3722 = vshrl.u32 %v3721, 7
    %v3723 = vsub.s32 3, %v3722
    %v3724 = vrot.slane %v1812, %v3723
    %v3725 = vlaneseq
    %v3726 = vshrl.u32 %v3725, 7
    %v3727 = vsub.s32 4, %v3726
    %v3728 = vrot.slane %v1812, %v3727
    %v3729 = vlaneseq
    %v3730 = vshrl.u32 %v3729, 7
    %v3731 = vsub.s32 5, %v3730
    %v3732 = vrot.slane %v1812, %v3731
    %v3733 = vlaneseq
    %v3734 = vshrl.u32 %v3733, 7
    %v3735 = vsub.s32 6, %v3734
    %v3736 = vrot.slane %v1812, %v3735
    %v3737 = vlaneseq
    %v3738 = vshrl.u32 %v3737, 7
    %v3739 = vsub.s32 7, %v3738
    %v3740 = vrot.slane %v1812, %v3739
    %v3741 = vlaneseq
    %v3742 = vshrl.u32 %v3741, 7
    %v3743 = vsub.s32 0, %v3742
    %v3744 = vrot.slane %v1941, %v3743
    %v3745 = vlaneseq
    %v3746 = vshrl.u32 %v3745, 7
    %v3747 = vsub.s32 1, %v3746
    %v3748 = vrot.slane %v1941, %v3747
    %v3749 = vlaneseq
    %v3750 = vshrl.u32 %v3749, 7
    %v3751 = vsub.s32 2, %v3750
    %v3752 = vrot.slane %v1941, %v3751
    %v3753 = vlaneseq
    %v3754 = vshrl.u32 %v3753, 7
    %v3755 = vsub.s32 3, %v3754
    %v3756 = vrot.slane %v1941, %v3755
    %v3757 = vlaneseq
    %v3758 = vshrl.u32 %v3757, 7
    %v3759 = vsub.s32 4, %v3758
    %v3760 = vrot.slane %v1941, %v3759
    %v3761 = vlaneseq
    %v3762 = vshrl.u32 %v3761, 7
    %v3763 = vsub.s32 5, %v3762
    %v3764 = vrot.slane %v1941, %v3763
    %v3765 = vlaneseq
    %v3766 = vshrl.u32 %v3765, 7
    %v3767 = vsub.s32 6, %v3766
    %v3768 = vrot.slane %v1941, %v3767
    %v3769 = vlaneseq
    %v3770 = vshrl.u32 %v3769, 7
    %v3771 = vsub.s32 7, %v3770
    %v3772 = vrot.slane %v1941, %v3771
    %v3773 = vlaneseq
    %v3774 = vshrl.u32 %v3773, 7
    %v3775 = vsub.s32 0, %v3774
    %v3776 = vrot.slane %v1945, %v3775
    %v3777 = vlaneseq
    %v3778 = vshrl.u32 %v3777, 7
    %v3779 = vsub.s32 1, %v3778
    %v3780 = vrot.slane %v1945, %v3779
    %v3781 = vlaneseq
    %v3782 = vshrl.u32 %v3781, 7
    %v3783 = vsub.s32 2, %v3782
    %v3784 = vrot.slane %v1945, %v3783
    %v3785 = vlaneseq
    %v3786 = vshrl.u32 %v3785, 7
    %v3787 = vsub.s32 3, %v3786
    %v3788 = vrot.slane %v1945, %v3787
    %v3789 = vlaneseq
    %v3790 = vshrl.u32 %v3789, 7
    %v3791 = vsub.s32 4, %v3790
    %v3792 = vrot.slane %v1945, %v3791
    %v3793 = vlaneseq
    %v3794 = vshrl.u32 %v3793, 7
    %v3795 = vsub.s32 5, %v3794
    %v3796 = vrot.slane %v1945, %v3795
    %v3797 = vlaneseq
    %v3798 = vshrl.u32 %v3797, 7
    %v3799 = vsub.s32 6, %v3798
    %v3800 = vrot.slane %v1945, %v3799
    %v3801 = vlaneseq
    %v3802 = vshrl.u32 %v3801, 7
    %v3803 = vsub.s32 7, %v3802
    %v3804 = vrot.slane %v1945, %v3803
    %v3805 = vlaneseq
    %v3806 = vshrl.u32 %v3805, 7
    %v3807 = vsub.s32 0, %v3806
    %v3808 = vrot.slane %v1942, %v3807
    %v3809 = vlaneseq
    %v3810 = vshrl.u32 %v3809, 7
    %v3811 = vsub.s32 1, %v3810
    %v3812 = vrot.slane %v1942, %v3811
    %v3813 = vlaneseq
    %v3814 = vshrl.u32 %v3813, 7
    %v3815 = vsub.s32 2, %v3814
    %v3816 = vrot.slane %v1942, %v3815
    %v3817 = vlaneseq
    %v3818 = vshrl.u32 %v3817, 7
    %v3819 = vsub.s32 3, %v3818
    %v3820 = vrot.slane %v1942, %v3819
    %v3821 = vlaneseq
    %v3822 = vshrl.u32 %v3821, 7
    %v3823 = vsub.s32 4, %v3822
    %v3824 = vrot.slane %v1942, %v3823
    %v3825 = vlaneseq
    %v3826 = vshrl.u32 %v3825, 7
    %v3827 = vsub.s32 5, %v3826
    %v3828 = vrot.slane %v1942, %v3827
    %v3829 = vlaneseq
    %v3830 = vshrl.u32 %v3829, 7
    %v3831 = vsub.s32 6, %v3830
    %v3832 = vrot.slane %v1942, %v3831
    %v3833 = vlaneseq
    %v3834 = vshrl.u32 %v3833, 7
    %v3835 = vsub.s32 7, %v3834
    %v3836 = vrot.slane %v1942, %v3835
    %v3837 = vlaneseq
    %v3838 = vshrl.u32 %v3837, 7
    %v3839 = vsub.s32 0, %v3838
    %v3840 = vrot.slane %v1946, %v3839
    %v3841 = vlaneseq
    %v3842 = vshrl.u32 %v3841, 7
    %v3843 = vsub.s32 1, %v3842
    %v3844 = vrot.slane %v1946, %v3843
    %v3845 = vlaneseq
    %v3846 = vshrl.u32 %v3845, 7
    %v3847 = vsub.s32 2, %v3846
    %v3848 = vrot.slane %v1946, %v3847
    %v3849 = vlaneseq
    %v3850 = vshrl.u32 %v3849, 7
    %v3851 = vsub.s32 3, %v3850
    %v3852 = vrot.slane %v1946, %v3851
    %v3853 = vlaneseq
    %v3854 = vshrl.u32 %v3853, 7
    %v3855 = vsub.s32 4, %v3854
    %v3856 = vrot.slane %v1946, %v3855
    %v3857 = vlaneseq
    %v3858 = vshrl.u32 %v3857, 7
    %v3859 = vsub.s32 5, %v3858
    %v3860 = vrot.slane %v1946, %v3859
    %v3861 = vlaneseq
    %v3862 = vshrl.u32 %v3861, 7
    %v3863 = vsub.s32 6, %v3862
    %v3864 = vrot.slane %v1946, %v3863
    %v3865 = vlaneseq
    %v3866 = vshrl.u32 %v3865, 7
    %v3867 = vsub.s32 7, %v3866
    %v3868 = vrot.slane %v1946, %v3867
    %v3869 = vlaneseq
    %v3870 = vshrl.u32 %v3869, 7
    %v3871 = vsub.s32 0, %v3870
    %v3872 = vrot.slane %v1943, %v3871
    %v3873 = vlaneseq
    %v3874 = vshrl.u32 %v3873, 7
    %v3875 = vsub.s32 1, %v3874
    %v3876 = vrot.slane %v1943, %v3875
    %v3877 = vlaneseq
    %v3878 = vshrl.u32 %v3877, 7
    %v3879 = vsub.s32 2, %v3878
    %v3880 = vrot.slane %v1943, %v3879
    %v3881 = vlaneseq
    %v3882 = vshrl.u32 %v3881, 7
    %v3883 = vsub.s32 3, %v3882
    %v3884 = vrot.slane %v1943, %v3883
    %v3885 = vlaneseq
    %v3886 = vshrl.u32 %v3885, 7
    %v3887 = vsub.s32 4, %v3886
    %v3888 = vrot.slane %v1943, %v3887
    %v3889 = vlaneseq
    %v3890 = vshrl.u32 %v3889, 7
    %v3891 = vsub.s32 5, %v3890
    %v3892 = vrot.slane %v1943, %v3891
    %v3893 = vlaneseq
    %v3894 = vshrl.u32 %v3893, 7
    %v3895 = vsub.s32 6, %v3894
    %v3896 = vrot.slane %v1943, %v3895
    %v3897 = vlaneseq
    %v3898 = vshrl.u32 %v3897, 7
    %v3899 = vsub.s32 7, %v3898
    %v3900 = vrot.slane %v1943, %v3899
    %v3901 = vlaneseq
    %v3902 = vshrl.u32 %v3901, 7
    %v3903 = vsub.s32 0, %v3902
    %v3904 = vrot.slane %v1947, %v3903
    %v3905 = vlaneseq
    %v3906 = vshrl.u32 %v3905, 7
    %v3907 = vsub.s32 1, %v3906
    %v3908 = vrot.slane %v1947, %v3907
    %v3909 = vlaneseq
    %v3910 = vshrl.u32 %v3909, 7
    %v3911 = vsub.s32 2, %v3910
    %v3912 = vrot.slane %v1947, %v3911
    %v3913 = vlaneseq
    %v3914 = vshrl.u32 %v3913, 7
    %v3915 = vsub.s32 3, %v3914
    %v3916 = vrot.slane %v1947, %v3915
    %v3917 = vlaneseq
    %v3918 = vshrl.u32 %v3917, 7
    %v3919 = vsub.s32 4, %v3918
    %v3920 = vrot.slane %v1947, %v3919
    %v3921 = vlaneseq
    %v3922 = vshrl.u32 %v3921, 7
    %v3923 = vsub.s32 5, %v3922
    %v3924 = vrot.slane %v1947, %v3923
    %v3925 = vlaneseq
    %v3926 = vshrl.u32 %v3925, 7
    %v3927 = vsub.s32 6, %v3926
    %v3928 = vrot.slane %v1947, %v3927
    %v3929 = vlaneseq
    %v3930 = vshrl.u32 %v3929, 7
    %v3931 = vsub.s32 7, %v3930
    %v3932 = vrot.slane %v1947, %v3931
    %v3933 = vlaneseq
    %v3934 = vshrl.u32 %v3933, 7
    %v3935 = vsub.s32 0, %v3934
    %v3936 = vrot.slane %v1944, %v3935
    %v3937 = vlaneseq
    %v3938 = vshrl.u32 %v3937, 7
    %v3939 = vsub.s32 1, %v3938
    %v3940 = vrot.slane %v1944, %v3939
    %v3941 = vlaneseq
    %v3942 = vshrl.u32 %v3941, 7
    %v3943 = vsub.s32 2, %v3942
    %v3944 = vrot.slane %v1944, %v3943
    %v3945 = vlaneseq
    %v3946 = vshrl.u32 %v3945, 7
    %v3947 = vsub.s32 3, %v3946
    %v3948 = vrot.slane %v1944, %v3947
    %v3949 = vlaneseq
    %v3950 = vshrl.u32 %v3949, 7
    %v3951 = vsub.s32 4, %v3950
    %v3952 = vrot.slane %v1944, %v3951
    %v3953 = vlaneseq
    %v3954 = vshrl.u32 %v3953, 7
    %v3955 = vsub.s32 5, %v3954
    %v3956 = vrot.slane %v1944, %v3955
    %v3957 = vlaneseq
    %v3958 = vshrl.u32 %v3957, 7
    %v3959 = vsub.s32 6, %v3958
    %v3960 = vrot.slane %v1944, %v3959
    %v3961 = vlaneseq
    %v3962 = vshrl.u32 %v3961, 7
    %v3963 = vsub.s32 7, %v3962
    %v3964 = vrot.slane %v1944, %v3963
    %v3965 = vlaneseq
    %v3966 = vshrl.u32 %v3965, 7
    %v3967 = vsub.s32 0, %v3966
    %v3968 = vrot.slane %v1948, %v3967
    %v3969 = vlaneseq
    %v3970 = vshrl.u32 %v3969, 7
    %v3971 = vsub.s32 1, %v3970
    %v3972 = vrot.slane %v1948, %v3971
    %v3973 = vlaneseq
    %v3974 = vshrl.u32 %v3973, 7
    %v3975 = vsub.s32 2, %v3974
    %v3976 = vrot.slane %v1948, %v3975
    %v3977 = vlaneseq
    %v3978 = vshrl.u32 %v3977, 7
    %v3979 = vsub.s32 3, %v3978
    %v3980 = vrot.slane %v1948, %v3979
    %v3981 = vlaneseq
    %v3982 = vshrl.u32 %v3981, 7
    %v3983 = vsub.s32 4, %v3982
    %v3984 = vrot.slane %v1948, %v3983
    %v3985 = vlaneseq
    %v3986 = vshrl.u32 %v3985, 7
    %v3987 = vsub.s32 5, %v3986
    %v3988 = vrot.slane %v1948, %v3987
    %v3989 = vlaneseq
    %v3990 = vshrl.u32 %v3989, 7
    %v3991 = vsub.s32 6, %v3990
    %v3992 = vrot.slane %v1948, %v3991
    %v3993 = vlaneseq
    %v3994 = vshrl.u32 %v3993, 7
    %v3995 = vsub.s32 7, %v3994
    %v3996 = vrot.slane %v1948, %v3995
    %v4509 = vmul.f32 %v1952, %v261
    %v4510 = vmul.f32 %v1956, %v262
    %v4511 = vmul.f32 %v1960, %v263
    %v4512 = vmul.f32 %v1964, %v264
    %v4513 = vmul.f32 %v1968, %v265
    %v4514 = vmul.f32 %v1972, %v266
    %v4515 = vmul.f32 %v1976, %v267
    %v4516 = vmul.f32 %v1980, %v268
    %v4517 = vmul.f32 %v1984, %v261
    %v4518 = vmul.f32 %v1988, %v262
    %v4519 = vmul.f32 %v1992, %v263
    %v4520 = vmul.f32 %v1996, %v264
    %v4521 = vmul.f32 %v2000, %v265
    %v4522 = vmul.f32 %v2004, %v266
    %v4523 = vmul.f32 %v2008, %v267
    %v4524 = vmul.f32 %v2012, %v268
    %v4525 = vmul.f32 %v2016, %v261
    %v4526 = vmul.f32 %v2020, %v262
    %v4527 = vmul.f32 %v2024, %v263
    %v4528 = vmul.f32 %v2028, %v264
    %v4529 = vmul.f32 %v2032, %v265
    %v4530 = vmul.f32 %v2036, %v266
    %v4531 = vmul.f32 %v2040, %v267
    %v4532 = vmul.f32 %v2044, %v268
    %v4533 = vmul.f32 %v2048, %v261
    %v4534 = vmul.f32 %v2052, %v262
    %v4535 = vmul.f32 %v2056, %v263
    %v4536 = vmul.f32 %v2060, %v264
    %v4537 = vmul.f32 %v2064, %v265
    %v4538 = vmul.f32 %v2068, %v266
    %v4539 = vmul.f32 %v2072, %v267
    %v4540 = vmul.f32 %v2076, %v268
    %v4541 = vmul.f32 %v2080, %v261
    %v4542 = vmul.f32 %v2084, %v262
    %v4543 = vmul.f32 %v2088, %v263
    %v4544 = vmul.f32 %v2092, %v264
    %v4545 = vmul.f32 %v2096, %v265
    %v4546 = vmul.f32 %v2100, %v266
    %v4547 = vmul.f32 %v2104, %v267
    %v4548 = vmul.f32 %v2108, %v268
    %v4549 = vmul.f32 %v2112, %v261
    %v4550 = vmul.f32 %v2116, %v262
    %v4551 = vmul.f32 %v2120, %v263
    %v4552 = vmul.f32 %v2124, %v264
    %v4553 = vmul.f32 %v2128, %v265
    %v4554 = vmul.f32 %v2132, %v266
    %v4555 = vmul.f32 %v2136, %v267
    %v4556 = vmul.f32 %v2140, %v268
    %v4557 = vmul.f32 %v2144, %v261
    %v4558 = vmul.f32 %v2148, %v262
    %v4559 = vmul.f32 %v2152, %v263
    %v4560 = vmul.f32 %v2156, %v264
    %v4561 = vmul.f32 %v2160, %v265
    %v4562 = vmul.f32 %v2164, %v266
    %v4563 = vmul.f32 %v2168, %v267
    %v4564 = vmul.f32 %v2172, %v268
    %v4565 = vmul.f32 %v2176, %v261
    %v4566 = vmul.f32 %v2180, %v262
    %v4567 = vmul.f32 %v2184, %v263
    %v4568 = vmul.f32 %v2188, %v264
    %v4569 = vmul.f32 %v2192, %v265
    %v4570 = vmul.f32 %v2196, %v266
    %v4571 = vmul.f32 %v2200, %v267
    %v4572 = vmul.f32 %v2204, %v268
    %v4573 = vmul.f32 %v2208, %v261
    %v4574 = vmul.f32 %v2212, %v262
    %v4575 = vmul.f32 %v2216, %v263
    %v4576 = vmul.f32 %v2220, %v264
    %v4577 = vmul.f32 %v2224, %v265
    %v4578 = vmul.f32 %v2228, %v266
    %v4579 = vmul.f32 %v2232, %v267
    %v4580 = vmul.f32 %v2236, %v268
    %v4581 = vmul.f32 %v2240, %v261
    %v4582 = vmul.f32 %v2244, %v262
    %v4583 = vmul.f32 %v2248, %v263
    %v4584 = vmul.f32 %v2252, %v264
    %v4585 = vmul.f32 %v2256, %v265
    %v4586 = vmul.f32 %v2260, %v266
    %v4587 = vmul.f32 %v2264, %v267
    %v4588 = vmul.f32 %v2268, %v268
    %v4589 = vmul.f32 %v2272, %v261
    %v4590 = vmul.f32 %v2276, %v262
    %v4591 = vmul.f32 %v2280, %v263
    %v4592 = vmul.f32 %v2284, %v264
    %v4593 = vmul.f32 %v2288, %v265
    %v4594 = vmul.f32 %v2292, %v266
    %v4595 = vmul.f32 %v2296, %v267
    %v4596 = vmul.f32 %v2300, %v268
    %v4597 = vmul.f32 %v2304, %v261
    %v4598 = vmul.f32 %v2308, %v262
    %v4599 = vmul.f32 %v2312, %v263
    %v4600 = vmul.f32 %v2316, %v264
    %v4601 = vmul.f32 %v2320, %v265
    %v4602 = vmul.f32 %v2324, %v266
    %v4603 = vmul.f32 %v2328, %v267
    %v4604 = vmul.f32 %v2332, %v268
    %v4605 = vmul.f32 %v2336, %v261
    %v4606 = vmul.f32 %v2340, %v262
    %v4607 = vmul.f32 %v2344, %v263
    %v4608 = vmul.f32 %v2348, %v264
    %v4609 = vmul.f32 %v2352, %v265
    %v4610 = vmul.f32 %v2356, %v266
    %v4611 = vmul.f32 %v2360, %v267
    %v4612 = vmul.f32 %v2364, %v268
    %v4613 = vmul.f32 %v2368, %v261
    %v4614 = vmul.f32 %v2372, %v262
    %v4615 = vmul.f32 %v2376, %v263
    %v4616 = vmul.f32 %v2380, %v264
    %v4617 = vmul.f32 %v2384, %v265
    %v4618 = vmul.f32 %v2388, %v266
    %v4619 = vmul.f32 %v2392, %v267
    %v4620 = vmul.f32 %v2396, %v268
    %v4621 = vmul.f32 %v2400, %v261
    %v4622 = vmul.f32 %v2404, %v262
    %v4623 = vmul.f32 %v2408, %v263
    %v4624 = vmul.f32 %v2412, %v264
    %v4625 = vmul.f32 %v2416, %v265
    %v4626 = vmul.f32 %v2420, %v266
    %v4627 = vmul.f32 %v2424, %v267
    %v4628 = vmul.f32 %v2428, %v268
    %v4629 = vmul.f32 %v2432, %v261
    %v4630 = vmul.f32 %v2436, %v262
    %v4631 = vmul.f32 %v2440, %v263
    %v4632 = vmul.f32 %v2444, %v264
    %v4633 = vmul.f32 %v2448, %v265
    %v4634 = vmul.f32 %v2452, %v266
    %v4635 = vmul.f32 %v2456, %v267
    %v4636 = vmul.f32 %v2460, %v268
    %v4637 = vmul.f32 %v2464, %v261
    %v4638 = vmul.f32 %v2468, %v262
    %v4639 = vmul.f32 %v2472, %v263
    %v4640 = vmul.f32 %v2476, %v264
    %v4641 = vmul.f32 %v2480, %v265
    %v4642 = vmul.f32 %v2484, %v266
    %v4643 = vmul.f32 %v2488, %v267
    %v4644 = vmul.f32 %v2492, %v268
    %v4645 = vmul.f32 %v2496, %v261
    %v4646 = vmul.f32 %v2500, %v262
    %v4647 = vmul.f32 %v2504, %v263
    %v4648 = vmul.f32 %v2508, %v264
    %v4649 = vmul.f32 %v2512, %v265
    %v4650 = vmul.f32 %v2516, %v266
    %v4651 = vmul.f32 %v2520, %v267
    %v4652 = vmul.f32 %v2524, %v268
    %v4653 = vmul.f32 %v2528, %v261
    %v4654 = vmul.f32 %v2532, %v262
    %v4655 = vmul.f32 %v2536, %v263
    %v4656 = vmul.f32 %v2540, %v264
    %v4657 = vmul.f32 %v2544, %v265
    %v4658 = vmul.f32 %v2548, %v266
    %v4659 = vmul.f32 %v2552, %v267
    %v4660 = vmul.f32 %v2556, %v268
    %v4661 = vmul.f32 %v2560, %v261
    %v4662 = vmul.f32 %v2564, %v262
    %v4663 = vmul.f32 %v2568, %v263
    %v4664 = vmul.f32 %v2572, %v264
    %v4665 = vmul.f32 %v2576, %v265
    %v4666 = vmul.f32 %v2580, %v266
    %v4667 = vmul.f32 %v2584, %v267
    %v4668 = vmul.f32 %v2588, %v268
    %v4669 = vmul.f32 %v2592, %v261
    %v4670 = vmul.f32 %v2596, %v262
    %v4671 = vmul.f32 %v2600, %v263
    %v4672 = vmul.f32 %v2604, %v264
    %v4673 = vmul.f32 %v2608, %v265
    %v4674 = vmul.f32 %v2612, %v266
    %v4675 = vmul.f32 %v2616, %v267
    %v4676 = vmul.f32 %v2620, %v268
    %v4677 = vmul.f32 %v2624, %v261
    %v4678 = vmul.f32 %v2628, %v262
    %v4679 = vmul.f32 %v2632, %v263
    %v4680 = vmul.f32 %v2636, %v264
    %v4681 = vmul.f32 %v2640, %v265
    %v4682 = vmul.f32 %v2644, %v266
    %v4683 = vmul.f32 %v2648, %v267
    %v4684 = vmul.f32 %v2652, %v268
    %v4685 = vmul.f32 %v2656, %v261
    %v4686 = vmul.f32 %v2660, %v262
    %v4687 = vmul.f32 %v2664, %v263
    %v4688 = vmul.f32 %v2668, %v264
    %v4689 = vmul.f32 %v2672, %v265
    %v4690 = vmul.f32 %v2676, %v266
    %v4691 = vmul.f32 %v2680, %v267
    %v4692 = vmul.f32 %v2684, %v268
    %v4693 = vmul.f32 %v2688, %v261
    %v4694 = vmul.f32 %v2692, %v262
    %v4695 = vmul.f32 %v2696, %v263
    %v4696 = vmul.f32 %v2700, %v264
    %v4697 = vmul.f32 %v2704, %v265
    %v4698 = vmul.f32 %v2708, %v266
    %v4699 = vmul.f32 %v2712, %v267
    %v4700 = vmul.f32 %v2716, %v268
    %v4701 = vmul.f32 %v2720, %v261
    %v4702 = vmul.f32 %v2724, %v262
    %v4703 = vmul.f32 %v2728, %v263
    %v4704 = vmul.f32 %v2732, %v264
    %v4705 = vmul.f32 %v2736, %v265
    %v4706 = vmul.f32 %v2740, %v266
    %v4707 = vmul.f32 %v2744, %v267
    %v4708 = vmul.f32 %v2748, %v268
    %v4709 = vmul.f32 %v2752, %v261
    %v4710 = vmul.f32 %v2756, %v262
    %v4711 = vmul.f32 %v2760, %v263
    %v4712 = vmul.f32 %v2764, %v264
    %v4713 = vmul.f32 %v2768, %v265
    %v4714 = vmul.f32 %v2772, %v266
    %v4715 = vmul.f32 %v2776, %v267
    %v4716 = vmul.f32 %v2780, %v268
    %v4717 = vmul.f32 %v2784, %v261
    %v4718 = vmul.f32 %v2788, %v262
    %v4719 = vmul.f32 %v2792, %v263
    %v4720 = vmul.f32 %v2796, %v264
    %v4721 = vmul.f32 %v2800, %v265
    %v4722 = vmul.f32 %v2804, %v266
    %v4723 = vmul.f32 %v2808, %v267
    %v4724 = vmul.f32 %v2812, %v268
    %v4725 = vmul.f32 %v2816, %v261
    %v4726 = vmul.f32 %v2820, %v262
    %v4727 = vmul.f32 %v2824, %v263
    %v4728 = vmul.f32 %v2828, %v264
    %v4729 = vmul.f32 %v2832, %v265
    %v4730 = vmul.f32 %v2836, %v266
    %v4731 = vmul.f32 %v2840, %v267
    %v4732 = vmul.f32 %v2844, %v268
    %v4733 = vmul.f32 %v2848, %v261
    %v4734 = vmul.f32 %v2852, %v262
    %v4735 = vmul.f32 %v2856, %v263
    %v4736 = vmul.f32 %v2860, %v264
    %v4737 = vmul.f32 %v2864, %v265
    %v4738 = vmul.f32 %v2868, %v266
    %v4739 = vmul.f32 %v2872, %v267
    %v4740 = vmul.f32 %v2876, %v268
    %v4741 = vmul.f32 %v2880, %v261
    %v4742 = vmul.f32 %v2884, %v262
    %v4743 = vmul.f32 %v2888, %v263
    %v4744 = vmul.f32 %v2892, %v264
    %v4745 = vmul.f32 %v2896, %v265
    %v4746 = vmul.f32 %v2900, %v266
    %v4747 = vmul.f32 %v2904, %v267
    %v4748 = vmul.f32 %v2908, %v268
    %v4749 = vmul.f32 %v2912, %v261
    %v4750 = vmul.f32 %v2916, %v262
    %v4751 = vmul.f32 %v2920, %v263
    %v4752 = vmul.f32 %v2924, %v264
    %v4753 = vmul.f32 %v2928, %v265
    %v4754 = vmul.f32 %v2932, %v266
    %v4755 = vmul.f32 %v2936, %v267
    %v4756 = vmul.f32 %v2940, %v268
    %v4757 = vmul.f32 %v2944, %v261
    %v4758 = vmul.f32 %v2948, %v262
    %v4759 = vmul.f32 %v2952, %v263
    %v4760 = vmul.f32 %v2956, %v264
    %v4761 = vmul.f32 %v2960, %v265
    %v4762 = vmul.f32 %v2964, %v266
    %v4763 = vmul.f32 %v2968, %v267
    %v4764 = vmul.f32 %v2972, %v268
    %v4765 = vmul.f32 %v2976, %v261
    %v4766 = vmul.f32 %v2980, %v262
    %v4767 = vmul.f32 %v2984, %v263
    %v4768 = vmul.f32 %v2988, %v264
    %v4769 = vmul.f32 %v2992, %v265
    %v4770 = vmul.f32 %v2996, %v266
    %v4771 = vmul.f32 %v3000, %v267
    %v4772 = vmul.f32 %v3004, %v268
    %v4773 = vmul.f32 %v3008, %v261
    %v4774 = vmul.f32 %v3012, %v262
    %v4775 = vmul.f32 %v3016, %v263
    %v4776 = vmul.f32 %v3020, %v264
    %v4777 = vmul.f32 %v3024, %v265
    %v4778 = vmul.f32 %v3028, %v266
    %v4779 = vmul.f32 %v3032, %v267
    %v4780 = vmul.f32 %v3036, %v268
    %v4781 = vmul.f32 %v3040, %v261
    %v4782 = vmul.f32 %v3044, %v262
    %v4783 = vmul.f32 %v3048, %v263
    %v4784 = vmul.f32 %v3052, %v264
    %v4785 = vmul.f32 %v3056, %v265
    %v4786 = vmul.f32 %v3060, %v266
    %v4787 = vmul.f32 %v3064, %v267
    %v4788 = vmul.f32 %v3068, %v268
    %v4789 = vmul.f32 %v3072, %v261
    %v4790 = vmul.f32 %v3076, %v262
    %v4791 = vmul.f32 %v3080, %v263
    %v4792 = vmul.f32 %v3084, %v264
    %v4793 = vmul.f32 %v3088, %v265
    %v4794 = vmul.f32 %v3092, %v266
    %v4795 = vmul.f32 %v3096, %v267
    %v4796 = vmul.f32 %v3100, %v268
    %v4797 = vmul.f32 %v3104, %v261
    %v4798 = vmul.f32 %v3108, %v262
    %v4799 = vmul.f32 %v3112, %v263
    %v4800 = vmul.f32 %v3116, %v264
    %v4801 = vmul.f32 %v3120, %v265
    %v4802 = vmul.f32 %v3124, %v266
    %v4803 = vmul.f32 %v3128, %v267
    %v4804 = vmul.f32 %v3132, %v268
    %v4805 = vmul.f32 %v3136, %v261
    %v4806 = vmul.f32 %v3140, %v262
    %v4807 = vmul.f32 %v3144, %v263
    %v4808 = vmul.f32 %v3148, %v264
    %v4809 = vmul.f32 %v3152, %v265
    %v4810 = vmul.f32 %v3156, %v266
    %v4811 = vmul.f32 %v3160, %v267
    %v4812 = vmul.f32 %v3164, %v268
    %v4813 = vmul.f32 %v3168, %v261
    %v4814 = vmul.f32 %v3172, %v262
    %v4815 = vmul.f32 %v3176, %v263
    %v4816 = vmul.f32 %v3180, %v264
    %v4817 = vmul.f32 %v3184, %v265
    %v4818 = vmul.f32 %v3188, %v266
    %v4819 = vmul.f32 %v3192, %v267
    %v4820 = vmul.f32 %v3196, %v268
    %v4821 = vmul.f32 %v3200, %v261
    %v4822 = vmul.f32 %v3204, %v262
    %v4823 = vmul.f32 %v3208, %v263
    %v4824 = vmul.f32 %v3212, %v264
    %v4825 = vmul.f32 %v3216, %v265
    %v4826 = vmul.f32 %v3220, %v266
    %v4827 = vmul.f32 %v3224, %v267
    %v4828 = vmul.f32 %v3228, %v268
    %v4829 = vmul.f32 %v3232, %v261
    %v4830 = vmul.f32 %v3236, %v262
    %v4831 = vmul.f32 %v3240, %v263
    %v4832 = vmul.f32 %v3244, %v264
    %v4833 = vmul.f32 %v3248, %v265
    %v4834 = vmul.f32 %v3252, %v266
    %v4835 = vmul.f32 %v3256, %v267
    %v4836 = vmul.f32 %v3260, %v268
    %v4837 = vmul.f32 %v3264, %v261
    %v4838 = vmul.f32 %v3268, %v262
    %v4839 = vmul.f32 %v3272, %v263
    %v4840 = vmul.f32 %v3276, %v264
    %v4841 = vmul.f32 %v3280, %v265
    %v4842 = vmul.f32 %v3284, %v266
    %v4843 = vmul.f32 %v3288, %v267
    %v4844 = vmul.f32 %v3292, %v268
    %v4845 = vmul.f32 %v3296, %v261
    %v4846 = vmul.f32 %v3300, %v262
    %v4847 = vmul.f32 %v3304, %v263
    %v4848 = vmul.f32 %v3308, %v264
    %v4849 = vmul.f32 %v3312, %v265
    %v4850 = vmul.f32 %v3316, %v266
    %v4851 = vmul.f32 %v3320, %v267
    %v4852 = vmul.f32 %v3324, %v268
    %v4853 = vmul.f32 %v3328, %v261
    %v4854 = vmul.f32 %v3332, %v262
    %v4855 = vmul.f32 %v3336, %v263
    %v4856 = vmul.f32 %v3340, %v264
    %v4857 = vmul.f32 %v3344, %v265
    %v4858 = vmul.f32 %v3348, %v266
    %v4859 = vmul.f32 %v3352, %v267
    %v4860 = vmul.f32 %v3356, %v268
    %v4861 = vmul.f32 %v3360, %v261
    %v4862 = vmul.f32 %v3364, %v262
    %v4863 = vmul.f32 %v3368, %v263
    %v4864 = vmul.f32 %v3372, %v264
    %v4865 = vmul.f32 %v3376, %v265
    %v4866 = vmul.f32 %v3380, %v266
    %v4867 = vmul.f32 %v3384, %v267
    %v4868 = vmul.f32 %v3388, %v268
    %v4869 = vmul.f32 %v3392, %v261
    %v4870 = vmul.f32 %v3396, %v262
    %v4871 = vmul.f32 %v3400, %v263
    %v4872 = vmul.f32 %v3404, %v264
    %v4873 = vmul.f32 %v3408, %v265
    %v4874 = vmul.f32 %v3412, %v266
    %v4875 = vmul.f32 %v3416, %v267
    %v4876 = vmul.f32 %v3420, %v268
    %v4877 = vmul.f32 %v3424, %v261
    %v4878 = vmul.f32 %v3428, %v262
    %v4879 = vmul.f32 %v3432, %v263
    %v4880 = vmul.f32 %v3436, %v264
    %v4881 = vmul.f32 %v3440, %v265
    %v4882 = vmul.f32 %v3444, %v266
    %v4883 = vmul.f32 %v3448, %v267
    %v4884 = vmul.f32 %v3452, %v268
    %v4885 = vmul.f32 %v3456, %v261
    %v4886 = vmul.f32 %v3460, %v262
    %v4887 = vmul.f32 %v3464, %v263
    %v4888 = vmul.f32 %v3468, %v264
    %v4889 = vmul.f32 %v3472, %v265
    %v4890 = vmul.f32 %v3476, %v266
    %v4891 = vmul.f32 %v3480, %v267
    %v4892 = vmul.f32 %v3484, %v268
    %v4893 = vmul.f32 %v3488, %v261
    %v4894 = vmul.f32 %v3492, %v262
    %v4895 = vmul.f32 %v3496, %v263
    %v4896 = vmul.f32 %v3500, %v264
    %v4897 = vmul.f32 %v3504, %v265
    %v4898 = vmul.f32 %v3508, %v266
    %v4899 = vmul.f32 %v3512, %v267
    %v4900 = vmul.f32 %v3516, %v268
    %v4901 = vmul.f32 %v3520, %v261
    %v4902 = vmul.f32 %v3524, %v262
    %v4903 = vmul.f32 %v3528, %v263
    %v4904 = vmul.f32 %v3532, %v264
    %v4905 = vmul.f32 %v3536, %v265
    %v4906 = vmul.f32 %v3540, %v266
    %v4907 = vmul.f32 %v3544, %v267
    %v4908 = vmul.f32 %v3548, %v268
    %v4909 = vmul.f32 %v3552, %v261
    %v4910 = vmul.f32 %v3556, %v262
    %v4911 = vmul.f32 %v3560, %v263
    %v4912 = vmul.f32 %v3564, %v264
    %v4913 = vmul.f32 %v3568, %v265
    %v4914 = vmul.f32 %v3572, %v266
    %v4915 = vmul.f32 %v3576, %v267
    %v4916 = vmul.f32 %v3580, %v268
    %v4917 = vmul.f32 %v3584, %v261
    %v4918 = vmul.f32 %v3588, %v262
    %v4919 = vmul.f32 %v3592, %v263
    %v4920 = vmul.f32 %v3596, %v264
    %v4921 = vmul.f32 %v3600, %v265
    %v4922 = vmul.f32 %v3604, %v266
    %v4923 = vmul.f32 %v3608, %v267
    %v4924 = vmul.f32 %v3612, %v268
    %v4925 = vmul.f32 %v3616, %v261
    %v4926 = vmul.f32 %v3620, %v262
    %v4927 = vmul.f32 %v3624, %v263
    %v4928 = vmul.f32 %v3628, %v264
    %v4929 = vmul.f32 %v3632, %v265
    %v4930 = vmul.f32 %v3636, %v266
    %v4931 = vmul.f32 %v3640, %v267
    %v4932 = vmul.f32 %v3644, %v268
    %v4933 = vmul.f32 %v3648, %v261
    %v4934 = vmul.f32 %v3652, %v262
    %v4935 = vmul.f32 %v3656, %v263
    %v4936 = vmul.f32 %v3660, %v264
    %v4937 = vmul.f32 %v3664, %v265
    %v4938 = vmul.f32 %v3668, %v266
    %v4939 = vmul.f32 %v3672, %v267
    %v4940 = vmul.f32 %v3676, %v268
    %v4941 = vmul.f32 %v3680, %v261
    %v4942 = vmul.f32 %v3684, %v262
    %v4943 = vmul.f32 %v3688, %v263
    %v4944 = vmul.f32 %v3692, %v264
    %v4945 = vmul.f32 %v3696, %v265
    %v4946 = vmul.f32 %v3700, %v266
    %v4947 = vmul.f32 %v3704, %v267
    %v4948 = vmul.f32 %v3708, %v268
    %v4949 = vmul.f32 %v3712, %v261
    %v4950 = vmul.f32 %v3716, %v262
    %v4951 = vmul.f32 %v3720, %v263
    %v4952 = vmul.f32 %v3724, %v264
    %v4953 = vmul.f32 %v3728, %v265
    %v4954 = vmul.f32 %v3732, %v266
    %v4955 = vmul.f32 %v3736, %v267
    %v4956 = vmul.f32 %v3740, %v268
    %v4957 = vmul.f32 %v3744, %v261
    %v4958 = vmul.f32 %v3748, %v262
    %v4959 = vmul.f32 %v3752, %v263
    %v4960 = vmul.f32 %v3756, %v264
    %v4961 = vmul.f32 %v3760, %v265
    %v4962 = vmul.f32 %v3764, %v266
    %v4963 = vmul.f32 %v3768, %v267
    %v4964 = vmul.f32 %v3772, %v268
    %v4965 = vmul.f32 %v3776, %v261
    %v4966 = vmul.f32 %v3780, %v262
    %v4967 = vmul.f32 %v3784, %v263
    %v4968 = vmul.f32 %v3788, %v264
    %v4969 = vmul.f32 %v3792, %v265
    %v4970 = vmul.f32 %v3796, %v266
    %v4971 = vmul.f32 %v3800, %v267
    %v4972 = vmul.f32 %v3804, %v268
    %v4973 = vmul.f32 %v3808, %v261
    %v4974 = vmul.f32 %v3812, %v262
    %v4975 = vmul.f32 %v3816, %v263
    %v4976 = vmul.f32 %v3820, %v264
    %v4977 = vmul.f32 %v3824, %v265
    %v4978 = vmul.f32 %v3828, %v266
    %v4979 = vmul.f32 %v3832, %v267
    %v4980 = vmul.f32 %v3836, %v268
    %v4981 = vmul.f32 %v3840, %v261
    %v4982 = vmul.f32 %v3844, %v262
    %v4983 = vmul.f32 %v3848, %v263
    %v4984 = vmul.f32 %v3852, %v264
    %v4985 = vmul.f32 %v3856, %v265
    %v4986 = vmul.f32 %v3860, %v266
    %v4987 = vmul.f32 %v3864, %v267
    %v4988 = vmul.f32 %v3868, %v268
    %v4989 = vmul.f32 %v3872, %v261
    %v4990 = vmul.f32 %v3876, %v262
    %v4991 = vmul.f32 %v3880, %v263
    %v4992 = vmul.f32 %v3884, %v264
    %v4993 = vmul.f32 %v3888, %v265
    %v4994 = vmul.f32 %v3892, %v266
    %v4995 = vmul.f32 %v3896, %v267
    %v4996 = vmul.f32 %v3900, %v268
    %v4997 = vmul.f32 %v3904, %v261
    %v4998 = vmul.f32 %v3908, %v262
    %v4999 = vmul.f32 %v3912, %v263
    %v5000 = vmul.f32 %v3916, %v264
    %v5001 = vmul.f32 %v3920, %v265
    %v5002 = vmul.f32 %v3924, %v266
    %v5003 = vmul.f32 %v3928, %v267
    %v5004 = vmul.f32 %v3932, %v268
    %v5005 = vmul.f32 %v3936, %v261
    %v5006 = vmul.f32 %v3940, %v262
    %v5007 = vmul.f32 %v3944, %v263
    %v5008 = vmul.f32 %v3948, %v264
    %v5009 = vmul.f32 %v3952, %v265
    %v5010 = vmul.f32 %v3956, %v266
    %v5011 = vmul.f32 %v3960, %v267
    %v5012 = vmul.f32 %v3964, %v268
    %v5013 = vmul.f32 %v3968, %v261
    %v5014 = vmul.f32 %v3972, %v262
    %v5015 = vmul.f32 %v3976, %v263
    %v5016 = vmul.f32 %v3980, %v264
    %v5017 = vmul.f32 %v3984, %v265
    %v5018 = vmul.f32 %v3988, %v266
    %v5019 = vmul.f32 %v3992, %v267
    %v5020 = vmul.f32 %v3996, %v268
    %v5021 = vld [vmem:[#allocation5] sm:$0xff]
    %v5022 = vld [vmem:[#allocation5 + $0x8] sm:$0xff]
    %v5023 = vld [vmem:[#allocation5 + $0x10] sm:$0xff]
    %v5024 = vld [vmem:[#allocation5 + $0x18] sm:$0xff]
    %5025 = vmatprep.subr.mxu0 %v4510
    %5026 = vmatpush1.msra.mxu0 %v4509
    %5027 = vmatprep.subr.mxu0 %v4518
    %5028 = vmatpush1.msra.mxu0 %v4517
    %5029 = vmatprep.subr.mxu0 %v4526
    %5030 = vmatpush1.msra.mxu0 %v4525
    %5031 = vmatprep.subr.mxu0 %v4534
    %5032 = vmatpush1.msra.mxu0 %v4533
    %5033 = vmatprep.subr.mxu0 %v4542
    %5034 = vmatpush1.msra.mxu0 %v4541
    %5035 = vmatprep.subr.mxu0 %v4550
    %5036 = vmatpush1.msra.mxu0 %v4549
    %5037 = vmatprep.subr.mxu0 %v4558
    %5038 = vmatpush1.msra.mxu0 %v4557
    %5039 = vmatprep.subr.mxu0 %v4566
    %5040 = vmatpush1.msra.mxu0 %v4565
    %5041 = vmatprep.subr.mxu0 %v4574
    %5042 = vmatpush1.msra.mxu0 %v4573
    %5043 = vmatprep.subr.mxu0 %v4582
    %5044 = vmatpush1.msra.mxu0 %v4581
    %5045 = vmatprep.subr.mxu0 %v4590
    %5046 = vmatpush1.msra.mxu0 %v4589
    %5047 = vmatprep.subr.mxu0 %v4598
    %5048 = vmatpush1.msra.mxu0 %v4597
    %5049 = vmatprep.subr.mxu0 %v4606
    %5050 = vmatpush1.msra.mxu0 %v4605
    %5051 = vmatprep.subr.mxu0 %v4614
    %5052 = vmatpush1.msra.mxu0 %v4613
    %5053 = vmatprep.subr.mxu0 %v4622
    %5054 = vmatpush1.msra.mxu0 %v4621
    %5055 = vmatprep.subr.mxu0 %v4630
    %5056 = vmatpush1.msra.mxu0 %v4629
    %5057 = vmatprep.subr.mxu0 %v4638
    %5058 = vmatpush1.msra.mxu0 %v4637
    %5059 = vmatprep.subr.mxu0 %v4646
    %5060 = vmatpush1.msra.mxu0 %v4645
    %5061 = vmatprep.subr.mxu0 %v4654
    %5062 = vmatpush1.msra.mxu0 %v4653
    %5063 = vmatprep.subr.mxu0 %v4662
    %5064 = vmatpush1.msra.mxu0 %v4661
    %5065 = vmatprep.subr.mxu0 %v4670
    %5066 = vmatpush1.msra.mxu0 %v4669
    %5067 = vmatprep.subr.mxu0 %v4678
    %5068 = vmatpush1.msra.mxu0 %v4677
    %5069 = vmatprep.subr.mxu0 %v4686
    %5070 = vmatpush1.msra.mxu0 %v4685
    %5071 = vmatprep.subr.mxu0 %v4694
    %5072 = vmatpush1.msra.mxu0 %v4693
    %5073 = vmatprep.subr.mxu0 %v4702
    %5074 = vmatpush1.msra.mxu0 %v4701
    %5075 = vmatprep.subr.mxu0 %v4710
    %5076 = vmatpush1.msra.mxu0 %v4709
    %5077 = vmatprep.subr.mxu0 %v4718
    %5078 = vmatpush1.msra.mxu0 %v4717
    %5079 = vmatprep.subr.mxu0 %v4726
    %5080 = vmatpush1.msra.mxu0 %v4725
    %5081 = vmatprep.subr.mxu0 %v4734
    %5082 = vmatpush1.msra.mxu0 %v4733
    %5083 = vmatprep.subr.mxu0 %v4742
    %5084 = vmatpush1.msra.mxu0 %v4741
    %5085 = vmatprep.subr.mxu0 %v4750
    %5086 = vmatpush1.msra.mxu0 %v4749
    %5087 = vmatprep.subr.mxu0 %v4758
    %5088 = vmatpush1.msra.mxu0 %v4757
    %5089 = vmatprep.mubr.f32.mxu0 %v5022
    %5090 = vmatmul.mubr.f32.gmra.mrb[0].mxu0 %v5021
    %v5091 = vpop.f32.mrb[0].mxu0
    %v5092 = vadd.f32 0.0, %v5091
    %v5093 = vpop.f32.mrb[0].mxu0
    %v5094 = vadd.f32 0.0, %v5093
    %5095 = vdwg.mxu0
    %5096 = vmatprep.subr.mxu0 %v4766
    %5097 = vmatpush1.msra.mxu0 %v4765
    %5098 = vmatprep.subr.mxu0 %v4774
    %5099 = vmatpush1.msra.mxu0 %v4773
    %5100 = vmatprep.subr.mxu0 %v4782
    %5101 = vmatpush1.msra.mxu0 %v4781
    %5102 = vmatprep.subr.mxu0 %v4790
    %5103 = vmatpush1.msra.mxu0 %v4789
    %5104 = vmatprep.subr.mxu0 %v4798
    %5105 = vmatpush1.msra.mxu0 %v4797
    %5106 = vmatprep.subr.mxu0 %v4806
    %5107 = vmatpush1.msra.mxu0 %v4805
    %5108 = vmatprep.subr.mxu0 %v4814
    %5109 = vmatpush1.msra.mxu0 %v4813
    %5110 = vmatprep.subr.mxu0 %v4822
    %5111 = vmatpush1.msra.mxu0 %v4821
    %5112 = vmatprep.subr.mxu0 %v4830
    %5113 = vmatpush1.msra.mxu0 %v4829
    %5114 = vmatprep.subr.mxu0 %v4838
    %5115 = vmatpush1.msra.mxu0 %v4837
    %5116 = vmatprep.subr.mxu0 %v4846
    %5117 = vmatpush1.msra.mxu0 %v4845
    %5118 = vmatprep.subr.mxu0 %v4854
    %5119 = vmatpush1.msra.mxu0 %v4853
    %5120 = vmatprep.subr.mxu0 %v4862
    %5121 = vmatpush1.msra.mxu0 %v4861
    %5122 = vmatprep.subr.mxu0 %v4870
    %5123 = vmatpush1.msra.mxu0 %v4869
    %5124 = vmatprep.subr.mxu0 %v4878
    %5125 = vmatpush1.msra.mxu0 %v4877
    %5126 = vmatprep.subr.mxu0 %v4886
    %5127 = vmatpush1.msra.mxu0 %v4885
    %5128 = vmatprep.subr.mxu0 %v4894
    %5129 = vmatpush1.msra.mxu0 %v4893
    %5130 = vmatprep.subr.mxu0 %v4902
    %5131 = vmatpush1.msra.mxu0 %v4901
    %5132 = vmatprep.subr.mxu0 %v4910
    %5133 = vmatpush1.msra.mxu0 %v4909
    %5134 = vmatprep.subr.mxu0 %v4918
    %5135 = vmatpush1.msra.mxu0 %v4917
    %5136 = vmatprep.subr.mxu0 %v4926
    %5137 = vmatpush1.msra.mxu0 %v4925
    %5138 = vmatprep.subr.mxu0 %v4934
    %5139 = vmatpush1.msra.mxu0 %v4933
    %5140 = vmatprep.subr.mxu0 %v4942
    %5141 = vmatpush1.msra.mxu0 %v4941
    %5142 = vmatprep.subr.mxu0 %v4950
    %5143 = vmatpush1.msra.mxu0 %v4949
    %5144 = vmatprep.subr.mxu0 %v4958
    %5145 = vmatpush1.msra.mxu0 %v4957
    %5146 = vmatprep.subr.mxu0 %v4966
    %5147 = vmatpush1.msra.mxu0 %v4965
    %5148 = vmatprep.subr.mxu0 %v4974
    %5149 = vmatpush1.msra.mxu0 %v4973
    %5150 = vmatprep.subr.mxu0 %v4982
    %5151 = vmatpush1.msra.mxu0 %v4981
    %5152 = vmatprep.subr.mxu0 %v4990
    %5153 = vmatpush1.msra.mxu0 %v4989
    %5154 = vmatprep.subr.mxu0 %v4998
    %5155 = vmatpush1.msra.mxu0 %v4997
    %5156 = vmatprep.subr.mxu0 %v5006
    %5157 = vmatpush1.msra.mxu0 %v5005
    %5158 = vmatprep.subr.mxu0 %v5014
    %5159 = vmatpush1.msra.mxu0 %v5013
    %5160 = vmatprep.mubr.f32.mxu0 %v5024
    %5161 = vmatmul.mubr.f32.gmra.mrb[0].mxu0 %v5023
    %v5162 = vpop.f32.mrb[0].mxu0
    %v5163 = vadd.f32 %v5092, %v5162
    %v5164 = vpop.f32.mrb[0].mxu0
    %v5165 = vadd.f32 %v5094, %v5164
    %5166 = vdwg.mxu0
    %5167 = vmatprep.subr.mxu0 %v4512
    %5168 = vmatpush1.msra.mxu0 %v4511
    %5169 = vmatprep.subr.mxu0 %v4520
    %5170 = vmatpush1.msra.mxu0 %v4519
    %5171 = vmatprep.subr.mxu0 %v4528
    %5172 = vmatpush1.msra.mxu0 %v4527
    %5173 = vmatprep.subr.mxu0 %v4536
    %5174 = vmatpush1.msra.mxu0 %v4535
    %5175 = vmatprep.subr.mxu0 %v4544
    %5176 = vmatpush1.msra.mxu0 %v4543
    %5177 = vmatprep.subr.mxu0 %v4552
    %5178 = vmatpush1.msra.mxu0 %v4551
    %5179 = vmatprep.subr.mxu0 %v4560
    %5180 = vmatpush1.msra.mxu0 %v4559
    %5181 = vmatprep.subr.mxu0 %v4568
    %5182 = vmatpush1.msra.mxu0 %v4567
    %5183 = vmatprep.subr.mxu0 %v4576
    %5184 = vmatpush1.msra.mxu0 %v4575
    %5185 = vmatprep.subr.mxu0 %v4584
    %5186 = vmatpush1.msra.mxu0 %v4583
    %5187 = vmatprep.subr.mxu0 %v4592
    %5188 = vmatpush1.msra.mxu0 %v4591
    %5189 = vmatprep.subr.mxu0 %v4600
    %5190 = vmatpush1.msra.mxu0 %v4599
    %5191 = vmatprep.subr.mxu0 %v4608
    %5192 = vmatpush1.msra.mxu0 %v4607
    %5193 = vmatprep.subr.mxu0 %v4616
    %5194 = vmatpush1.msra.mxu0 %v4615
    %5195 = vmatprep.subr.mxu0 %v4624
    %5196 = vmatpush1.msra.mxu0 %v4623
    %5197 = vmatprep.subr.mxu0 %v4632
    %5198 = vmatpush1.msra.mxu0 %v4631
    %5199 = vmatprep.subr.mxu0 %v4640
    %5200 = vmatpush1.msra.mxu0 %v4639
    %5201 = vmatprep.subr.mxu0 %v4648
    %5202 = vmatpush1.msra.mxu0 %v4647
    %5203 = vmatprep.subr.mxu0 %v4656
    %5204 = vmatpush1.msra.mxu0 %v4655
    %5205 = vmatprep.subr.mxu0 %v4664
    %5206 = vmatpush1.msra.mxu0 %v4663
    %5207 = vmatprep.subr.mxu0 %v4672
    %5208 = vmatpush1.msra.mxu0 %v4671
    %5209 = vmatprep.subr.mxu0 %v4680
    %5210 = vmatpush1.msra.mxu0 %v4679
    %5211 = vmatprep.subr.mxu0 %v4688
    %5212 = vmatpush1.msra.mxu0 %v4687
    %5213 = vmatprep.subr.mxu0 %v4696
    %5214 = vmatpush1.msra.mxu0 %v4695
    %5215 = vmatprep.subr.mxu0 %v4704
    %5216 = vmatpush1.msra.mxu0 %v4703
    %5217 = vmatprep.subr.mxu0 %v4712
    %5218 = vmatpush1.msra.mxu0 %v4711
    %5219 = vmatprep.subr.mxu0 %v4720
    %5220 = vmatpush1.msra.mxu0 %v4719
    %5221 = vmatprep.subr.mxu0 %v4728
    %5222 = vmatpush1.msra.mxu0 %v4727
    %5223 = vmatprep.subr.mxu0 %v4736
    %5224 = vmatpush1.msra.mxu0 %v4735
    %5225 = vmatprep.subr.mxu0 %v4744
    %5226 = vmatpush1.msra.mxu0 %v4743
    %5227 = vmatprep.subr.mxu0 %v4752
    %5228 = vmatpush1.msra.mxu0 %v4751
    %5229 = vmatprep.subr.mxu0 %v4760
    %5230 = vmatpush1.msra.mxu0 %v4759
    %5231 = vmatprep.mubr.f32.mxu0 %v5022
    %5232 = vmatmul.mubr.f32.gmra.mrb[0].mxu0 %v5021
    %v5233 = vpop.f32.mrb[0].mxu0
    %v5234 = vadd.f32 0.0, %v5233
    %v5235 = vpop.f32.mrb[0].mxu0
    %v5236 = vadd.f32 0.0, %v5235
    %5237 = vdwg.mxu0
    %5238 = vmatprep.subr.mxu0 %v4768
    %5239 = vmatpush1.msra.mxu0 %v4767
    %5240 = vmatprep.subr.mxu0 %v4776
    %5241 = vmatpush1.msra.mxu0 %v4775
    %5242 = vmatprep.subr.mxu0 %v4784
    %5243 = vmatpush1.msra.mxu0 %v4783
    %5244 = vmatprep.subr.mxu0 %v4792
    %5245 = vmatpush1.msra.mxu0 %v4791
    %5246 = vmatprep.subr.mxu0 %v4800
    %5247 = vmatpush1.msra.mxu0 %v4799
    %5248 = vmatprep.subr.mxu0 %v4808
    %5249 = vmatpush1.msra.mxu0 %v4807
    %5250 = vmatprep.subr.mxu0 %v4816
    %5251 = vmatpush1.msra.mxu0 %v4815
    %5252 = vmatprep.subr.mxu0 %v4824
    %5253 = vmatpush1.msra.mxu0 %v4823
    %5254 = vmatprep.subr.mxu0 %v4832
    %5255 = vmatpush1.msra.mxu0 %v4831
    %5256 = vmatprep.subr.mxu0 %v4840
    %5257 = vmatpush1.msra.mxu0 %v4839
    %5258 = vmatprep.subr.mxu0 %v4848
    %5259 = vmatpush1.msra.mxu0 %v4847
    %5260 = vmatprep.subr.mxu0 %v4856
    %5261 = vmatpush1.msra.mxu0 %v4855
    %5262 = vmatprep.subr.mxu0 %v4864
    %5263 = vmatpush1.msra.mxu0 %v4863
    %5264 = vmatprep.subr.mxu0 %v4872
    %5265 = vmatpush1.msra.mxu0 %v4871
    %5266 = vmatprep.subr.mxu0 %v4880
    %5267 = vmatpush1.msra.mxu0 %v4879
    %5268 = vmatprep.subr.mxu0 %v4888
    %5269 = vmatpush1.msra.mxu0 %v4887
    %5270 = vmatprep.subr.mxu0 %v4896
    %5271 = vmatpush1.msra.mxu0 %v4895
    %5272 = vmatprep.subr.mxu0 %v4904
    %5273 = vmatpush1.msra.mxu0 %v4903
    %5274 = vmatprep.subr.mxu0 %v4912
    %5275 = vmatpush1.msra.mxu0 %v4911
    %5276 = vmatprep.subr.mxu0 %v4920
    %5277 = vmatpush1.msra.mxu0 %v4919
    %5278 = vmatprep.subr.mxu0 %v4928
    %5279 = vmatpush1.msra.mxu0 %v4927
    %5280 = vmatprep.subr.mxu0 %v4936
    %5281 = vmatpush1.msra.mxu0 %v4935
    %5282 = vmatprep.subr.mxu0 %v4944
    %5283 = vmatpush1.msra.mxu0 %v4943
    %5284 = vmatprep.subr.mxu0 %v4952
    %5285 = vmatpush1.msra.mxu0 %v4951
    %5286 = vmatprep.subr.mxu0 %v4960
    %5287 = vmatpush1.msra.mxu0 %v4959
    %5288 = vmatprep.subr.mxu0 %v4968
    %5289 = vmatpush1.msra.mxu0 %v4967
    %5290 = vmatprep.subr.mxu0 %v4976
    %5291 = vmatpush1.msra.mxu0 %v4975
    %5292 = vmatprep.subr.mxu0 %v4984
    %5293 = vmatpush1.msra.mxu0 %v4983
    %5294 = vmatprep.subr.mxu0 %v4992
    %5295 = vmatpush1.msra.mxu0 %v4991
    %5296 = vmatprep.subr.mxu0 %v5000
    %5297 = vmatpush1.msra.mxu0 %v4999
    %5298 = vmatprep.subr.mxu0 %v5008
    %5299 = vmatpush1.msra.mxu0 %v5007
    %5300 = vmatprep.subr.mxu0 %v5016
    %5301 = vmatpush1.msra.mxu0 %v5015
    %5302 = vmatprep.mubr.f32.mxu0 %v5024
    %5303 = vmatmul.mubr.f32.gmra.mrb[0].mxu0 %v5023
    %v5304 = vpop.f32.mrb[0].mxu0
    %v5305 = vadd.f32 %v5234, %v5304
    %v5306 = vpop.f32.mrb[0].mxu0
    %v5307 = vadd.f32 %v5236, %v5306
    %5308 = vdwg.mxu0
    %5309 = vmatprep.subr.mxu0 %v4514
    %5310 = vmatpush1.msra.mxu0 %v4513
    %5311 = vmatprep.subr.mxu0 %v4522
    %5312 = vmatpush1.msra.mxu0 %v4521
    %5313 = vmatprep.subr.mxu0 %v4530
    %5314 = vmatpush1.msra.mxu0 %v4529
    %5315 = vmatprep.subr.mxu0 %v4538
    %5316 = vmatpush1.msra.mxu0 %v4537
    %5317 = vmatprep.subr.mxu0 %v4546
    %5318 = vmatpush1.msra.mxu0 %v4545
    %5319 = vmatprep.subr.mxu0 %v4554
    %5320 = vmatpush1.msra.mxu0 %v4553
    %5321 = vmatprep.subr.mxu0 %v4562
    %5322 = vmatpush1.msra.mxu0 %v4561
    %5323 = vmatprep.subr.mxu0 %v4570
    %5324 = vmatpush1.msra.mxu0 %v4569
    %5325 = vmatprep.subr.mxu0 %v4578
    %5326 = vmatpush1.msra.mxu0 %v4577
    %5327 = vmatprep.subr.mxu0 %v4586
    %5328 = vmatpush1.msra.mxu0 %v4585
    %5329 = vmatprep.subr.mxu0 %v4594
    %5330 = vmatpush1.msra.mxu0 %v4593
    %5331 = vmatprep.subr.mxu0 %v4602
    %5332 = vmatpush1.msra.mxu0 %v4601
    %5333 = vmatprep.subr.mxu0 %v4610
    %5334 = vmatpush1.msra.mxu0 %v4609
    %5335 = vmatprep.subr.mxu0 %v4618
    %5336 = vmatpush1.msra.mxu0 %v4617
    %5337 = vmatprep.subr.mxu0 %v4626
    %5338 = vmatpush1.msra.mxu0 %v4625
    %5339 = vmatprep.subr.mxu0 %v4634
    %5340 = vmatpush1.msra.mxu0 %v4633
    %5341 = vmatprep.subr.mxu0 %v4642
    %5342 = vmatpush1.msra.mxu0 %v4641
    %5343 = vmatprep.subr.mxu0 %v4650
    %5344 = vmatpush1.msra.mxu0 %v4649
    %5345 = vmatprep.subr.mxu0 %v4658
    %5346 = vmatpush1.msra.mxu0 %v4657
    %5347 = vmatprep.subr.mxu0 %v4666
    %5348 = vmatpush1.msra.mxu0 %v4665
    %5349 = vmatprep.subr.mxu0 %v4674
    %5350 = vmatpush1.msra.mxu0 %v4673
    %5351 = vmatprep.subr.mxu0 %v4682
    %5352 = vmatpush1.msra.mxu0 %v4681
    %5353 = vmatprep.subr.mxu0 %v4690
    %5354 = vmatpush1.msra.mxu0 %v4689
    %5355 = vmatprep.subr.mxu0 %v4698
    %5356 = vmatpush1.msra.mxu0 %v4697
    %5357 = vmatprep.subr.mxu0 %v4706
    %5358 = vmatpush1.msra.mxu0 %v4705
    %5359 = vmatprep.subr.mxu0 %v4714
    %5360 = vmatpush1.msra.mxu0 %v4713
    %5361 = vmatprep.subr.mxu0 %v4722
    %5362 = vmatpush1.msra.mxu0 %v4721
    %5363 = vmatprep.subr.mxu0 %v4730
    %5364 = vmatpush1.msra.mxu0 %v4729
    %5365 = vmatprep.subr.mxu0 %v4738
    %5366 = vmatpush1.msra.mxu0 %v4737
    %5367 = vmatprep.subr.mxu0 %v4746
    %5368 = vmatpush1.msra.mxu0 %v4745
    %5369 = vmatprep.subr.mxu0 %v4754
    %5370 = vmatpush1.msra.mxu0 %v4753
    %5371 = vmatprep.subr.mxu0 %v4762
    %5372 = vmatpush1.msra.mxu0 %v4761
    %5373 = vmatprep.mubr.f32.mxu0 %v5022
    %5374 = vmatmul.mubr.f32.gmra.mrb[0].mxu0 %v5021
    %v5375 = vpop.f32.mrb[0].mxu0
    %v5376 = vadd.f32 0.0, %v5375
    %v5377 = vpop.f32.mrb[0].mxu0
    %v5378 = vadd.f32 0.0, %v5377
    %5379 = vdwg.mxu0
    %5380 = vmatprep.subr.mxu0 %v4770
    %5381 = vmatpush1.msra.mxu0 %v4769
    %5382 = vmatprep.subr.mxu0 %v4778
    %5383 = vmatpush1.msra.mxu0 %v4777
    %5384 = vmatprep.subr.mxu0 %v4786
    %5385 = vmatpush1.msra.mxu0 %v4785
    %5386 = vmatprep.subr.mxu0 %v4794
    %5387 = vmatpush1.msra.mxu0 %v4793
    %5388 = vmatprep.subr.mxu0 %v4802
    %5389 = vmatpush1.msra.mxu0 %v4801
    %5390 = vmatprep.subr.mxu0 %v4810
    %5391 = vmatpush1.msra.mxu0 %v4809
    %5392 = vmatprep.subr.mxu0 %v4818
    %5393 = vmatpush1.msra.mxu0 %v4817
    %5394 = vmatprep.subr.mxu0 %v4826
    %5395 = vmatpush1.msra.mxu0 %v4825
    %5396 = vmatprep.subr.mxu0 %v4834
    %5397 = vmatpush1.msra.mxu0 %v4833
    %5398 = vmatprep.subr.mxu0 %v4842
    %5399 = vmatpush1.msra.mxu0 %v4841
    %5400 = vmatprep.subr.mxu0 %v4850
    %5401 = vmatpush1.msra.mxu0 %v4849
    %5402 = vmatprep.subr.mxu0 %v4858
    %5403 = vmatpush1.msra.mxu0 %v4857
    %5404 = vmatprep.subr.mxu0 %v4866
    %5405 = vmatpush1.msra.mxu0 %v4865
    %5406 = vmatprep.subr.mxu0 %v4874
    %5407 = vmatpush1.msra.mxu0 %v4873
    %5408 = vmatprep.subr.mxu0 %v4882
    %5409 = vmatpush1.msra.mxu0 %v4881
    %5410 = vmatprep.subr.mxu0 %v4890
    %5411 = vmatpush1.msra.mxu0 %v4889
    %5412 = vmatprep.subr.mxu0 %v4898
    %5413 = vmatpush1.msra.mxu0 %v4897
    %5414 = vmatprep.subr.mxu0 %v4906
    %5415 = vmatpush1.msra.mxu0 %v4905
    %5416 = vmatprep.subr.mxu0 %v4914
    %5417 = vmatpush1.msra.mxu0 %v4913
    %5418 = vmatprep.subr.mxu0 %v4922
    %5419 = vmatpush1.msra.mxu0 %v4921
    %5420 = vmatprep.subr.mxu0 %v4930
    %5421 = vmatpush1.msra.mxu0 %v4929
    %5422 = vmatprep.subr.mxu0 %v4938
    %5423 = vmatpush1.msra.mxu0 %v4937
    %5424 = vmatprep.subr.mxu0 %v4946
    %5425 = vmatpush1.msra.mxu0 %v4945
    %5426 = vmatprep.subr.mxu0 %v4954
    %5427 = vmatpush1.msra.mxu0 %v4953
    %5428 = vmatprep.subr.mxu0 %v4962
    %5429 = vmatpush1.msra.mxu0 %v4961
    %5430 = vmatprep.subr.mxu0 %v4970
    %5431 = vmatpush1.msra.mxu0 %v4969
    %5432 = vmatprep.subr.mxu0 %v4978
    %5433 = vmatpush1.msra.mxu0 %v4977
    %5434 = vmatprep.subr.mxu0 %v4986
    %5435 = vmatpush1.msra.mxu0 %v4985
    %5436 = vmatprep.subr.mxu0 %v4994
    %5437 = vmatpush1.msra.mxu0 %v4993
    %5438 = vmatprep.subr.mxu0 %v5002
    %5439 = vmatpush1.msra.mxu0 %v5001
    %5440 = vmatprep.subr.mxu0 %v5010
    %5441 = vmatpush1.msra.mxu0 %v5009
    %5442 = vmatprep.subr.mxu0 %v5018
    %5443 = vmatpush1.msra.mxu0 %v5017
    %5444 = vmatprep.mubr.f32.mxu0 %v5024
    %5445 = vmatmul.mubr.f32.gmra.mrb[0].mxu0 %v5023
    %v5446 = vpop.f32.mrb[0].mxu0
    %v5447 = vadd.f32 %v5376, %v5446
    %v5448 = vpop.f32.mrb[0].mxu0
    %v5449 = vadd.f32 %v5378, %v5448
    %5450 = vdwg.mxu0
    %5451 = vmatprep.subr.mxu0 %v4516
    %5452 = vmatpush1.msra.mxu0 %v4515
    %5453 = vmatprep.subr.mxu0 %v4524
    %5454 = vmatpush1.msra.mxu0 %v4523
    %5455 = vmatprep.subr.mxu0 %v4532
    %5456 = vmatpush1.msra.mxu0 %v4531
    %5457 = vmatprep.subr.mxu0 %v4540
    %5458 = vmatpush1.msra.mxu0 %v4539
    %5459 = vmatprep.subr.mxu0 %v4548
    %5460 = vmatpush1.msra.mxu0 %v4547
    %5461 = vmatprep.subr.mxu0 %v4556
    %5462 = vmatpush1.msra.mxu0 %v4555
    %5463 = vmatprep.subr.mxu0 %v4564
    %5464 = vmatpush1.msra.mxu0 %v4563
    %5465 = vmatprep.subr.mxu0 %v4572
    %5466 = vmatpush1.msra.mxu0 %v4571
    %5467 = vmatprep.subr.mxu0 %v4580
    %5468 = vmatpush1.msra.mxu0 %v4579
    %5469 = vmatprep.subr.mxu0 %v4588
    %5470 = vmatpush1.msra.mxu0 %v4587
    %5471 = vmatprep.subr.mxu0 %v4596
    %5472 = vmatpush1.msra.mxu0 %v4595
    %5473 = vmatprep.subr.mxu0 %v4604
    %5474 = vmatpush1.msra.mxu0 %v4603
    %5475 = vmatprep.subr.mxu0 %v4612
    %5476 = vmatpush1.msra.mxu0 %v4611
    %5477 = vmatprep.subr.mxu0 %v4620
    %5478 = vmatpush1.msra.mxu0 %v4619
    %5479 = vmatprep.subr.mxu0 %v4628
    %5480 = vmatpush1.msra.mxu0 %v4627
    %5481 = vmatprep.subr.mxu0 %v4636
    %5482 = vmatpush1.msra.mxu0 %v4635
    %5483 = vmatprep.subr.mxu0 %v4644
    %5484 = vmatpush1.msra.mxu0 %v4643
    %5485 = vmatprep.subr.mxu0 %v4652
    %5486 = vmatpush1.msra.mxu0 %v4651
    %5487 = vmatprep.subr.mxu0 %v4660
    %5488 = vmatpush1.msra.mxu0 %v4659
    %5489 = vmatprep.subr.mxu0 %v4668
    %5490 = vmatpush1.msra.mxu0 %v4667
    %5491 = vmatprep.subr.mxu0 %v4676
    %5492 = vmatpush1.msra.mxu0 %v4675
    %5493 = vmatprep.subr.mxu0 %v4684
    %5494 = vmatpush1.msra.mxu0 %v4683
    %5495 = vmatprep.subr.mxu0 %v4692
    %5496 = vmatpush1.msra.mxu0 %v4691
    %5497 = vmatprep.subr.mxu0 %v4700
    %5498 = vmatpush1.msra.mxu0 %v4699
    %5499 = vmatprep.subr.mxu0 %v4708
    %5500 = vmatpush1.msra.mxu0 %v4707
    %5501 = vmatprep.subr.mxu0 %v4716
    %5502 = vmatpush1.msra.mxu0 %v4715
    %5503 = vmatprep.subr.mxu0 %v4724
    %5504 = vmatpush1.msra.mxu0 %v4723
    %5505 = vmatprep.subr.mxu0 %v4732
    %5506 = vmatpush1.msra.mxu0 %v4731
    %5507 = vmatprep.subr.mxu0 %v4740
    %5508 = vmatpush1.msra.mxu0 %v4739
    %5509 = vmatprep.subr.mxu0 %v4748
    %5510 = vmatpush1.msra.mxu0 %v4747
    %5511 = vmatprep.subr.mxu0 %v4756
    %5512 = vmatpush1.msra.mxu0 %v4755
    %5513 = vmatprep.subr.mxu0 %v4764
    %5514 = vmatpush1.msra.mxu0 %v4763
    %5515 = vmatprep.mubr.f32.mxu0 %v5022
    %5516 = vmatmul.mubr.f32.gmra.mrb[0].mxu0 %v5021
    %v5517 = vpop.f32.mrb[0].mxu0
    %v5518 = vadd.f32 0.0, %v5517
    %v5519 = vpop.f32.mrb[0].mxu0
    %v5520 = vadd.f32 0.0, %v5519
    %5521 = vdwg.mxu0
    %5522 = vmatprep.subr.mxu0 %v4772
    %5523 = vmatpush1.msra.mxu0 %v4771
    %5524 = vmatprep.subr.mxu0 %v4780
    %5525 = vmatpush1.msra.mxu0 %v4779
    %5526 = vmatprep.subr.mxu0 %v4788
    %5527 = vmatpush1.msra.mxu0 %v4787
    %5528 = vmatprep.subr.mxu0 %v4796
    %5529 = vmatpush1.msra.mxu0 %v4795
    %5530 = vmatprep.subr.mxu0 %v4804
    %5531 = vmatpush1.msra.mxu0 %v4803
    %5532 = vmatprep.subr.mxu0 %v4812
    %5533 = vmatpush1.msra.mxu0 %v4811
    %5534 = vmatprep.subr.mxu0 %v4820
    %5535 = vmatpush1.msra.mxu0 %v4819
    %5536 = vmatprep.subr.mxu0 %v4828
    %5537 = vmatpush1.msra.mxu0 %v4827
    %5538 = vmatprep.subr.mxu0 %v4836
    %5539 = vmatpush1.msra.mxu0 %v4835
    %5540 = vmatprep.subr.mxu0 %v4844
    %5541 = vmatpush1.msra.mxu0 %v4843
    %5542 = vmatprep.subr.mxu0 %v4852
    %5543 = vmatpush1.msra.mxu0 %v4851
    %5544 = vmatprep.subr.mxu0 %v4860
    %5545 = vmatpush1.msra.mxu0 %v4859
    %5546 = vmatprep.subr.mxu0 %v4868
    %5547 = vmatpush1.msra.mxu0 %v4867
    %5548 = vmatprep.subr.mxu0 %v4876
    %5549 = vmatpush1.msra.mxu0 %v4875
    %5550 = vmatprep.subr.mxu0 %v4884
    %5551 = vmatpush1.msra.mxu0 %v4883
    %5552 = vmatprep.subr.mxu0 %v4892
    %5553 = vmatpush1.msra.mxu0 %v4891
    %5554 = vmatprep.subr.mxu0 %v4900
    %5555 = vmatpush1.msra.mxu0 %v4899
    %5556 = vmatprep.subr.mxu0 %v4908
    %5557 = vmatpush1.msra.mxu0 %v4907
    %5558 = vmatprep.subr.mxu0 %v4916
    %5559 = vmatpush1.msra.mxu0 %v4915
    %5560 = vmatprep.subr.mxu0 %v4924
    %5561 = vmatpush1.msra.mxu0 %v4923
    %5562 = vmatprep.subr.mxu0 %v4932
    %5563 = vmatpush1.msra.mxu0 %v4931
    %5564 = vmatprep.subr.mxu0 %v4940
    %5565 = vmatpush1.msra.mxu0 %v4939
    %5566 = vmatprep.subr.mxu0 %v4948
    %5567 = vmatpush1.msra.mxu0 %v4947
    %5568 = vmatprep.subr.mxu0 %v4956
    %5569 = vmatpush1.msra.mxu0 %v4955
    %5570 = vmatprep.subr.mxu0 %v4964
    %5571 = vmatpush1.msra.mxu0 %v4963
    %5572 = vmatprep.subr.mxu0 %v4972
    %5573 = vmatpush1.msra.mxu0 %v4971
    %5574 = vmatprep.subr.mxu0 %v4980
    %5575 = vmatpush1.msra.mxu0 %v4979
    %5576 = vmatprep.subr.mxu0 %v4988
    %5577 = vmatpush1.msra.mxu0 %v4987
    %5578 = vmatprep.subr.mxu0 %v4996
    %5579 = vmatpush1.msra.mxu0 %v4995
    %5580 = vmatprep.subr.mxu0 %v5004
    %5581 = vmatpush1.msra.mxu0 %v5003
    %5582 = vmatprep.subr.mxu0 %v5012
    %5583 = vmatpush1.msra.mxu0 %v5011
    %5584 = vmatprep.subr.mxu0 %v5020
    %5585 = vmatpush1.msra.mxu0 %v5019
    %5586 = vmatprep.mubr.f32.mxu0 %v5024
    %5587 = vmatmul.mubr.f32.gmra.mrb[0].mxu0 %v5023
    %v5588 = vpop.f32.mrb[0].mxu0
    %v5589 = vadd.f32 %v5518, %v5588
    %v5590 = vpop.f32.mrb[0].mxu0
    %v5591 = vadd.f32 %v5520, %v5590
    %5592 = vdwg.mxu0
    %5593 = vst [vmem:[#allocation7] sm:$0xff] %v5163
    %5594 = vst [vmem:[#allocation7 + $0x8] sm:$0xff] %v5165
    %5595 = vst [vmem:[#allocation7 + $0x10] sm:$0xff] %v5305
    %5596 = vst [vmem:[#allocation7 + $0x18] sm:$0xff] %v5307
    %5597 = vst [vmem:[#allocation7 + $0x20] sm:$0xff] %v5447
    %5598 = vst [vmem:[#allocation7 + $0x28] sm:$0xff] %v5449
    %5599 = vst [vmem:[#allocation7 + $0x30] sm:$0xff] %v5589
    %5600 = vst [vmem:[#allocation7 + $0x38] sm:$0xff] %v5591
    // Predicated region
    $region18: #{tpu_custom_call.1} parent=1 // pred_check
      _
    $region19: #{tpu_custom_call.1} parent=1 // pred_check_branch
      %5602 = sbr.rel (0) target = $region21
    $region20: #{tpu_custom_call.1} parent=1 // pred_region
      %s5604 = ssub.s32 1024, 1024
      %5605 = vsyncadd [#allocation4], %s5604
      %s5607 = sshll.u32 [#allocation7], 4
      %s5608 = int_to_ptr.vmem [resolvable:$true] %s5607
      %5610 = dma.vmem_to_hbm [thread:$0]  %s5608, 1024, %s2, [#allocation4]
    $region21: #{tpu_custom_call.1} parent=1 // pred_fallthru
      _
    // Predicated region
    $region22: #{tpu_custom_call.1} parent=1 // pred_check
      _
    $region23: #{tpu_custom_call.1} parent=1 // pred_check_branch
      %5612 = sbr.rel (0) target = $region25
    $region24: #{tpu_custom_call.1} parent=1 // pred_region
      %5613 = dma.done [#allocation4], 1024
    $region25: #{tpu_custom_call.1} parent=1 // pred_fallthru
      _
    %5614 = vsyncpa [#allocation3], 1
    %5615 = vsyncpa [#allocation6], 1
    %5616 = vsyncpa [#allocation4], 1

</llo_original>
